<compile_context>
chip_gen: v7x
topology: tpu7x:2x2x1
jax: 0.10.0
libtpu: 0.0.40
codegen_flags: <defaults>
</compile_context>

<pallas_src>
import functools

import jax
import jax.numpy as jnp
from jax.experimental import pallas as pl
from jax.experimental.pallas import tpu as pltpu

IN_CHANNELS = 32          # in_channels == conv_dim in the reference config
NUM_ANCHORS = 1           # the PyTorch module asserts num_anchors == 1
HEAD_ROWS = 16            # 1 cls + 4 reg + 9 obj-taps + 1 obj-bias + 1 pad


# ------------------------------ Pallas kernel --------------------------------
def _shift_lanes(row, off):
    """out[:, p] = row[:, p + off] (static off), zero-filled outside the row."""
    n = row.shape[-1]
    if off == 0:
        return row
    z = jnp.zeros((row.shape[0], abs(off)), row.dtype)
    if off > 0:
        return jnp.concatenate([row[:, off:], z], axis=1)
    return jnp.concatenate([z, row[:, :n + off]], axis=1)


def _head_kernel(x_ref, w1_ref, b1_ref, wh_ref, bh_ref, mask_ref, out_ref,
                 *, H, W, C):
    """Fused RPN head for one image: conv3x3 + ReLU + L2-norm, then cls/reg/obj."""
    HW = H * W

    # --- rpn_conv: 3x3 conv as 9 shifted matmuls over the zero-padded NHWC tile ---
    hid = jnp.zeros((HW, C), jnp.float32)
    for k in range(9):
        ky, kx = k // 3, k % 3
        xs = x_ref[0, ky:ky + H, kx:kx + W, :].reshape(HW, C)
        hid = hid + jnp.dot(xs, w1_ref[k], preferred_element_type=jnp.float32)
    hid = jnp.maximum(hid + b1_ref[...], 0.0)                       # bias + ReLU

    # --- F.normalize(p=2, dim=channel): per-pixel L2 norm over channels ---
    norm = jnp.sqrt(jnp.sum(hid * hid, axis=-1, keepdims=True))
    hn = hid / jnp.maximum(norm, 1e-12)

    # --- fused heads, channel-major (pixels on the lane axis -> lane dense) ---
    hn_t = hn.T                                                     # (C, HW)
    head = (jnp.dot(wh_ref[...], hn_t, preferred_element_type=jnp.float32)
            + bh_ref[...])                                          # (16, HW)

    # rpn_obj: finish its 3x3 conv over hn via masked lane-shifts of the 9 taps.
    obj = head[14:15, :]                                            # b_obj row
    for k in range(9):
        dy, dx = k // 3 - 1, k % 3 - 1
        tap = head[5 + k:6 + k, :]
        obj = obj + mask_ref[k:k + 1, :] * _shift_lanes(tap, dy * W + dx)

    # rows 0..4 = cls|reg, row 5 = obj, rows 6..7 = zero pad -> (8, HW) slab.
    out_ref[0] = jnp.concatenate(
        [head[0:5, :], obj, jnp.zeros((2, HW), jnp.float32)], axis=0)


def _conv3x3_tap_masks(H, W):
    """(16, H*W) f32; row k masks which output pixels see obj-conv tap k."""
    p = jnp.arange(H * W, dtype=jnp.int32)
    y, x = p // W, p % W
    rows = []
    for k in range(9):
        dy, dx = k // 3 - 1, k % 3 - 1
        ok = (y + dy >= 0) & (y + dy < H) & (x + dx >= 0) & (x + dx < W)
        rows.append(ok.astype(jnp.float32))
    rows.extend([jnp.zeros((H * W,), jnp.float32)] * (HEAD_ROWS - 9))
    return jnp.stack(rows, axis=0)


def _rpn_head_level(x_pad, w1_k, b1_k, whead, bhead, masks, *, H, W):
    n, _, _, c = x_pad.shape
    hw = H * W
    kernel = functools.partial(_head_kernel, H=H, W=W, C=c)
    return pl.pallas_call(
        kernel,
        out_shape=jax.ShapeDtypeStruct((n, 8, hw), jnp.float32),
        grid_spec=pltpu.PrefetchScalarGridSpec(
            num_scalar_prefetch=0,
            grid=(n,),
            in_specs=[
                pl.BlockSpec((1, H + 2, W + 2, c), lambda i: (i, 0, 0, 0)),
                pl.BlockSpec((9, c, c), lambda i: (0, 0, 0)),
                pl.BlockSpec((1, c), lambda i: (0, 0)),
                pl.BlockSpec((HEAD_ROWS, c), lambda i: (0, 0)),
                pl.BlockSpec((HEAD_ROWS, 1), lambda i: (0, 0)),
                pl.BlockSpec((HEAD_ROWS, hw), lambda i: (0, 0)),
            ],
            out_specs=pl.BlockSpec((1, 8, hw), lambda i: (i, 0, 0)),
        ),
        compiler_params=pltpu.CompilerParams(
            dimension_semantics=("parallel",)),
    )(x_pad, w1_k, b1_k, whead, bhead, masks)


# ------------------------------- module wrapper -------------------------------
def wsovod_rpn_head_forward(features, params):
    """Mirrors WSOVODRPNHead.forward: returns (logits, bbox_reg, objectness) lists."""
    c = params["w1"].shape[2]
    w1_k = params["w1"].reshape(9, c, c)              # (ky*3+kx, cin, cout)
    b1_k = params["b1"].reshape(1, c)
    whead = jnp.concatenate([
        params["w_cls"].T,                            # row 0
        params["w_reg"].T,                            # rows 1..4
        params["w_obj"].reshape(9, c),                # rows 5..13 (obj-conv taps)
        jnp.zeros((2, c), jnp.float32),               # rows 14..15 (bias / pad)
    ], axis=0)
    bhead = jnp.concatenate([
        params["b_cls"], params["b_reg"],
        jnp.zeros((9,), jnp.float32),                 # tap rows carry no bias
        params["b_obj"], jnp.zeros((1,), jnp.float32),
    ]).reshape(HEAD_ROWS, 1)

    logits, bbox_reg, objectness = [], [], []
    for x in features:
        n, cx, h, w = x.shape
        assert cx == c, "Each level must have the same channel count."
        x_pad = jnp.pad(jnp.transpose(x, (0, 2, 3, 1)),     # NCHW -> NHWC, pad=1
                        ((0, 0), (1, 1), (1, 1), (0, 0)))
        masks = _conv3x3_tap_masks(h, w)
        out = _rpn_head_level(x_pad, w1_k, b1_k, whead, bhead, masks, H=h, W=w)
        logits.append(out[:, 0:1, :].reshape(n, 1, h, w))
        bbox_reg.append(out[:, 1:5, :].reshape(n, 4, h, w))
        objectness.append(out[:, 5:6, :].reshape(n, 1, h, w))
    return logits, bbox_reg, objectness


def init_params(key, c=IN_CHANNELS):
    # PyTorch init: normal(std=0.01) weights, zero biases.  Biases are randomized
    # here (same std) purely to exercise the bias path in the numerics check;
    # forward semantics are identical.
    ks = jax.random.split(key, 8)
    std = 0.01
    return {
        "w1": std * jax.random.normal(ks[0], (3, 3, c, c), jnp.float32),   # HWIO
        "b1": std * jax.random.normal(ks[1], (c,), jnp.float32),
        "w_cls": std * jax.random.normal(ks[2], (c, 1), jnp.float32),
        "b_cls": std * jax.random.normal(ks[3], (1,), jnp.float32),
        "w_reg": std * jax.random.normal(ks[4], (c, 4), jnp.float32),
        "b_reg": std * jax.random.normal(ks[5], (4,), jnp.float32),
        "w_obj": std * jax.random.normal(ks[6], (3, 3, c, 1), jnp.float32),  # HWIO
        "b_obj": std * jax.random.normal(ks[7], (1,), jnp.float32),
    }


# ----------------------------- pure-JAX reference -----------------------------
def reference_forward(features, params):
    hi = jax.lax.Precision.HIGHEST
    logits, bbox_reg, objectness = [], [], []
    for x in features:
        xn = jnp.transpose(x, (0, 2, 3, 1))
        hid = jax.lax.conv_general_dilated(
            xn, params["w1"], (1, 1), "SAME",
            dimension_numbers=("NHWC", "HWIO", "NHWC"), precision=hi)
        hid = jnp.maximum(hid + params["b1"], 0.0)
        norm = jnp.sqrt(jnp.sum(hid * hid, axis=-1, keepdims=True))
        hid = hid / jnp.maximum(norm, 1e-12)
        cls = jnp.einsum("nhwc,co->nhwo", hid, params["w_cls"],
                         precision=hi) + params["b_cls"]
        reg = jnp.einsum("nhwc,co->nhwo", hid, params["w_reg"],
                         precision=hi) + params["b_reg"]
        obj = jax.lax.conv_general_dilated(
            hid, params["w_obj"], (1, 1), "SAME",
            dimension_numbers=("NHWC", "HWIO", "NHWC"),
            precision=hi) + params["b_obj"]
        logits.append(jnp.transpose(cls, (0, 3, 1, 2)))
        bbox_reg.append(jnp.transpose(reg, (0, 3, 1, 2)))
        objectness.append(jnp.transpose(obj, (0, 3, 1, 2)))
    return logits, bbox_reg, objectness


# ------------------------------------ main ------------------------------------
if __name__ == "__main__":
    key = jax.random.PRNGKey(0)
    kp, kf0, kf1 = jax.random.split(key, 3)
    params = init_params(kp)

    # Two feature levels (the module processes a list of same-channel features).
    features = [
        jax.random.normal(kf0, (2, IN_CHANNELS, 16, 16), jnp.float32),
        jax.random.normal(kf1, (2, IN_CHANNELS, 8, 8), jnp.float32),
    ]

    outs = wsovod_rpn_head_forward(features, params)
    outs = jax.block_until_ready(outs)

    refs = reference_forward(features, params)
    names = ("logits", "bbox_reg", "objectness")
    for name, got_list, ref_list in zip(names, outs, refs):
        for lvl, (got, ref) in enumerate(zip(got_list, ref_list)):
            assert got.shape == ref.shape, f"{name} level {lvl} shape mismatch"
            assert jnp.allclose(got, ref, rtol=2e-2, atol=1e-3), (
                f"{name} level {lvl} mismatch")

    assert outs[0][0].shape == (2, 1, 16, 16)
    assert outs[1][0].shape == (2, 4, 16, 16)
    assert outs[2][0].shape == (2, 1, 16, 16)
    print("KERNEL_OK")
</pallas_src>

<mosaic_0001>
module attributes {stable_mosaic.version = 11 : i64} {
  func.func @_head_kernel(%arg0: i32, %arg1: memref<1x18x18x32xf32, #tpu.memory_space<vmem>>, %arg2: memref<9x32x32xf32, #tpu.memory_space<vmem>>, %arg3: memref<1x32xf32, #tpu.memory_space<vmem>>, %arg4: memref<16x32xf32, #tpu.memory_space<vmem>>, %arg5: memref<16x1xf32, #tpu.memory_space<vmem>>, %arg6: memref<16x256xf32, #tpu.memory_space<vmem>>, %arg7: memref<1x8x256xf32, #tpu.memory_space<vmem>>) attributes {dimension_semantics = [#tpu.dimension_semantics<parallel>], iteration_bounds = array<i64: 2>, scalar_prefetch = 0 : i64, scratch_operands = 0 : i64, tpu.core_type = #tpu.core_type<tc>, window_params = [{transform_indices = @transform_0, window_bounds = array<i64: 1, 18, 18, 32>}, {pipeline_mode = #tpu.pipeline_mode<synchronous>, transform_indices = @transform_1, window_bounds = array<i64: 9, 32, 32>}, {pipeline_mode = #tpu.pipeline_mode<synchronous>, transform_indices = @transform_2, window_bounds = array<i64: 1, 32>}, {pipeline_mode = #tpu.pipeline_mode<synchronous>, transform_indices = @transform_3, window_bounds = array<i64: 16, 32>}, {pipeline_mode = #tpu.pipeline_mode<synchronous>, transform_indices = @transform_4, window_bounds = array<i64: 16, 1>}, {pipeline_mode = #tpu.pipeline_mode<synchronous>, transform_indices = @transform_5, window_bounds = array<i64: 16, 256>}, {transform_indices = @transform_6, window_bounds = array<i64: 1, 8, 256>}]} {
    %cst = arith.constant 0.000000e+00 : f32
    %0 = vector.broadcast %cst : f32 to vector<256x32xf32>
    %c0 = arith.constant 0 : index
    %c0_0 = arith.constant 0 : index
    %c0_1 = arith.constant 0 : index
    %c0_2 = arith.constant 0 : index
    %1 = vector.load %arg1[%c0, %c0_0, %c0_1, %c0_2] : memref<1x18x18x32xf32, #tpu.memory_space<vmem>>, vector<1x16x16x32xf32>
    %2 = vector.shape_cast %1 : vector<1x16x16x32xf32> to vector<16x16x32xf32>
    %3 = vector.shape_cast %2 : vector<16x16x32xf32> to vector<256x32xf32>
    %c0_3 = arith.constant 0 : index
    %c0_4 = arith.constant 0 : index
    %c0_5 = arith.constant 0 : index
    %4 = vector.load %arg2[%c0_3, %c0_4, %c0_5] : memref<9x32x32xf32, #tpu.memory_space<vmem>>, vector<1x32x32xf32>
    %5 = vector.shape_cast %4 : vector<1x32x32xf32> to vector<32x32xf32>
    %cst_6 = arith.constant dense<0.000000e+00> : vector<256x32xf32>
    %6 = tpu.matmul %3, %5, %cst_6 {dimension_numbers = #tpu.dot_dimension_numbers<[1], [0], [0], [1], [0, 0, 1, 1], [], []>} : vector<256x32xf32>, vector<32x32xf32>, vector<256x32xf32> -> vector<256x32xf32>
    %7 = arith.addf %0, %6 : vector<256x32xf32>
    %c0_7 = arith.constant 0 : index
    %c0_8 = arith.constant 0 : index
    %c1 = arith.constant 1 : index
    %c0_9 = arith.constant 0 : index
    %8 = vector.load %arg1[%c0_7, %c0_8, %c1, %c0_9] : memref<1x18x18x32xf32, #tpu.memory_space<vmem>>, vector<1x16x16x32xf32>
    %9 = vector.shape_cast %8 : vector<1x16x16x32xf32> to vector<16x16x32xf32>
    %10 = vector.shape_cast %9 : vector<16x16x32xf32> to vector<256x32xf32>
    %c1_10 = arith.constant 1 : index
    %c0_11 = arith.constant 0 : index
    %c0_12 = arith.constant 0 : index
    %11 = vector.load %arg2[%c1_10, %c0_11, %c0_12] : memref<9x32x32xf32, #tpu.memory_space<vmem>>, vector<1x32x32xf32>
    %12 = vector.shape_cast %11 : vector<1x32x32xf32> to vector<32x32xf32>
    %cst_13 = arith.constant dense<0.000000e+00> : vector<256x32xf32>
    %13 = tpu.matmul %10, %12, %cst_13 {dimension_numbers = #tpu.dot_dimension_numbers<[1], [0], [0], [1], [0, 0, 1, 1], [], []>} : vector<256x32xf32>, vector<32x32xf32>, vector<256x32xf32> -> vector<256x32xf32>
    %14 = arith.addf %7, %13 : vector<256x32xf32>
    %c0_14 = arith.constant 0 : index
    %c0_15 = arith.constant 0 : index
    %c2 = arith.constant 2 : index
    %c0_16 = arith.constant 0 : index
    %15 = vector.load %arg1[%c0_14, %c0_15, %c2, %c0_16] : memref<1x18x18x32xf32, #tpu.memory_space<vmem>>, vector<1x16x16x32xf32>
    %16 = vector.shape_cast %15 : vector<1x16x16x32xf32> to vector<16x16x32xf32>
    %17 = vector.shape_cast %16 : vector<16x16x32xf32> to vector<256x32xf32>
    %c2_17 = arith.constant 2 : index
    %c0_18 = arith.constant 0 : index
    %c0_19 = arith.constant 0 : index
    %18 = vector.load %arg2[%c2_17, %c0_18, %c0_19] : memref<9x32x32xf32, #tpu.memory_space<vmem>>, vector<1x32x32xf32>
    %19 = vector.shape_cast %18 : vector<1x32x32xf32> to vector<32x32xf32>
    %cst_20 = arith.constant dense<0.000000e+00> : vector<256x32xf32>
    %20 = tpu.matmul %17, %19, %cst_20 {dimension_numbers = #tpu.dot_dimension_numbers<[1], [0], [0], [1], [0, 0, 1, 1], [], []>} : vector<256x32xf32>, vector<32x32xf32>, vector<256x32xf32> -> vector<256x32xf32>
    %21 = arith.addf %14, %20 : vector<256x32xf32>
    %c0_21 = arith.constant 0 : index
    %c1_22 = arith.constant 1 : index
    %c0_23 = arith.constant 0 : index
    %c0_24 = arith.constant 0 : index
    %22 = vector.load %arg1[%c0_21, %c1_22, %c0_23, %c0_24] : memref<1x18x18x32xf32, #tpu.memory_space<vmem>>, vector<1x16x16x32xf32>
    %23 = vector.shape_cast %22 : vector<1x16x16x32xf32> to vector<16x16x32xf32>
    %24 = vector.shape_cast %23 : vector<16x16x32xf32> to vector<256x32xf32>
    %c3 = arith.constant 3 : index
    %c0_25 = arith.constant 0 : index
    %c0_26 = arith.constant 0 : index
    %25 = vector.load %arg2[%c3, %c0_25, %c0_26] : memref<9x32x32xf32, #tpu.memory_space<vmem>>, vector<1x32x32xf32>
    %26 = vector.shape_cast %25 : vector<1x32x32xf32> to vector<32x32xf32>
    %cst_27 = arith.constant dense<0.000000e+00> : vector<256x32xf32>
    %27 = tpu.matmul %24, %26, %cst_27 {dimension_numbers = #tpu.dot_dimension_numbers<[1], [0], [0], [1], [0, 0, 1, 1], [], []>} : vector<256x32xf32>, vector<32x32xf32>, vector<256x32xf32> -> vector<256x32xf32>
    %28 = arith.addf %21, %27 : vector<256x32xf32>
    %c0_28 = arith.constant 0 : index
    %c1_29 = arith.constant 1 : index
    %c1_30 = arith.constant 1 : index
    %c0_31 = arith.constant 0 : index
    %29 = vector.load %arg1[%c0_28, %c1_29, %c1_30, %c0_31] : memref<1x18x18x32xf32, #tpu.memory_space<vmem>>, vector<1x16x16x32xf32>
    %30 = vector.shape_cast %29 : vector<1x16x16x32xf32> to vector<16x16x32xf32>
    %31 = vector.shape_cast %30 : vector<16x16x32xf32> to vector<256x32xf32>
    %c4 = arith.constant 4 : index
    %c0_32 = arith.constant 0 : index
    %c0_33 = arith.constant 0 : index
    %32 = vector.load %arg2[%c4, %c0_32, %c0_33] : memref<9x32x32xf32, #tpu.memory_space<vmem>>, vector<1x32x32xf32>
    %33 = vector.shape_cast %32 : vector<1x32x32xf32> to vector<32x32xf32>
    %cst_34 = arith.constant dense<0.000000e+00> : vector<256x32xf32>
    %34 = tpu.matmul %31, %33, %cst_34 {dimension_numbers = #tpu.dot_dimension_numbers<[1], [0], [0], [1], [0, 0, 1, 1], [], []>} : vector<256x32xf32>, vector<32x32xf32>, vector<256x32xf32> -> vector<256x32xf32>
    %35 = arith.addf %28, %34 : vector<256x32xf32>
    %c0_35 = arith.constant 0 : index
    %c1_36 = arith.constant 1 : index
    %c2_37 = arith.constant 2 : index
    %c0_38 = arith.constant 0 : index
    %36 = vector.load %arg1[%c0_35, %c1_36, %c2_37, %c0_38] : memref<1x18x18x32xf32, #tpu.memory_space<vmem>>, vector<1x16x16x32xf32>
    %37 = vector.shape_cast %36 : vector<1x16x16x32xf32> to vector<16x16x32xf32>
    %38 = vector.shape_cast %37 : vector<16x16x32xf32> to vector<256x32xf32>
    %c5 = arith.constant 5 : index
    %c0_39 = arith.constant 0 : index
    %c0_40 = arith.constant 0 : index
    %39 = vector.load %arg2[%c5, %c0_39, %c0_40] : memref<9x32x32xf32, #tpu.memory_space<vmem>>, vector<1x32x32xf32>
    %40 = vector.shape_cast %39 : vector<1x32x32xf32> to vector<32x32xf32>
    %cst_41 = arith.constant dense<0.000000e+00> : vector<256x32xf32>
    %41 = tpu.matmul %38, %40, %cst_41 {dimension_numbers = #tpu.dot_dimension_numbers<[1], [0], [0], [1], [0, 0, 1, 1], [], []>} : vector<256x32xf32>, vector<32x32xf32>, vector<256x32xf32> -> vector<256x32xf32>
    %42 = arith.addf %35, %41 : vector<256x32xf32>
    %c0_42 = arith.constant 0 : index
    %c2_43 = arith.constant 2 : index
    %c0_44 = arith.constant 0 : index
    %c0_45 = arith.constant 0 : index
    %43 = vector.load %arg1[%c0_42, %c2_43, %c0_44, %c0_45] : memref<1x18x18x32xf32, #tpu.memory_space<vmem>>, vector<1x16x16x32xf32>
    %44 = vector.shape_cast %43 : vector<1x16x16x32xf32> to vector<16x16x32xf32>
    %45 = vector.shape_cast %44 : vector<16x16x32xf32> to vector<256x32xf32>
    %c6 = arith.constant 6 : index
    %c0_46 = arith.constant 0 : index
    %c0_47 = arith.constant 0 : index
    %46 = vector.load %arg2[%c6, %c0_46, %c0_47] : memref<9x32x32xf32, #tpu.memory_space<vmem>>, vector<1x32x32xf32>
    %47 = vector.shape_cast %46 : vector<1x32x32xf32> to vector<32x32xf32>
    %cst_48 = arith.constant dense<0.000000e+00> : vector<256x32xf32>
    %48 = tpu.matmul %45, %47, %cst_48 {dimension_numbers = #tpu.dot_dimension_numbers<[1], [0], [0], [1], [0, 0, 1, 1], [], []>} : vector<256x32xf32>, vector<32x32xf32>, vector<256x32xf32> -> vector<256x32xf32>
    %49 = arith.addf %42, %48 : vector<256x32xf32>
    %c0_49 = arith.constant 0 : index
    %c2_50 = arith.constant 2 : index
    %c1_51 = arith.constant 1 : index
    %c0_52 = arith.constant 0 : index
    %50 = vector.load %arg1[%c0_49, %c2_50, %c1_51, %c0_52] : memref<1x18x18x32xf32, #tpu.memory_space<vmem>>, vector<1x16x16x32xf32>
    %51 = vector.shape_cast %50 : vector<1x16x16x32xf32> to vector<16x16x32xf32>
    %52 = vector.shape_cast %51 : vector<16x16x32xf32> to vector<256x32xf32>
    %c7 = arith.constant 7 : index
    %c0_53 = arith.constant 0 : index
    %c0_54 = arith.constant 0 : index
    %53 = vector.load %arg2[%c7, %c0_53, %c0_54] : memref<9x32x32xf32, #tpu.memory_space<vmem>>, vector<1x32x32xf32>
    %54 = vector.shape_cast %53 : vector<1x32x32xf32> to vector<32x32xf32>
    %cst_55 = arith.constant dense<0.000000e+00> : vector<256x32xf32>
    %55 = tpu.matmul %52, %54, %cst_55 {dimension_numbers = #tpu.dot_dimension_numbers<[1], [0], [0], [1], [0, 0, 1, 1], [], []>} : vector<256x32xf32>, vector<32x32xf32>, vector<256x32xf32> -> vector<256x32xf32>
    %56 = arith.addf %49, %55 : vector<256x32xf32>
    %c0_56 = arith.constant 0 : index
    %c2_57 = arith.constant 2 : index
    %c2_58 = arith.constant 2 : index
    %c0_59 = arith.constant 0 : index
    %57 = vector.load %arg1[%c0_56, %c2_57, %c2_58, %c0_59] : memref<1x18x18x32xf32, #tpu.memory_space<vmem>>, vector<1x16x16x32xf32>
    %58 = vector.shape_cast %57 : vector<1x16x16x32xf32> to vector<16x16x32xf32>
    %59 = vector.shape_cast %58 : vector<16x16x32xf32> to vector<256x32xf32>
    %c8 = arith.constant 8 : index
    %c0_60 = arith.constant 0 : index
    %c0_61 = arith.constant 0 : index
    %60 = vector.load %arg2[%c8, %c0_60, %c0_61] : memref<9x32x32xf32, #tpu.memory_space<vmem>>, vector<1x32x32xf32>
    %61 = vector.shape_cast %60 : vector<1x32x32xf32> to vector<32x32xf32>
    %cst_62 = arith.constant dense<0.000000e+00> : vector<256x32xf32>
    %62 = tpu.matmul %59, %61, %cst_62 {dimension_numbers = #tpu.dot_dimension_numbers<[1], [0], [0], [1], [0, 0, 1, 1], [], []>} : vector<256x32xf32>, vector<32x32xf32>, vector<256x32xf32> -> vector<256x32xf32>
    %63 = arith.addf %56, %62 : vector<256x32xf32>
    %c0_63 = arith.constant 0 : index
    %c0_64 = arith.constant 0 : index
    %64 = vector.load %arg3[%c0_63, %c0_64] : memref<1x32xf32, #tpu.memory_space<vmem>>, vector<1x32xf32>
    %65 = vector.broadcast %64 : vector<1x32xf32> to vector<256x32xf32>
    %66 = arith.addf %63, %65 : vector<256x32xf32>
    %cst_65 = arith.constant 0.000000e+00 : f32
    %67 = vector.broadcast %cst_65 : f32 to vector<256x32xf32>
    %68 = arith.maximumf %66, %67 : vector<256x32xf32>
    %69 = arith.mulf %68, %68 : vector<256x32xf32>
    %cst_66 = arith.constant dense<0.000000e+00> : vector<256xf32>
    %70 = vector.multi_reduction <add>, %69, %cst_66 [1] : vector<256x32xf32> to vector<256xf32>
    %71 = vector.shape_cast %70 : vector<256xf32> to vector<256x1xf32>
    %72 = math.sqrt %71 : vector<256x1xf32>
    %cst_67 = arith.constant 9.99999996E-13 : f32
    %73 = vector.broadcast %cst_67 : f32 to vector<256x1xf32>
    %74 = arith.maximumf %72, %73 : vector<256x1xf32>
    %75 = vector.broadcast %74 : vector<256x1xf32> to vector<256x32xf32>
    %76 = arith.divf %68, %75 : vector<256x32xf32>
    %77 = tpu.transpose %76, [1, 0] : vector<256x32xf32> -> vector<32x256xf32>
    %c0_68 = arith.constant 0 : index
    %c0_69 = arith.constant 0 : index
    %78 = vector.load %arg4[%c0_68, %c0_69] : memref<16x32xf32, #tpu.memory_space<vmem>>, vector<16x32xf32>
    %cst_70 = arith.constant dense<0.000000e+00> : vector<16x256xf32>
    %79 = tpu.matmul %78, %77, %cst_70 {dimension_numbers = #tpu.dot_dimension_numbers<[1], [0], [0], [1], [0, 0, 1, 1], [], []>} : vector<16x32xf32>, vector<32x256xf32>, vector<16x256xf32> -> vector<16x256xf32>
    %c0_71 = arith.constant 0 : index
    %c0_72 = arith.constant 0 : index
    %80 = vector.load %arg5[%c0_71, %c0_72] : memref<16x1xf32, #tpu.memory_space<vmem>>, vector<16x1xf32>
    %81 = vector.broadcast %80 : vector<16x1xf32> to vector<16x256xf32>
    %82 = arith.addf %79, %81 : vector<16x256xf32>
    %83 = vector.extract_strided_slice %82 {offsets = [14, 0], sizes = [1, 256], strides = [1, 1]} : vector<16x256xf32> to vector<1x256xf32>
    %84 = vector.extract_strided_slice %82 {offsets = [5, 0], sizes = [1, 256], strides = [1, 1]} : vector<16x256xf32> to vector<1x256xf32>
    %c0_73 = arith.constant 0 : index
    %c0_74 = arith.constant 0 : index
    %85 = vector.load %arg6[%c0_73, %c0_74] : memref<16x256xf32, #tpu.memory_space<vmem>>, vector<1x256xf32>
    %cst_75 = arith.constant 0.000000e+00 : f32
    %86 = vector.broadcast %cst_75 : f32 to vector<1x17xf32>
    %87 = vector.extract_strided_slice %84 {offsets = [0, 0], sizes = [1, 239], strides = [1, 1]} : vector<1x256xf32> to vector<1x239xf32>
    %88 = tpu.concatenate %86, %87 in 1 : vector<1x17xf32>, vector<1x239xf32> -> vector<1x256xf32>
    %89 = arith.mulf %85, %88 : vector<1x256xf32>
    %90 = arith.addf %83, %89 : vector<1x256xf32>
    %91 = vector.extract_strided_slice %82 {offsets = [6, 0], sizes = [1, 256], strides = [1, 1]} : vector<16x256xf32> to vector<1x256xf32>
    %c1_76 = arith.constant 1 : index
    %c0_77 = arith.constant 0 : index
    %92 = vector.load %arg6[%c1_76, %c0_77] : memref<16x256xf32, #tpu.memory_space<vmem>>, vector<1x256xf32>
    %cst_78 = arith.constant 0.000000e+00 : f32
    %93 = vector.broadcast %cst_78 : f32 to vector<1x16xf32>
    %94 = vector.extract_strided_slice %91 {offsets = [0, 0], sizes = [1, 240], strides = [1, 1]} : vector<1x256xf32> to vector<1x240xf32>
    %95 = tpu.concatenate %93, %94 in 1 : vector<1x16xf32>, vector<1x240xf32> -> vector<1x256xf32>
    %96 = arith.mulf %92, %95 : vector<1x256xf32>
    %97 = arith.addf %90, %96 : vector<1x256xf32>
    %98 = vector.extract_strided_slice %82 {offsets = [7, 0], sizes = [1, 256], strides = [1, 1]} : vector<16x256xf32> to vector<1x256xf32>
    %c2_79 = arith.constant 2 : index
    %c0_80 = arith.constant 0 : index
    %99 = vector.load %arg6[%c2_79, %c0_80] : memref<16x256xf32, #tpu.memory_space<vmem>>, vector<1x256xf32>
    %cst_81 = arith.constant 0.000000e+00 : f32
    %100 = vector.broadcast %cst_81 : f32 to vector<1x15xf32>
    %101 = vector.extract_strided_slice %98 {offsets = [0, 0], sizes = [1, 241], strides = [1, 1]} : vector<1x256xf32> to vector<1x241xf32>
    %102 = tpu.concatenate %100, %101 in 1 : vector<1x15xf32>, vector<1x241xf32> -> vector<1x256xf32>
    %103 = arith.mulf %99, %102 : vector<1x256xf32>
    %104 = arith.addf %97, %103 : vector<1x256xf32>
    %105 = vector.extract_strided_slice %82 {offsets = [8, 0], sizes = [1, 256], strides = [1, 1]} : vector<16x256xf32> to vector<1x256xf32>
    %c3_82 = arith.constant 3 : index
    %c0_83 = arith.constant 0 : index
    %106 = vector.load %arg6[%c3_82, %c0_83] : memref<16x256xf32, #tpu.memory_space<vmem>>, vector<1x256xf32>
    %cst_84 = arith.constant 0.000000e+00 : f32
    %107 = vector.broadcast %cst_84 : f32 to vector<1x1xf32>
    %108 = vector.extract_strided_slice %105 {offsets = [0, 0], sizes = [1, 255], strides = [1, 1]} : vector<1x256xf32> to vector<1x255xf32>
    %109 = tpu.concatenate %107, %108 in 1 : vector<1x1xf32>, vector<1x255xf32> -> vector<1x256xf32>
    %110 = arith.mulf %106, %109 : vector<1x256xf32>
    %111 = arith.addf %104, %110 : vector<1x256xf32>
    %112 = vector.extract_strided_slice %82 {offsets = [9, 0], sizes = [1, 256], strides = [1, 1]} : vector<16x256xf32> to vector<1x256xf32>
    %c4_85 = arith.constant 4 : index
    %c0_86 = arith.constant 0 : index
    %113 = vector.load %arg6[%c4_85, %c0_86] : memref<16x256xf32, #tpu.memory_space<vmem>>, vector<1x256xf32>
    %114 = arith.mulf %113, %112 : vector<1x256xf32>
    %115 = arith.addf %111, %114 : vector<1x256xf32>
    %116 = vector.extract_strided_slice %82 {offsets = [10, 0], sizes = [1, 256], strides = [1, 1]} : vector<16x256xf32> to vector<1x256xf32>
    %c5_87 = arith.constant 5 : index
    %c0_88 = arith.constant 0 : index
    %117 = vector.load %arg6[%c5_87, %c0_88] : memref<16x256xf32, #tpu.memory_space<vmem>>, vector<1x256xf32>
    %cst_89 = arith.constant 0.000000e+00 : f32
    %118 = vector.broadcast %cst_89 : f32 to vector<1x1xf32>
    %119 = vector.extract_strided_slice %116 {offsets = [0, 1], sizes = [1, 255], strides = [1, 1]} : vector<1x256xf32> to vector<1x255xf32>
    %120 = tpu.concatenate %119, %118 in 1 : vector<1x255xf32>, vector<1x1xf32> -> vector<1x256xf32>
    %121 = arith.mulf %117, %120 : vector<1x256xf32>
    %122 = arith.addf %115, %121 : vector<1x256xf32>
    %123 = vector.extract_strided_slice %82 {offsets = [11, 0], sizes = [1, 256], strides = [1, 1]} : vector<16x256xf32> to vector<1x256xf32>
    %c6_90 = arith.constant 6 : index
    %c0_91 = arith.constant 0 : index
    %124 = vector.load %arg6[%c6_90, %c0_91] : memref<16x256xf32, #tpu.memory_space<vmem>>, vector<1x256xf32>
    %cst_92 = arith.constant 0.000000e+00 : f32
    %125 = vector.broadcast %cst_92 : f32 to vector<1x15xf32>
    %126 = vector.extract_strided_slice %123 {offsets = [0, 15], sizes = [1, 241], strides = [1, 1]} : vector<1x256xf32> to vector<1x241xf32>
    %127 = tpu.concatenate %126, %125 in 1 : vector<1x241xf32>, vector<1x15xf32> -> vector<1x256xf32>
    %128 = arith.mulf %124, %127 : vector<1x256xf32>
    %129 = arith.addf %122, %128 : vector<1x256xf32>
    %130 = vector.extract_strided_slice %82 {offsets = [12, 0], sizes = [1, 256], strides = [1, 1]} : vector<16x256xf32> to vector<1x256xf32>
    %c7_93 = arith.constant 7 : index
    %c0_94 = arith.constant 0 : index
    %131 = vector.load %arg6[%c7_93, %c0_94] : memref<16x256xf32, #tpu.memory_space<vmem>>, vector<1x256xf32>
    %cst_95 = arith.constant 0.000000e+00 : f32
    %132 = vector.broadcast %cst_95 : f32 to vector<1x16xf32>
    %133 = vector.extract_strided_slice %130 {offsets = [0, 16], sizes = [1, 240], strides = [1, 1]} : vector<1x256xf32> to vector<1x240xf32>
    %134 = tpu.concatenate %133, %132 in 1 : vector<1x240xf32>, vector<1x16xf32> -> vector<1x256xf32>
    %135 = arith.mulf %131, %134 : vector<1x256xf32>
    %136 = arith.addf %129, %135 : vector<1x256xf32>
    %137 = vector.extract_strided_slice %82 {offsets = [13, 0], sizes = [1, 256], strides = [1, 1]} : vector<16x256xf32> to vector<1x256xf32>
    %c8_96 = arith.constant 8 : index
    %c0_97 = arith.constant 0 : index
    %138 = vector.load %arg6[%c8_96, %c0_97] : memref<16x256xf32, #tpu.memory_space<vmem>>, vector<1x256xf32>
    %cst_98 = arith.constant 0.000000e+00 : f32
    %139 = vector.broadcast %cst_98 : f32 to vector<1x17xf32>
    %140 = vector.extract_strided_slice %137 {offsets = [0, 17], sizes = [1, 239], strides = [1, 1]} : vector<1x256xf32> to vector<1x239xf32>
    %141 = tpu.concatenate %140, %139 in 1 : vector<1x239xf32>, vector<1x17xf32> -> vector<1x256xf32>
    %142 = arith.mulf %138, %141 : vector<1x256xf32>
    %143 = arith.addf %136, %142 : vector<1x256xf32>
    %144 = vector.extract_strided_slice %82 {offsets = [0, 0], sizes = [5, 256], strides = [1, 1]} : vector<16x256xf32> to vector<5x256xf32>
    %cst_99 = arith.constant 0.000000e+00 : f32
    %145 = vector.broadcast %cst_99 : f32 to vector<2x256xf32>
    %146 = tpu.concatenate %144, %143, %145 in 0 : vector<5x256xf32>, vector<1x256xf32>, vector<2x256xf32> -> vector<8x256xf32>
    %c0_100 = arith.constant 0 : index
    %c0_101 = arith.constant 0 : index
    %c0_102 = arith.constant 0 : index
    %147 = vector.load %arg7[%c0_100, %c0_101, %c0_102] : memref<1x8x256xf32, #tpu.memory_space<vmem>>, vector<1x8x256xf32>
    %148 = vector.shape_cast %147 : vector<1x8x256xf32> to vector<8x256xf32>
    %149 = vector.shape_cast %146 : vector<8x256xf32> to vector<1x8x256xf32>
    tpu.vector_store %arg7[%c0_100, %c0_101, %c0_102], %149 {strides = array<i32>} : memref<1x8x256xf32, #tpu.memory_space<vmem>>, vector<1x8x256xf32>,
    return
  }
  func.func @transform_0(%arg0: i32) -> (i32, i32, i32, i32) {
    %c0_i32 = arith.constant 0 : i32
    %c0_i32_0 = arith.constant 0 : i32
    %c0_i32_1 = arith.constant 0 : i32
    %c0_i32_2 = arith.constant 0 : i32
    return %arg0, %c0_i32, %c0_i32_0, %c0_i32_1 : i32, i32, i32, i32
  }
  func.func @transform_1(%arg0: i32) -> (i32, i32, i32) {
    %c0_i32 = arith.constant 0 : i32
    %c0_i32_0 = arith.constant 0 : i32
    %c0_i32_1 = arith.constant 0 : i32
    %c0_i32_2 = arith.constant 0 : i32
    return %c0_i32, %c0_i32_0, %c0_i32_1 : i32, i32, i32
  }
  func.func @transform_2(%arg0: i32) -> (i32, i32) {
    %c0_i32 = arith.constant 0 : i32
    %c0_i32_0 = arith.constant 0 : i32
    %c0_i32_1 = arith.constant 0 : i32
    return %c0_i32, %c0_i32_0 : i32, i32
  }
  func.func @transform_3(%arg0: i32) -> (i32, i32) {
    %c0_i32 = arith.constant 0 : i32
    %c0_i32_0 = arith.constant 0 : i32
    %c0_i32_1 = arith.constant 0 : i32
    return %c0_i32, %c0_i32_0 : i32, i32
  }
  func.func @transform_4(%arg0: i32) -> (i32, i32) {
    %c0_i32 = arith.constant 0 : i32
    %c0_i32_0 = arith.constant 0 : i32
    %c0_i32_1 = arith.constant 0 : i32
    return %c0_i32, %c0_i32_0 : i32, i32
  }
  func.func @transform_5(%arg0: i32) -> (i32, i32) {
    %c0_i32 = arith.constant 0 : i32
    %c0_i32_0 = arith.constant 0 : i32
    %c0_i32_1 = arith.constant 0 : i32
    return %c0_i32, %c0_i32_0 : i32, i32
  }
  func.func @transform_6(%arg0: i32) -> (i32, i32, i32) {
    %c0_i32 = arith.constant 0 : i32
    %c0_i32_0 = arith.constant 0 : i32
    %c0_i32_1 = arith.constant 0 : i32
    return %arg0, %c0_i32, %c0_i32_0 : i32, i32, i32
  }
}

</mosaic_0001>

<llo_original>
// kernel: tpu_custom_call.1
$region0: #{tpu_custom_call.1}
  #allocation0 [shape = 'u32[]', space=smem, size = 0x4, offset = 0x4, fixed_abs, tag = 'smem constant byte address 0x4 - core index']
  #allocation1 [shape = 'u32[144,128]{1,0:T(1,128)}', space=vmem, size = 0x12000, scoped, tag = 'internal scratch']
  %s0 = inlined_call_operand.vmem [shape: f32[2,18,18,32], index: 0, kind: input, shape index: {}]
  %s1 = inlined_call_operand.vmem [shape: f32[9,32,32], index: 1, kind: input, shape index: {}]
  %s2 = inlined_call_operand.vmem [shape: f32[1,32], index: 2, kind: input, shape index: {}]
  %s3 = inlined_call_operand.vmem [shape: f32[16,32], index: 3, kind: input, shape index: {}]
  %s4 = inlined_call_operand.vmem [shape: f32[16,1], index: 4, kind: input, shape index: {}]
  %s5 = inlined_call_operand.vmem [shape: f32[16,256], index: 5, kind: input, shape index: {}]
  %s6 = inlined_call_operand.hbm [shape: f32[2,8,256], index: 6, kind: output, shape index: {}]
  %s7 = sld [smem:[#allocation0]]
  $region57: #{tpu_custom_call.1} parent=0
    _
  %s9 = ssub.s32 1, %s7
  %s10 = scalar_select 0, %s9, %s7
  $region1: #{tpu_custom_call.1} parent=0
    #allocation2 [shape = 'u8[16384]{0}', space=vmem, size = 0x4000, scoped, tag = 'output window, operand 0']
    #allocation3 [shape = 's32[2]{0}', space=sflag, size = 0x8, scoped, tag = 'scoped memory for tpu_custom_call.1']
    %11 = vsyncpa [#allocation3], 0
    %s12 = scalar_lea.sflag [#allocation3], 1
    %13 = vsyncpa %s12, 0
    loop: start=0, step=1, limit=4
    $region2: #{tpu_custom_call.1} parent=1 // loop_pre_header
      _
    $region3: #{tpu_custom_call.1} parent=1 // loop_header
      %s15 = sphi 0, %s19
      %p16 = scmp.ge.s32.totalorder %s15, 4
      %s25 = sphi 0, %s27
      %s28 = sphi 0, %s25
      %s29 = sphi 0, %s28
      %s45 = sphi 0, %s29
      %s49 = sphi 0, %s49
      %s51 = sphi 0, %s49
      %s52 = sphi 0, %s51
      %s66 = sphi 0, %s52
      %s70 = sphi 0, %s70
      %s72 = sphi 0, %s70
      %s73 = sphi 0, %s72
      %s87 = sphi 0, %s73
      %s91 = sphi 0, %s91
      %s93 = sphi 0, %s91
      %s94 = sphi 0, %s93
      %s108 = sphi 0, %s94
      %s112 = sphi 0, %s112
      %s114 = sphi 0, %s112
      %s115 = sphi 0, %s114
      %s129 = sphi 0, %s115
      %s133 = sphi 0, %s133
      %s135 = sphi 0, %s133
      %s136 = sphi 0, %s135
      %s150 = sphi 0, %s136
      %s156 = sphi 0, %s158
      %s159 = sphi 0, %s156
      %s160 = sphi 0, %s159
      %s176 = sphi 0, %s160
    $region4: #{tpu_custom_call.1} parent=1 // loop_header_branch
      %18 = sbr.rel (%p16) target = $region8
    $region5: #{tpu_custom_call.1} parent=1 // loop_body
      %s20 = ssub.s32 %s15, 1
      %s21 = ssub.s32 %s15, 2
      %s22 = sadd.s32 %s15, 1
      %s23 = ssub.s32 %s15, %s22
      %p24 = scmp.eq.s32.totalorder %s23, 0
      %s26 = sadd.s32 %s25, 1
      %s27 = scalar_select %p24, %s25, %s26
      %p30 = pneg %p24
      %p31 = scmp.eq.s32.totalorder %s15, 1
      %p32 = por %p30, %p31
      %p33 = scmp.ne.s32.totalorder %s25, %s28
      %p34 = scmp.eq.s32.totalorder %s15, 0
      %p35 = por %p33, %p34
      %p36 = scmp.ne.s32.totalorder %s25, %s28
      %p37 = scmp.eq.s32.totalorder %s20, 1
      %p38 = por %p36, %p37
      %p39 = scmp.ne.s32.totalorder %s28, %s29
      %p40 = scmp.eq.s32.totalorder %s20, 0
      %p41 = por %p39, %p40
      %p42 = scmp.ne.s32.totalorder %s28, %s29
      %p43 = scmp.eq.s32.totalorder %s21, 1
      %p44 = por %p42, %p43
      %p46 = scmp.ne.s32.totalorder %s29, %s45
      %p47 = scmp.eq.s32.totalorder %s21, 0
      %p48 = por %p46, %p47
      %s50 = sadd.s32 %s49, 1
      %p53 = scmp.eq.s32.totalorder %s15, 1
      %p54 = scmp.ne.s32.totalorder %s49, %s51
      %p55 = scmp.eq.s32.totalorder %s15, 0
      %p56 = por %p54, %p55
      %p57 = scmp.ne.s32.totalorder %s49, %s51
      %p58 = scmp.eq.s32.totalorder %s20, 1
      %p59 = por %p57, %p58
      %p60 = scmp.ne.s32.totalorder %s51, %s52
      %p61 = scmp.eq.s32.totalorder %s20, 0
      %p62 = por %p60, %p61
      %p63 = scmp.ne.s32.totalorder %s51, %s52
      %p64 = scmp.eq.s32.totalorder %s21, 1
      %p65 = por %p63, %p64
      %p67 = scmp.ne.s32.totalorder %s52, %s66
      %p68 = scmp.eq.s32.totalorder %s21, 0
      %p69 = por %p67, %p68
      %s71 = sadd.s32 %s70, 1
      %p74 = scmp.eq.s32.totalorder %s15, 1
      %p75 = scmp.ne.s32.totalorder %s70, %s72
      %p76 = scmp.eq.s32.totalorder %s15, 0
      %p77 = por %p75, %p76
      %p78 = scmp.ne.s32.totalorder %s70, %s72
      %p79 = scmp.eq.s32.totalorder %s20, 1
      %p80 = por %p78, %p79
      %p81 = scmp.ne.s32.totalorder %s72, %s73
      %p82 = scmp.eq.s32.totalorder %s20, 0
      %p83 = por %p81, %p82
      %p84 = scmp.ne.s32.totalorder %s72, %s73
      %p85 = scmp.eq.s32.totalorder %s21, 1
      %p86 = por %p84, %p85
      %p88 = scmp.ne.s32.totalorder %s73, %s87
      %p89 = scmp.eq.s32.totalorder %s21, 0
      %p90 = por %p88, %p89
      %s92 = sadd.s32 %s91, 1
      %p95 = scmp.eq.s32.totalorder %s15, 1
      %p96 = scmp.ne.s32.totalorder %s91, %s93
      %p97 = scmp.eq.s32.totalorder %s15, 0
      %p98 = por %p96, %p97
      %p99 = scmp.ne.s32.totalorder %s91, %s93
      %p100 = scmp.eq.s32.totalorder %s20, 1
      %p101 = por %p99, %p100
      %p102 = scmp.ne.s32.totalorder %s93, %s94
      %p103 = scmp.eq.s32.totalorder %s20, 0
      %p104 = por %p102, %p103
      %p105 = scmp.ne.s32.totalorder %s93, %s94
      %p106 = scmp.eq.s32.totalorder %s21, 1
      %p107 = por %p105, %p106
      %p109 = scmp.ne.s32.totalorder %s94, %s108
      %p110 = scmp.eq.s32.totalorder %s21, 0
      %p111 = por %p109, %p110
      %s113 = sadd.s32 %s112, 1
      %p116 = scmp.eq.s32.totalorder %s15, 1
      %p117 = scmp.ne.s32.totalorder %s112, %s114
      %p118 = scmp.eq.s32.totalorder %s15, 0
      %p119 = por %p117, %p118
      %p120 = scmp.ne.s32.totalorder %s112, %s114
      %p121 = scmp.eq.s32.totalorder %s20, 1
      %p122 = por %p120, %p121
      %p123 = scmp.ne.s32.totalorder %s114, %s115
      %p124 = scmp.eq.s32.totalorder %s20, 0
      %p125 = por %p123, %p124
      %p126 = scmp.ne.s32.totalorder %s114, %s115
      %p127 = scmp.eq.s32.totalorder %s21, 1
      %p128 = por %p126, %p127
      %p130 = scmp.ne.s32.totalorder %s115, %s129
      %p131 = scmp.eq.s32.totalorder %s21, 0
      %p132 = por %p130, %p131
      %s134 = sadd.s32 %s133, 1
      %p137 = scmp.eq.s32.totalorder %s15, 1
      %p138 = scmp.ne.s32.totalorder %s133, %s135
      %p139 = scmp.eq.s32.totalorder %s15, 0
      %p140 = por %p138, %p139
      %p141 = scmp.ne.s32.totalorder %s133, %s135
      %p142 = scmp.eq.s32.totalorder %s20, 1
      %p143 = por %p141, %p142
      %p144 = scmp.ne.s32.totalorder %s135, %s136
      %p145 = scmp.eq.s32.totalorder %s20, 0
      %p146 = por %p144, %p145
      %p147 = scmp.ne.s32.totalorder %s135, %s136
      %p148 = scmp.eq.s32.totalorder %s21, 1
      %p149 = por %p147, %p148
      %p151 = scmp.ne.s32.totalorder %s136, %s150
      %p152 = scmp.eq.s32.totalorder %s21, 0
      %p153 = por %p151, %p152
      %s154 = ssub.s32 %s15, %s22
      %p155 = scmp.eq.s32.totalorder %s154, 0
      %s157 = sadd.s32 %s156, 1
      %s158 = scalar_select %p155, %s156, %s157
      %p161 = pneg %p155
      %p162 = scmp.eq.s32.totalorder %s15, 1
      %p163 = por %p161, %p162
      %p164 = scmp.ne.s32.totalorder %s156, %s159
      %p165 = scmp.eq.s32.totalorder %s15, 0
      %p166 = por %p164, %p165
      %p167 = scmp.ne.s32.totalorder %s156, %s159
      %p168 = scmp.eq.s32.totalorder %s20, 1
      %p169 = por %p167, %p168
      %p170 = scmp.ne.s32.totalorder %s159, %s160
      %p171 = scmp.eq.s32.totalorder %s20, 0
      %p172 = por %p170, %p171
      %p173 = scmp.ne.s32.totalorder %s159, %s160
      %p174 = scmp.eq.s32.totalorder %s21, 1
      %p175 = por %p173, %p174
      %p177 = scmp.ne.s32.totalorder %s160, %s176
      %p178 = scmp.eq.s32.totalorder %s21, 0
      %p179 = por %p177, %p178
      %p180 = scmp.le.s32.totalorder 1, %s15
      %p181 = scmp.lt.s32.totalorder %s15, 3
      %p182 = pnand %p180, %p181
      %p183 = pneg %p182
      // Predicated region
      $region9: #{tpu_custom_call.1} parent=5 // pred_check
        _
      $region10: #{tpu_custom_call.1} parent=5 // pred_check_branch
        %185 = sbr.rel (%p182) target = $region12
      $region11: #{tpu_custom_call.1} parent=5 // pred_region
        %s186 = ssub.s32 %s15, 1
        // Predicated region
        $region13: #{tpu_custom_call.1} parent=11 // pred_check
          %p187 = pneg %p62
        $region14: #{tpu_custom_call.1} parent=11 // pred_check_branch
          %189 = sbr.rel (%p187) target = $region16
        $region15: #{tpu_custom_call.1} parent=11 // pred_region
          _
        $region16: #{tpu_custom_call.1} parent=11 // pred_fallthru
          _
        // Predicated region
        $region17: #{tpu_custom_call.1} parent=11 // pred_check
          %p190 = pneg %p83
        $region18: #{tpu_custom_call.1} parent=11 // pred_check_branch
          %192 = sbr.rel (%p190) target = $region20
        $region19: #{tpu_custom_call.1} parent=11 // pred_region
          _
        $region20: #{tpu_custom_call.1} parent=11 // pred_fallthru
          _
        // Predicated region
        $region21: #{tpu_custom_call.1} parent=11 // pred_check
          %p193 = pneg %p104
        $region22: #{tpu_custom_call.1} parent=11 // pred_check_branch
          %195 = sbr.rel (%p193) target = $region24
        $region23: #{tpu_custom_call.1} parent=11 // pred_region
          _
        $region24: #{tpu_custom_call.1} parent=11 // pred_fallthru
          _
        // Predicated region
        $region25: #{tpu_custom_call.1} parent=11 // pred_check
          %p196 = pneg %p125
        $region26: #{tpu_custom_call.1} parent=11 // pred_check_branch
          %198 = sbr.rel (%p196) target = $region28
        $region27: #{tpu_custom_call.1} parent=11 // pred_region
          _
        $region28: #{tpu_custom_call.1} parent=11 // pred_fallthru
          _
        // Predicated region
        $region29: #{tpu_custom_call.1} parent=11 // pred_check
          %p199 = pneg %p146
        $region30: #{tpu_custom_call.1} parent=11 // pred_check_branch
          %201 = sbr.rel (%p199) target = $region32
        $region31: #{tpu_custom_call.1} parent=11 // pred_region
          _
        $region32: #{tpu_custom_call.1} parent=11 // pred_fallthru
          _
      $region12: #{tpu_custom_call.1} parent=5 // pred_fallthru
        _
      %p202 = scmp.lt.s32.totalorder %s15, 2
      // Predicated region
      $region33: #{tpu_custom_call.1} parent=5 // pred_check
        %p203 = pneg %p202
      $region34: #{tpu_custom_call.1} parent=5 // pred_check_branch
        %205 = sbr.rel (%p203) target = $region36
      $region35: #{tpu_custom_call.1} parent=5 // pred_region
        // Predicated region
        $region37: #{tpu_custom_call.1} parent=35 // pred_check
          %p206 = pneg %p35
        $region38: #{tpu_custom_call.1} parent=35 // pred_check_branch
          %208 = sbr.rel (%p206) target = $region40
        $region39: #{tpu_custom_call.1} parent=35 // pred_region
          %p209 = scmp.lt.s32.totalorder %s15, 1
          %s210 = scalar_select %p209, %s15, 1
          %s211 = smul.addr %s210, 54
          %s212 = smul.addr %s211, 8
          %s213 = scalar_lea.vmem %s0, %s212
        $region40: #{tpu_custom_call.1} parent=35 // pred_fallthru
          _
      $region36: #{tpu_custom_call.1} parent=5 // pred_fallthru
        _
      %p214 = scmp.le.s32.totalorder 1, %s15
      %p215 = scmp.lt.s32.totalorder %s15, 3
      %p216 = pnand %p214, %p215
      %p217 = pneg %p216
      // Predicated region
      $region41: #{tpu_custom_call.1} parent=5 // pred_check
        _
      $region42: #{tpu_custom_call.1} parent=5 // pred_check_branch
        %219 = sbr.rel (%p216) target = $region44
      $region43: #{tpu_custom_call.1} parent=5 // pred_region
        %s220 = ssub.s32 %s15, 1
        %p221 = scmp.lt.s32.totalorder %s20, 1
        %s222 = scalar_select %p221, %s20, 1
        %s223 = smul.addr %s222, 54
        %s224 = smul.addr %s223, 8
        %s225 = scalar_lea.vmem %s0, %s224
        %p226 = pneg %p41
        %p227 = pneg %p38
        %p228 = pneg %p62
        %p229 = pneg %p59
        %p230 = pneg %p83
        %p231 = pneg %p80
        %p232 = pneg %p104
        %p233 = pneg %p101
        %p234 = pneg %p125
        %p235 = pneg %p122
        %p236 = pneg %p146
        %p237 = pneg %p143
        %p238 = pneg %p172
        %p239 = pneg %p169
        %s240 = sand.u32 %s159, 1
        %s241 = scalar_lea.sflag [#allocation3], %s240
        %s242 = sand.u32 %s159, 1
        %s243 = smul.addr %s242, 16
        %s244 = scalar_lea.vmem [#allocation2], %s243
        %p245 = scmp.lt.s32.totalorder %s20, 1
        %s246 = scalar_select %p245, %s20, 1
        %s247 = smul.addr %s246, 54
        %s248 = smul.addr %s247, 8
        %s249 = scalar_lea.vmem %s0, %s248
        %v250 = vld [vmem:[%s249] sm:$0xff]
        %v251 = vld [vmem:[%s249 + $0x8] sm:$0xff]
        %v252 = vld [vmem:[%s249 + $0x18] sm:$0xff]
        %v253 = vld [vmem:[%s249 + $0x20] sm:$0xff]
        %v254 = vld [vmem:[%s249 + $0x30] sm:$0xff]
        %v255 = vld [vmem:[%s249 + $0x38] sm:$0xff]
        %v256 = vld [vmem:[%s249 + $0x48] sm:$0xff]
        %v257 = vld [vmem:[%s249 + $0x50] sm:$0xff]
        %v258 = vld [vmem:[%s249 + $0x60] sm:$0xff]
        %v259 = vld [vmem:[%s249 + $0x68] sm:$0xff]
        %v260 = vld [vmem:[%s249 + $0x78] sm:$0xff]
        %v261 = vld [vmem:[%s249 + $0x80] sm:$0xff]
        %v262 = vld [vmem:[%s249 + $0x90] sm:$0xff]
        %v263 = vld [vmem:[%s249 + $0x98] sm:$0xff]
        %v264 = vld [vmem:[%s249 + $0xa8] sm:$0xff]
        %v265 = vld [vmem:[%s249 + $0xb0] sm:$0xff]
        %v266 = vld [vmem:[%s249 + $0xc0] sm:$0xff]
        %v267 = vld [vmem:[%s249 + $0xc8] sm:$0xff]
        %v268 = vld [vmem:[%s249 + $0xd8] sm:$0xff]
        %v269 = vld [vmem:[%s249 + $0xe0] sm:$0xff]
        %v270 = vld [vmem:[%s249 + $0xf0] sm:$0xff]
        %v271 = vld [vmem:[%s249 + $0xf8] sm:$0xff]
        %v272 = vld [vmem:[%s249 + $0x108] sm:$0xff]
        %v273 = vld [vmem:[%s249 + $0x110] sm:$0xff]
        %v274 = vld [vmem:[%s249 + $0x120] sm:$0xff]
        %v275 = vld [vmem:[%s249 + $0x128] sm:$0xff]
        %v276 = vld [vmem:[%s249 + $0x138] sm:$0xff]
        %v277 = vld [vmem:[%s249 + $0x140] sm:$0xff]
        %v278 = vld [vmem:[%s249 + $0x150] sm:$0xff]
        %v279 = vld [vmem:[%s249 + $0x158] sm:$0xff]
        %v280 = vld [vmem:[%s249 + $0x168] sm:$0xff]
        %v281 = vld [vmem:[%s249 + $0x170] sm:$0xff]
        %v282 = vld [vmem:[%s1] sm:$0xff]
        %v283 = vld [vmem:[%s1 + $0x8] sm:$0xff]
        %v284 = vld [vmem:[%s1 + $0x10] sm:$0xff]
        %v285 = vld [vmem:[%s1 + $0x18] sm:$0xff]
        %v286 = vld [vmem:[%s249 + $0x1] sm:$0xff]
        %v287 = vld [vmem:[%s249 + $0x9] sm:$0xff]
        %v288 = vld [vmem:[%s249 + $0x19] sm:$0xff]
        %v289 = vld [vmem:[%s249 + $0x21] sm:$0xff]
        %v290 = vld [vmem:[%s249 + $0x31] sm:$0xff]
        %v291 = vld [vmem:[%s249 + $0x39] sm:$0xff]
        %v292 = vld [vmem:[%s249 + $0x49] sm:$0xff]
        %v293 = vld [vmem:[%s249 + $0x51] sm:$0xff]
        %v294 = vld [vmem:[%s249 + $0x61] sm:$0xff]
        %v295 = vld [vmem:[%s249 + $0x69] sm:$0xff]
        %v296 = vld [vmem:[%s249 + $0x79] sm:$0xff]
        %v297 = vld [vmem:[%s249 + $0x81] sm:$0xff]
        %v298 = vld [vmem:[%s249 + $0x91] sm:$0xff]
        %v299 = vld [vmem:[%s249 + $0x99] sm:$0xff]
        %v300 = vld [vmem:[%s249 + $0xa9] sm:$0xff]
        %v301 = vld [vmem:[%s249 + $0xb1] sm:$0xff]
        %v302 = vld [vmem:[%s249 + $0xc1] sm:$0xff]
        %v303 = vld [vmem:[%s249 + $0xc9] sm:$0xff]
        %v304 = vld [vmem:[%s249 + $0xd9] sm:$0xff]
        %v305 = vld [vmem:[%s249 + $0xe1] sm:$0xff]
        %v306 = vld [vmem:[%s249 + $0xf1] sm:$0xff]
        %v307 = vld [vmem:[%s249 + $0xf9] sm:$0xff]
        %v308 = vld [vmem:[%s249 + $0x109] sm:$0xff]
        %v309 = vld [vmem:[%s249 + $0x111] sm:$0xff]
        %v310 = vld [vmem:[%s249 + $0x121] sm:$0xff]
        %v311 = vld [vmem:[%s249 + $0x129] sm:$0xff]
        %v312 = vld [vmem:[%s249 + $0x139] sm:$0xff]
        %v313 = vld [vmem:[%s249 + $0x141] sm:$0xff]
        %v314 = vld [vmem:[%s249 + $0x151] sm:$0xff]
        %v315 = vld [vmem:[%s249 + $0x159] sm:$0xff]
        %v316 = vld [vmem:[%s249 + $0x169] sm:$0xff]
        %v317 = vld [vmem:[%s249 + $0x171] sm:$0xff]
        %s318 = scalar_lea.vmem %s1, 32
        %v319 = vld [vmem:[%s318] sm:$0xff]
        %v320 = vld [vmem:[%s318 + $0x8] sm:$0xff]
        %v321 = vld [vmem:[%s318 + $0x10] sm:$0xff]
        %v322 = vld [vmem:[%s318 + $0x18] sm:$0xff]
        %vm323 = vcmask 261120
        %v325 = vsel %vm323, %v286, 0
        %v328 = vsel %vm323, %v287, 0
        %v331 = vsel %vm323, %v288, 0
        %v334 = vsel %vm323, %v289, 0
        %v337 = vsel %vm323, %v290, 0
        %v340 = vsel %vm323, %v291, 0
        %v343 = vsel %vm323, %v292, 0
        %v346 = vsel %vm323, %v293, 0
        %v349 = vsel %vm323, %v294, 0
        %v352 = vsel %vm323, %v295, 0
        %v355 = vsel %vm323, %v296, 0
        %v358 = vsel %vm323, %v297, 0
        %v361 = vsel %vm323, %v298, 0
        %v364 = vsel %vm323, %v299, 0
        %v367 = vsel %vm323, %v300, 0
        %v370 = vsel %vm323, %v301, 0
        %v373 = vsel %vm323, %v302, 0
        %v376 = vsel %vm323, %v303, 0
        %v379 = vsel %vm323, %v304, 0
        %v382 = vsel %vm323, %v305, 0
        %v385 = vsel %vm323, %v306, 0
        %v388 = vsel %vm323, %v307, 0
        %v391 = vsel %vm323, %v308, 0
        %v394 = vsel %vm323, %v309, 0
        %v397 = vsel %vm323, %v310, 0
        %v400 = vsel %vm323, %v311, 0
        %v403 = vsel %vm323, %v312, 0
        %v406 = vsel %vm323, %v313, 0
        %v409 = vsel %vm323, %v314, 0
        %v412 = vsel %vm323, %v315, 0
        %v415 = vsel %vm323, %v316, 0
        %v418 = vsel %vm323, %v317, 0
        %420 = vmatprep.subr.mxu0 0.0
        %421 = vmatpush1.msra.mxu0 %v319
        %422 = vmatprep.subr.mxu0 0.0
        %423 = vmatpush1.msra.mxu0 %v320
        %424 = vmatprep.subr.mxu0 0.0
        %425 = vmatpush1.msra.mxu0 %v321
        %426 = vmatprep.subr.mxu0 0.0
        %427 = vmatpush1.msra.mxu0 %v322
        %428 = vmatprep.subr.mxu0 0.0
        %429 = vmatpush1.msra.mxu0 0.0
        %430 = vmatprep.subr.mxu0 0.0
        %431 = vmatpush1.msra.mxu0 0.0
        %432 = vmatprep.subr.mxu0 0.0
        %433 = vmatpush1.msra.mxu0 0.0
        %434 = vmatprep.subr.mxu0 0.0
        %435 = vmatpush1.msra.mxu0 0.0
        %436 = vmatprep.subr.mxu0 0.0
        %437 = vmatpush1.msra.mxu0 0.0
        %438 = vmatprep.subr.mxu0 0.0
        %439 = vmatpush1.msra.mxu0 0.0
        %440 = vmatprep.subr.mxu0 0.0
        %441 = vmatpush1.msra.mxu0 0.0
        %442 = vmatprep.subr.mxu0 0.0
        %443 = vmatpush1.msra.mxu0 0.0
        %444 = vmatprep.subr.mxu0 0.0
        %445 = vmatpush1.msra.mxu0 0.0
        %446 = vmatprep.subr.mxu0 0.0
        %447 = vmatpush1.msra.mxu0 0.0
        %448 = vmatprep.subr.mxu0 0.0
        %449 = vmatpush1.msra.mxu0 0.0
        %450 = vmatprep.subr.mxu0 0.0
        %451 = vmatpush1.msra.mxu0 0.0
        %452 = vmatprep.subr.mxu0 0.0
        %453 = vmatpush1.msra.mxu0 0.0
        %454 = vmatprep.subr.mxu0 0.0
        %455 = vmatpush1.msra.mxu0 0.0
        %456 = vmatprep.subr.mxu0 0.0
        %457 = vmatpush1.msra.mxu0 0.0
        %458 = vmatprep.subr.mxu0 0.0
        %459 = vmatpush1.msra.mxu0 0.0
        %460 = vmatprep.subr.mxu0 0.0
        %461 = vmatpush1.msra.mxu0 0.0
        %462 = vmatprep.subr.mxu0 0.0
        %463 = vmatpush1.msra.mxu0 0.0
        %464 = vmatprep.subr.mxu0 0.0
        %465 = vmatpush1.msra.mxu0 0.0
        %466 = vmatprep.subr.mxu0 0.0
        %467 = vmatpush1.msra.mxu0 0.0
        %468 = vmatprep.subr.mxu0 0.0
        %469 = vmatpush1.msra.mxu0 0.0
        %470 = vmatprep.subr.mxu0 0.0
        %471 = vmatpush1.msra.mxu0 0.0
        %472 = vmatprep.subr.mxu0 0.0
        %473 = vmatpush1.msra.mxu0 0.0
        %474 = vmatprep.subr.mxu0 0.0
        %475 = vmatpush1.msra.mxu0 0.0
        %476 = vmatprep.subr.mxu0 0.0
        %477 = vmatpush1.msra.mxu0 0.0
        %478 = vmatprep.subr.mxu0 0.0
        %479 = vmatpush1.msra.mxu0 0.0
        %480 = vmatprep.subr.mxu0 0.0
        %481 = vmatpush1.msra.mxu0 0.0
        %482 = vmatprep.subr.mxu0 0.0
        %483 = vmatpush1.msra.mxu0 0.0
        %484 = vmatprep.mubr.f32.mxu0 0.0
        %485 = vmatmul.mubr.f32.gmra.mrb[0].mxu0 %v325
        %v486 = vpop.f32.mrb[0].mxu0
        %v487 = vadd.f32 0.0, %v486
        %v488 = vpop.f32.mrb[0].mxu0
        %489 = vmatprep.mubr.f32.mxu0 0.0
        %490 = vmatmul.mubr.f32.gmra.mrb[0].mxu0 %v328
        %v491 = vpop.f32.mrb[0].mxu0
        %v492 = vadd.f32 0.0, %v491
        %v493 = vpop.f32.mrb[0].mxu0
        %494 = vmatprep.mubr.f32.mxu0 0.0
        %495 = vmatmul.mubr.f32.gmra.mrb[0].mxu0 %v331
        %v496 = vpop.f32.mrb[0].mxu0
        %v497 = vadd.f32 0.0, %v496
        %v498 = vpop.f32.mrb[0].mxu0
        %499 = vmatprep.mubr.f32.mxu0 0.0
        %500 = vmatmul.mubr.f32.gmra.mrb[0].mxu0 %v334
        %v501 = vpop.f32.mrb[0].mxu0
        %v502 = vadd.f32 0.0, %v501
        %v503 = vpop.f32.mrb[0].mxu0
        %504 = vmatprep.mubr.f32.mxu0 0.0
        %505 = vmatmul.mubr.f32.gmra.mrb[0].mxu0 %v337
        %v506 = vpop.f32.mrb[0].mxu0
        %v507 = vadd.f32 0.0, %v506
        %v508 = vpop.f32.mrb[0].mxu0
        %509 = vmatprep.mubr.f32.mxu0 0.0
        %510 = vmatmul.mubr.f32.gmra.mrb[0].mxu0 %v340
        %v511 = vpop.f32.mrb[0].mxu0
        %v512 = vadd.f32 0.0, %v511
        %v513 = vpop.f32.mrb[0].mxu0
        %514 = vmatprep.mubr.f32.mxu0 0.0
        %515 = vmatmul.mubr.f32.gmra.mrb[0].mxu0 %v343
        %v516 = vpop.f32.mrb[0].mxu0
        %v517 = vadd.f32 0.0, %v516
        %v518 = vpop.f32.mrb[0].mxu0
        %519 = vmatprep.mubr.f32.mxu0 0.0
        %520 = vmatmul.mubr.f32.gmra.mrb[0].mxu0 %v346
        %v521 = vpop.f32.mrb[0].mxu0
        %v522 = vadd.f32 0.0, %v521
        %v523 = vpop.f32.mrb[0].mxu0
        %524 = vmatprep.mubr.f32.mxu0 0.0
        %525 = vmatmul.mubr.f32.gmra.mrb[0].mxu0 %v349
        %v526 = vpop.f32.mrb[0].mxu0
        %v527 = vadd.f32 0.0, %v526
        %v528 = vpop.f32.mrb[0].mxu0
        %529 = vmatprep.mubr.f32.mxu0 0.0
        %530 = vmatmul.mubr.f32.gmra.mrb[0].mxu0 %v352
        %v531 = vpop.f32.mrb[0].mxu0
        %v532 = vadd.f32 0.0, %v531
        %v533 = vpop.f32.mrb[0].mxu0
        %534 = vmatprep.mubr.f32.mxu0 0.0
        %535 = vmatmul.mubr.f32.gmra.mrb[0].mxu0 %v355
        %v536 = vpop.f32.mrb[0].mxu0
        %v537 = vadd.f32 0.0, %v536
        %v538 = vpop.f32.mrb[0].mxu0
        %539 = vmatprep.mubr.f32.mxu0 0.0
        %540 = vmatmul.mubr.f32.gmra.mrb[0].mxu0 %v358
        %v541 = vpop.f32.mrb[0].mxu0
        %v542 = vadd.f32 0.0, %v541
        %v543 = vpop.f32.mrb[0].mxu0
        %544 = vmatprep.mubr.f32.mxu0 0.0
        %545 = vmatmul.mubr.f32.gmra.mrb[0].mxu0 %v361
        %v546 = vpop.f32.mrb[0].mxu0
        %v547 = vadd.f32 0.0, %v546
        %v548 = vpop.f32.mrb[0].mxu0
        %549 = vmatprep.mubr.f32.mxu0 0.0
        %550 = vmatmul.mubr.f32.gmra.mrb[0].mxu0 %v364
        %v551 = vpop.f32.mrb[0].mxu0
        %v552 = vadd.f32 0.0, %v551
        %v553 = vpop.f32.mrb[0].mxu0
        %554 = vmatprep.mubr.f32.mxu0 0.0
        %555 = vmatmul.mubr.f32.gmra.mrb[0].mxu0 %v367
        %v556 = vpop.f32.mrb[0].mxu0
        %v557 = vadd.f32 0.0, %v556
        %v558 = vpop.f32.mrb[0].mxu0
        %559 = vmatprep.mubr.f32.mxu0 0.0
        %560 = vmatmul.mubr.f32.gmra.mrb[0].mxu0 %v370
        %v561 = vpop.f32.mrb[0].mxu0
        %v562 = vadd.f32 0.0, %v561
        %v563 = vpop.f32.mrb[0].mxu0
        %564 = vmatprep.mubr.f32.mxu0 0.0
        %565 = vmatmul.mubr.f32.gmra.mrb[0].mxu0 %v373
        %v566 = vpop.f32.mrb[0].mxu0
        %v567 = vadd.f32 0.0, %v566
        %v568 = vpop.f32.mrb[0].mxu0
        %569 = vmatprep.mubr.f32.mxu0 0.0
        %570 = vmatmul.mubr.f32.gmra.mrb[0].mxu0 %v376
        %v571 = vpop.f32.mrb[0].mxu0
        %v572 = vadd.f32 0.0, %v571
        %v573 = vpop.f32.mrb[0].mxu0
        %574 = vmatprep.mubr.f32.mxu0 0.0
        %575 = vmatmul.mubr.f32.gmra.mrb[0].mxu0 %v379
        %v576 = vpop.f32.mrb[0].mxu0
        %v577 = vadd.f32 0.0, %v576
        %v578 = vpop.f32.mrb[0].mxu0
        %579 = vmatprep.mubr.f32.mxu0 0.0
        %580 = vmatmul.mubr.f32.gmra.mrb[0].mxu0 %v382
        %v581 = vpop.f32.mrb[0].mxu0
        %v582 = vadd.f32 0.0, %v581
        %v583 = vpop.f32.mrb[0].mxu0
        %584 = vmatprep.mubr.f32.mxu0 0.0
        %585 = vmatmul.mubr.f32.gmra.mrb[0].mxu0 %v385
        %v586 = vpop.f32.mrb[0].mxu0
        %v587 = vadd.f32 0.0, %v586
        %v588 = vpop.f32.mrb[0].mxu0
        %589 = vmatprep.mubr.f32.mxu0 0.0
        %590 = vmatmul.mubr.f32.gmra.mrb[0].mxu0 %v388
        %v591 = vpop.f32.mrb[0].mxu0
        %v592 = vadd.f32 0.0, %v591
        %v593 = vpop.f32.mrb[0].mxu0
        %594 = vmatprep.mubr.f32.mxu0 0.0
        %595 = vmatmul.mubr.f32.gmra.mrb[0].mxu0 %v391
        %v596 = vpop.f32.mrb[0].mxu0
        %v597 = vadd.f32 0.0, %v596
        %v598 = vpop.f32.mrb[0].mxu0
        %599 = vmatprep.mubr.f32.mxu0 0.0
        %600 = vmatmul.mubr.f32.gmra.mrb[0].mxu0 %v394
        %v601 = vpop.f32.mrb[0].mxu0
        %v602 = vadd.f32 0.0, %v601
        %v603 = vpop.f32.mrb[0].mxu0
        %604 = vmatprep.mubr.f32.mxu0 0.0
        %605 = vmatmul.mubr.f32.gmra.mrb[0].mxu0 %v397
        %v606 = vpop.f32.mrb[0].mxu0
        %v607 = vadd.f32 0.0, %v606
        %v608 = vpop.f32.mrb[0].mxu0
        %609 = vmatprep.mubr.f32.mxu0 0.0
        %610 = vmatmul.mubr.f32.gmra.mrb[0].mxu0 %v400
        %v611 = vpop.f32.mrb[0].mxu0
        %v612 = vadd.f32 0.0, %v611
        %v613 = vpop.f32.mrb[0].mxu0
        %614 = vmatprep.mubr.f32.mxu0 0.0
        %615 = vmatmul.mubr.f32.gmra.mrb[0].mxu0 %v403
        %v616 = vpop.f32.mrb[0].mxu0
        %v617 = vadd.f32 0.0, %v616
        %v618 = vpop.f32.mrb[0].mxu0
        %619 = vmatprep.mubr.f32.mxu0 0.0
        %620 = vmatmul.mubr.f32.gmra.mrb[0].mxu0 %v406
        %v621 = vpop.f32.mrb[0].mxu0
        %v622 = vadd.f32 0.0, %v621
        %v623 = vpop.f32.mrb[0].mxu0
        %624 = vmatprep.mubr.f32.mxu0 0.0
        %625 = vmatmul.mubr.f32.gmra.mrb[0].mxu0 %v409
        %v626 = vpop.f32.mrb[0].mxu0
        %v627 = vadd.f32 0.0, %v626
        %v628 = vpop.f32.mrb[0].mxu0
        %629 = vmatprep.mubr.f32.mxu0 0.0
        %630 = vmatmul.mubr.f32.gmra.mrb[0].mxu0 %v412
        %v631 = vpop.f32.mrb[0].mxu0
        %v632 = vadd.f32 0.0, %v631
        %v633 = vpop.f32.mrb[0].mxu0
        %634 = vmatprep.mubr.f32.mxu0 0.0
        %635 = vmatmul.mubr.f32.gmra.mrb[0].mxu0 %v415
        %v636 = vpop.f32.mrb[0].mxu0
        %v637 = vadd.f32 0.0, %v636
        %v638 = vpop.f32.mrb[0].mxu0
        %639 = vmatprep.mubr.f32.mxu0 0.0
        %640 = vmatmul.mubr.f32.gmra.mrb[0].mxu0 %v418
        %v641 = vpop.f32.mrb[0].mxu0
        %v642 = vadd.f32 0.0, %v641
        %v643 = vpop.f32.mrb[0].mxu0
        %644 = vdwg.mxu0
        %v646 = vsel %vm323, %v250, 0
        %v649 = vsel %vm323, %v251, 0
        %v652 = vsel %vm323, %v252, 0
        %v655 = vsel %vm323, %v253, 0
        %v658 = vsel %vm323, %v254, 0
        %v661 = vsel %vm323, %v255, 0
        %v664 = vsel %vm323, %v256, 0
        %v667 = vsel %vm323, %v257, 0
        %v670 = vsel %vm323, %v258, 0
        %v673 = vsel %vm323, %v259, 0
        %v676 = vsel %vm323, %v260, 0
        %v679 = vsel %vm323, %v261, 0
        %v682 = vsel %vm323, %v262, 0
        %v685 = vsel %vm323, %v263, 0
        %v688 = vsel %vm323, %v264, 0
        %v691 = vsel %vm323, %v265, 0
        %v694 = vsel %vm323, %v266, 0
        %v697 = vsel %vm323, %v267, 0
        %v700 = vsel %vm323, %v268, 0
        %v703 = vsel %vm323, %v269, 0
        %v706 = vsel %vm323, %v270, 0
        %v709 = vsel %vm323, %v271, 0
        %v712 = vsel %vm323, %v272, 0
        %v715 = vsel %vm323, %v273, 0
        %v718 = vsel %vm323, %v274, 0
        %v721 = vsel %vm323, %v275, 0
        %v724 = vsel %vm323, %v276, 0
        %v727 = vsel %vm323, %v277, 0
        %v730 = vsel %vm323, %v278, 0
        %v733 = vsel %vm323, %v279, 0
        %v736 = vsel %vm323, %v280, 0
        %v739 = vsel %vm323, %v281, 0
        %741 = vmatprep.subr.mxu0 0.0
        %742 = vmatpush1.msra.mxu0 %v282
        %743 = vmatprep.subr.mxu0 0.0
        %744 = vmatpush1.msra.mxu0 %v283
        %745 = vmatprep.subr.mxu0 0.0
        %746 = vmatpush1.msra.mxu0 %v284
        %747 = vmatprep.subr.mxu0 0.0
        %748 = vmatpush1.msra.mxu0 %v285
        %749 = vmatprep.subr.mxu0 0.0
        %750 = vmatpush1.msra.mxu0 0.0
        %751 = vmatprep.subr.mxu0 0.0
        %752 = vmatpush1.msra.mxu0 0.0
        %753 = vmatprep.subr.mxu0 0.0
        %754 = vmatpush1.msra.mxu0 0.0
        %755 = vmatprep.subr.mxu0 0.0
        %756 = vmatpush1.msra.mxu0 0.0
        %757 = vmatprep.subr.mxu0 0.0
        %758 = vmatpush1.msra.mxu0 0.0
        %759 = vmatprep.subr.mxu0 0.0
        %760 = vmatpush1.msra.mxu0 0.0
        %761 = vmatprep.subr.mxu0 0.0
        %762 = vmatpush1.msra.mxu0 0.0
        %763 = vmatprep.subr.mxu0 0.0
        %764 = vmatpush1.msra.mxu0 0.0
        %765 = vmatprep.subr.mxu0 0.0
        %766 = vmatpush1.msra.mxu0 0.0
        %767 = vmatprep.subr.mxu0 0.0
        %768 = vmatpush1.msra.mxu0 0.0
        %769 = vmatprep.subr.mxu0 0.0
        %770 = vmatpush1.msra.mxu0 0.0
        %771 = vmatprep.subr.mxu0 0.0
        %772 = vmatpush1.msra.mxu0 0.0
        %773 = vmatprep.subr.mxu0 0.0
        %774 = vmatpush1.msra.mxu0 0.0
        %775 = vmatprep.subr.mxu0 0.0
        %776 = vmatpush1.msra.mxu0 0.0
        %777 = vmatprep.subr.mxu0 0.0
        %778 = vmatpush1.msra.mxu0 0.0
        %779 = vmatprep.subr.mxu0 0.0
        %780 = vmatpush1.msra.mxu0 0.0
        %781 = vmatprep.subr.mxu0 0.0
        %782 = vmatpush1.msra.mxu0 0.0
        %783 = vmatprep.subr.mxu0 0.0
        %784 = vmatpush1.msra.mxu0 0.0
        %785 = vmatprep.subr.mxu0 0.0
        %786 = vmatpush1.msra.mxu0 0.0
        %787 = vmatprep.subr.mxu0 0.0
        %788 = vmatpush1.msra.mxu0 0.0
        %789 = vmatprep.subr.mxu0 0.0
        %790 = vmatpush1.msra.mxu0 0.0
        %791 = vmatprep.subr.mxu0 0.0
        %792 = vmatpush1.msra.mxu0 0.0
        %793 = vmatprep.subr.mxu0 0.0
        %794 = vmatpush1.msra.mxu0 0.0
        %795 = vmatprep.subr.mxu0 0.0
        %796 = vmatpush1.msra.mxu0 0.0
        %797 = vmatprep.subr.mxu0 0.0
        %798 = vmatpush1.msra.mxu0 0.0
        %799 = vmatprep.subr.mxu0 0.0
        %800 = vmatpush1.msra.mxu0 0.0
        %801 = vmatprep.subr.mxu0 0.0
        %802 = vmatpush1.msra.mxu0 0.0
        %803 = vmatprep.subr.mxu0 0.0
        %804 = vmatpush1.msra.mxu0 0.0
        %805 = vmatprep.mubr.f32.mxu0 0.0
        %806 = vmatmul.mubr.f32.gmra.mrb[0].mxu0 %v646
        %v807 = vpop.f32.mrb[0].mxu0
        %v808 = vadd.f32 %v487, %v807
        %v809 = vpop.f32.mrb[0].mxu0
        %810 = vmatprep.mubr.f32.mxu0 0.0
        %811 = vmatmul.mubr.f32.gmra.mrb[0].mxu0 %v649
        %v812 = vpop.f32.mrb[0].mxu0
        %v813 = vadd.f32 %v492, %v812
        %v814 = vpop.f32.mrb[0].mxu0
        %815 = vmatprep.mubr.f32.mxu0 0.0
        %816 = vmatmul.mubr.f32.gmra.mrb[0].mxu0 %v652
        %v817 = vpop.f32.mrb[0].mxu0
        %v818 = vadd.f32 %v497, %v817
        %v819 = vpop.f32.mrb[0].mxu0
        %820 = vmatprep.mubr.f32.mxu0 0.0
        %821 = vmatmul.mubr.f32.gmra.mrb[0].mxu0 %v655
        %v822 = vpop.f32.mrb[0].mxu0
        %v823 = vadd.f32 %v502, %v822
        %v824 = vpop.f32.mrb[0].mxu0
        %825 = vmatprep.mubr.f32.mxu0 0.0
        %826 = vmatmul.mubr.f32.gmra.mrb[0].mxu0 %v658
        %v827 = vpop.f32.mrb[0].mxu0
        %v828 = vadd.f32 %v507, %v827
        %v829 = vpop.f32.mrb[0].mxu0
        %830 = vmatprep.mubr.f32.mxu0 0.0
        %831 = vmatmul.mubr.f32.gmra.mrb[0].mxu0 %v661
        %v832 = vpop.f32.mrb[0].mxu0
        %v833 = vadd.f32 %v512, %v832
        %v834 = vpop.f32.mrb[0].mxu0
        %835 = vmatprep.mubr.f32.mxu0 0.0
        %836 = vmatmul.mubr.f32.gmra.mrb[0].mxu0 %v664
        %v837 = vpop.f32.mrb[0].mxu0
        %v838 = vadd.f32 %v517, %v837
        %v839 = vpop.f32.mrb[0].mxu0
        %840 = vmatprep.mubr.f32.mxu0 0.0
        %841 = vmatmul.mubr.f32.gmra.mrb[0].mxu0 %v667
        %v842 = vpop.f32.mrb[0].mxu0
        %v843 = vadd.f32 %v522, %v842
        %v844 = vpop.f32.mrb[0].mxu0
        %845 = vmatprep.mubr.f32.mxu0 0.0
        %846 = vmatmul.mubr.f32.gmra.mrb[0].mxu0 %v670
        %v847 = vpop.f32.mrb[0].mxu0
        %v848 = vadd.f32 %v527, %v847
        %v849 = vpop.f32.mrb[0].mxu0
        %850 = vmatprep.mubr.f32.mxu0 0.0
        %851 = vmatmul.mubr.f32.gmra.mrb[0].mxu0 %v673
        %v852 = vpop.f32.mrb[0].mxu0
        %v853 = vadd.f32 %v532, %v852
        %v854 = vpop.f32.mrb[0].mxu0
        %855 = vmatprep.mubr.f32.mxu0 0.0
        %856 = vmatmul.mubr.f32.gmra.mrb[0].mxu0 %v676
        %v857 = vpop.f32.mrb[0].mxu0
        %v858 = vadd.f32 %v537, %v857
        %v859 = vpop.f32.mrb[0].mxu0
        %860 = vmatprep.mubr.f32.mxu0 0.0
        %861 = vmatmul.mubr.f32.gmra.mrb[0].mxu0 %v679
        %v862 = vpop.f32.mrb[0].mxu0
        %v863 = vadd.f32 %v542, %v862
        %v864 = vpop.f32.mrb[0].mxu0
        %865 = vmatprep.mubr.f32.mxu0 0.0
        %866 = vmatmul.mubr.f32.gmra.mrb[0].mxu0 %v682
        %v867 = vpop.f32.mrb[0].mxu0
        %v868 = vadd.f32 %v547, %v867
        %v869 = vpop.f32.mrb[0].mxu0
        %870 = vmatprep.mubr.f32.mxu0 0.0
        %871 = vmatmul.mubr.f32.gmra.mrb[0].mxu0 %v685
        %v872 = vpop.f32.mrb[0].mxu0
        %v873 = vadd.f32 %v552, %v872
        %v874 = vpop.f32.mrb[0].mxu0
        %875 = vmatprep.mubr.f32.mxu0 0.0
        %876 = vmatmul.mubr.f32.gmra.mrb[0].mxu0 %v688
        %v877 = vpop.f32.mrb[0].mxu0
        %v878 = vadd.f32 %v557, %v877
        %v879 = vpop.f32.mrb[0].mxu0
        %880 = vmatprep.mubr.f32.mxu0 0.0
        %881 = vmatmul.mubr.f32.gmra.mrb[0].mxu0 %v691
        %v882 = vpop.f32.mrb[0].mxu0
        %v883 = vadd.f32 %v562, %v882
        %v884 = vpop.f32.mrb[0].mxu0
        %885 = vmatprep.mubr.f32.mxu0 0.0
        %886 = vmatmul.mubr.f32.gmra.mrb[0].mxu0 %v694
        %v887 = vpop.f32.mrb[0].mxu0
        %v888 = vadd.f32 %v567, %v887
        %v889 = vpop.f32.mrb[0].mxu0
        %890 = vmatprep.mubr.f32.mxu0 0.0
        %891 = vmatmul.mubr.f32.gmra.mrb[0].mxu0 %v697
        %v892 = vpop.f32.mrb[0].mxu0
        %v893 = vadd.f32 %v572, %v892
        %v894 = vpop.f32.mrb[0].mxu0
        %895 = vmatprep.mubr.f32.mxu0 0.0
        %896 = vmatmul.mubr.f32.gmra.mrb[0].mxu0 %v700
        %v897 = vpop.f32.mrb[0].mxu0
        %v898 = vadd.f32 %v577, %v897
        %v899 = vpop.f32.mrb[0].mxu0
        %900 = vmatprep.mubr.f32.mxu0 0.0
        %901 = vmatmul.mubr.f32.gmra.mrb[0].mxu0 %v703
        %v902 = vpop.f32.mrb[0].mxu0
        %v903 = vadd.f32 %v582, %v902
        %v904 = vpop.f32.mrb[0].mxu0
        %905 = vmatprep.mubr.f32.mxu0 0.0
        %906 = vmatmul.mubr.f32.gmra.mrb[0].mxu0 %v706
        %v907 = vpop.f32.mrb[0].mxu0
        %v908 = vadd.f32 %v587, %v907
        %v909 = vpop.f32.mrb[0].mxu0
        %910 = vmatprep.mubr.f32.mxu0 0.0
        %911 = vmatmul.mubr.f32.gmra.mrb[0].mxu0 %v709
        %v912 = vpop.f32.mrb[0].mxu0
        %v913 = vadd.f32 %v592, %v912
        %v914 = vpop.f32.mrb[0].mxu0
        %915 = vmatprep.mubr.f32.mxu0 0.0
        %916 = vmatmul.mubr.f32.gmra.mrb[0].mxu0 %v712
        %v917 = vpop.f32.mrb[0].mxu0
        %v918 = vadd.f32 %v597, %v917
        %v919 = vpop.f32.mrb[0].mxu0
        %920 = vmatprep.mubr.f32.mxu0 0.0
        %921 = vmatmul.mubr.f32.gmra.mrb[0].mxu0 %v715
        %v922 = vpop.f32.mrb[0].mxu0
        %v923 = vadd.f32 %v602, %v922
        %v924 = vpop.f32.mrb[0].mxu0
        %925 = vmatprep.mubr.f32.mxu0 0.0
        %926 = vmatmul.mubr.f32.gmra.mrb[0].mxu0 %v718
        %v927 = vpop.f32.mrb[0].mxu0
        %v928 = vadd.f32 %v607, %v927
        %v929 = vpop.f32.mrb[0].mxu0
        %930 = vmatprep.mubr.f32.mxu0 0.0
        %931 = vmatmul.mubr.f32.gmra.mrb[0].mxu0 %v721
        %v932 = vpop.f32.mrb[0].mxu0
        %v933 = vadd.f32 %v612, %v932
        %v934 = vpop.f32.mrb[0].mxu0
        %935 = vmatprep.mubr.f32.mxu0 0.0
        %936 = vmatmul.mubr.f32.gmra.mrb[0].mxu0 %v724
        %v937 = vpop.f32.mrb[0].mxu0
        %v938 = vadd.f32 %v617, %v937
        %v939 = vpop.f32.mrb[0].mxu0
        %940 = vmatprep.mubr.f32.mxu0 0.0
        %941 = vmatmul.mubr.f32.gmra.mrb[0].mxu0 %v727
        %v942 = vpop.f32.mrb[0].mxu0
        %v943 = vadd.f32 %v622, %v942
        %v944 = vpop.f32.mrb[0].mxu0
        %945 = vmatprep.mubr.f32.mxu0 0.0
        %946 = vmatmul.mubr.f32.gmra.mrb[0].mxu0 %v730
        %v947 = vpop.f32.mrb[0].mxu0
        %v948 = vadd.f32 %v627, %v947
        %v949 = vpop.f32.mrb[0].mxu0
        %950 = vmatprep.mubr.f32.mxu0 0.0
        %951 = vmatmul.mubr.f32.gmra.mrb[0].mxu0 %v733
        %v952 = vpop.f32.mrb[0].mxu0
        %v953 = vadd.f32 %v632, %v952
        %v954 = vpop.f32.mrb[0].mxu0
        %955 = vmatprep.mubr.f32.mxu0 0.0
        %956 = vmatmul.mubr.f32.gmra.mrb[0].mxu0 %v736
        %v957 = vpop.f32.mrb[0].mxu0
        %v958 = vadd.f32 %v637, %v957
        %v959 = vpop.f32.mrb[0].mxu0
        %960 = vmatprep.mubr.f32.mxu0 0.0
        %961 = vmatmul.mubr.f32.gmra.mrb[0].mxu0 %v739
        %v962 = vpop.f32.mrb[0].mxu0
        %v963 = vadd.f32 %v642, %v962
        %v964 = vpop.f32.mrb[0].mxu0
        %965 = vdwg.mxu0
        %v966 = vld [vmem:[%s249 + $0x2] sm:$0xff]
        %v967 = vld [vmem:[%s249 + $0xa] sm:$0xff]
        %v968 = vld [vmem:[%s249 + $0x1a] sm:$0xff]
        %v969 = vld [vmem:[%s249 + $0x22] sm:$0xff]
        %v970 = vld [vmem:[%s249 + $0x32] sm:$0xff]
        %v971 = vld [vmem:[%s249 + $0x3a] sm:$0xff]
        %v972 = vld [vmem:[%s249 + $0x4a] sm:$0xff]
        %v973 = vld [vmem:[%s249 + $0x52] sm:$0xff]
        %v974 = vld [vmem:[%s249 + $0x62] sm:$0xff]
        %v975 = vld [vmem:[%s249 + $0x6a] sm:$0xff]
        %v976 = vld [vmem:[%s249 + $0x7a] sm:$0xff]
        %v977 = vld [vmem:[%s249 + $0x82] sm:$0xff]
        %v978 = vld [vmem:[%s249 + $0x92] sm:$0xff]
        %v979 = vld [vmem:[%s249 + $0x9a] sm:$0xff]
        %v980 = vld [vmem:[%s249 + $0xaa] sm:$0xff]
        %v981 = vld [vmem:[%s249 + $0xb2] sm:$0xff]
        %v982 = vld [vmem:[%s249 + $0xc2] sm:$0xff]
        %v983 = vld [vmem:[%s249 + $0xca] sm:$0xff]
        %v984 = vld [vmem:[%s249 + $0xda] sm:$0xff]
        %v985 = vld [vmem:[%s249 + $0xe2] sm:$0xff]
        %v986 = vld [vmem:[%s249 + $0xf2] sm:$0xff]
        %v987 = vld [vmem:[%s249 + $0xfa] sm:$0xff]
        %v988 = vld [vmem:[%s249 + $0x10a] sm:$0xff]
        %v989 = vld [vmem:[%s249 + $0x112] sm:$0xff]
        %v990 = vld [vmem:[%s249 + $0x122] sm:$0xff]
        %v991 = vld [vmem:[%s249 + $0x12a] sm:$0xff]
        %v992 = vld [vmem:[%s249 + $0x13a] sm:$0xff]
        %v993 = vld [vmem:[%s249 + $0x142] sm:$0xff]
        %v994 = vld [vmem:[%s249 + $0x152] sm:$0xff]
        %v995 = vld [vmem:[%s249 + $0x15a] sm:$0xff]
        %v996 = vld [vmem:[%s249 + $0x16a] sm:$0xff]
        %v997 = vld [vmem:[%s249 + $0x172] sm:$0xff]
        %s998 = scalar_lea.vmem %s1, 64
        %v999 = vld [vmem:[%s998] sm:$0xff]
        %v1000 = vld [vmem:[%s998 + $0x8] sm:$0xff]
        %v1001 = vld [vmem:[%s998 + $0x10] sm:$0xff]
        %v1002 = vld [vmem:[%s998 + $0x18] sm:$0xff]
        %v1004 = vsel %vm323, %v966, 0
        %v1007 = vsel %vm323, %v967, 0
        %v1010 = vsel %vm323, %v968, 0
        %v1013 = vsel %vm323, %v969, 0
        %v1016 = vsel %vm323, %v970, 0
        %v1019 = vsel %vm323, %v971, 0
        %v1022 = vsel %vm323, %v972, 0
        %v1025 = vsel %vm323, %v973, 0
        %v1028 = vsel %vm323, %v974, 0
        %v1031 = vsel %vm323, %v975, 0
        %v1034 = vsel %vm323, %v976, 0
        %v1037 = vsel %vm323, %v977, 0
        %v1040 = vsel %vm323, %v978, 0
        %v1043 = vsel %vm323, %v979, 0
        %v1046 = vsel %vm323, %v980, 0
        %v1049 = vsel %vm323, %v981, 0
        %v1052 = vsel %vm323, %v982, 0
        %v1055 = vsel %vm323, %v983, 0
        %v1058 = vsel %vm323, %v984, 0
        %v1061 = vsel %vm323, %v985, 0
        %v1064 = vsel %vm323, %v986, 0
        %v1067 = vsel %vm323, %v987, 0
        %v1070 = vsel %vm323, %v988, 0
        %v1073 = vsel %vm323, %v989, 0
        %v1076 = vsel %vm323, %v990, 0
        %v1079 = vsel %vm323, %v991, 0
        %v1082 = vsel %vm323, %v992, 0
        %v1085 = vsel %vm323, %v993, 0
        %v1088 = vsel %vm323, %v994, 0
        %v1091 = vsel %vm323, %v995, 0
        %v1094 = vsel %vm323, %v996, 0
        %v1097 = vsel %vm323, %v997, 0
        %1099 = vmatprep.subr.mxu0 0.0
        %1100 = vmatpush1.msra.mxu0 %v999
        %1101 = vmatprep.subr.mxu0 0.0
        %1102 = vmatpush1.msra.mxu0 %v1000
        %1103 = vmatprep.subr.mxu0 0.0
        %1104 = vmatpush1.msra.mxu0 %v1001
        %1105 = vmatprep.subr.mxu0 0.0
        %1106 = vmatpush1.msra.mxu0 %v1002
        %1107 = vmatprep.subr.mxu0 0.0
        %1108 = vmatpush1.msra.mxu0 0.0
        %1109 = vmatprep.subr.mxu0 0.0
        %1110 = vmatpush1.msra.mxu0 0.0
        %1111 = vmatprep.subr.mxu0 0.0
        %1112 = vmatpush1.msra.mxu0 0.0
        %1113 = vmatprep.subr.mxu0 0.0
        %1114 = vmatpush1.msra.mxu0 0.0
        %1115 = vmatprep.subr.mxu0 0.0
        %1116 = vmatpush1.msra.mxu0 0.0
        %1117 = vmatprep.subr.mxu0 0.0
        %1118 = vmatpush1.msra.mxu0 0.0
        %1119 = vmatprep.subr.mxu0 0.0
        %1120 = vmatpush1.msra.mxu0 0.0
        %1121 = vmatprep.subr.mxu0 0.0
        %1122 = vmatpush1.msra.mxu0 0.0
        %1123 = vmatprep.subr.mxu0 0.0
        %1124 = vmatpush1.msra.mxu0 0.0
        %1125 = vmatprep.subr.mxu0 0.0
        %1126 = vmatpush1.msra.mxu0 0.0
        %1127 = vmatprep.subr.mxu0 0.0
        %1128 = vmatpush1.msra.mxu0 0.0
        %1129 = vmatprep.subr.mxu0 0.0
        %1130 = vmatpush1.msra.mxu0 0.0
        %1131 = vmatprep.subr.mxu0 0.0
        %1132 = vmatpush1.msra.mxu0 0.0
        %1133 = vmatprep.subr.mxu0 0.0
        %1134 = vmatpush1.msra.mxu0 0.0
        %1135 = vmatprep.subr.mxu0 0.0
        %1136 = vmatpush1.msra.mxu0 0.0
        %1137 = vmatprep.subr.mxu0 0.0
        %1138 = vmatpush1.msra.mxu0 0.0
        %1139 = vmatprep.subr.mxu0 0.0
        %1140 = vmatpush1.msra.mxu0 0.0
        %1141 = vmatprep.subr.mxu0 0.0
        %1142 = vmatpush1.msra.mxu0 0.0
        %1143 = vmatprep.subr.mxu0 0.0
        %1144 = vmatpush1.msra.mxu0 0.0
        %1145 = vmatprep.subr.mxu0 0.0
        %1146 = vmatpush1.msra.mxu0 0.0
        %1147 = vmatprep.subr.mxu0 0.0
        %1148 = vmatpush1.msra.mxu0 0.0
        %1149 = vmatprep.subr.mxu0 0.0
        %1150 = vmatpush1.msra.mxu0 0.0
        %1151 = vmatprep.subr.mxu0 0.0
        %1152 = vmatpush1.msra.mxu0 0.0
        %1153 = vmatprep.subr.mxu0 0.0
        %1154 = vmatpush1.msra.mxu0 0.0
        %1155 = vmatprep.subr.mxu0 0.0
        %1156 = vmatpush1.msra.mxu0 0.0
        %1157 = vmatprep.subr.mxu0 0.0
        %1158 = vmatpush1.msra.mxu0 0.0
        %1159 = vmatprep.subr.mxu0 0.0
        %1160 = vmatpush1.msra.mxu0 0.0
        %1161 = vmatprep.subr.mxu0 0.0
        %1162 = vmatpush1.msra.mxu0 0.0
        %1163 = vmatprep.mubr.f32.mxu0 0.0
        %1164 = vmatmul.mubr.f32.gmra.mrb[0].mxu0 %v1004
        %v1165 = vpop.f32.mrb[0].mxu0
        %v1166 = vadd.f32 0.0, %v1165
        %v1167 = vpop.f32.mrb[0].mxu0
        %1168 = vmatprep.mubr.f32.mxu0 0.0
        %1169 = vmatmul.mubr.f32.gmra.mrb[0].mxu0 %v1007
        %v1170 = vpop.f32.mrb[0].mxu0
        %v1171 = vadd.f32 0.0, %v1170
        %v1172 = vpop.f32.mrb[0].mxu0
        %1173 = vmatprep.mubr.f32.mxu0 0.0
        %1174 = vmatmul.mubr.f32.gmra.mrb[0].mxu0 %v1010
        %v1175 = vpop.f32.mrb[0].mxu0
        %v1176 = vadd.f32 0.0, %v1175
        %v1177 = vpop.f32.mrb[0].mxu0
        %1178 = vmatprep.mubr.f32.mxu0 0.0
        %1179 = vmatmul.mubr.f32.gmra.mrb[0].mxu0 %v1013
        %v1180 = vpop.f32.mrb[0].mxu0
        %v1181 = vadd.f32 0.0, %v1180
        %v1182 = vpop.f32.mrb[0].mxu0
        %1183 = vmatprep.mubr.f32.mxu0 0.0
        %1184 = vmatmul.mubr.f32.gmra.mrb[0].mxu0 %v1016
        %v1185 = vpop.f32.mrb[0].mxu0
        %v1186 = vadd.f32 0.0, %v1185
        %v1187 = vpop.f32.mrb[0].mxu0
        %1188 = vmatprep.mubr.f32.mxu0 0.0
        %1189 = vmatmul.mubr.f32.gmra.mrb[0].mxu0 %v1019
        %v1190 = vpop.f32.mrb[0].mxu0
        %v1191 = vadd.f32 0.0, %v1190
        %v1192 = vpop.f32.mrb[0].mxu0
        %1193 = vmatprep.mubr.f32.mxu0 0.0
        %1194 = vmatmul.mubr.f32.gmra.mrb[0].mxu0 %v1022
        %v1195 = vpop.f32.mrb[0].mxu0
        %v1196 = vadd.f32 0.0, %v1195
        %v1197 = vpop.f32.mrb[0].mxu0
        %1198 = vmatprep.mubr.f32.mxu0 0.0
        %1199 = vmatmul.mubr.f32.gmra.mrb[0].mxu0 %v1025
        %v1200 = vpop.f32.mrb[0].mxu0
        %v1201 = vadd.f32 0.0, %v1200
        %v1202 = vpop.f32.mrb[0].mxu0
        %1203 = vmatprep.mubr.f32.mxu0 0.0
        %1204 = vmatmul.mubr.f32.gmra.mrb[0].mxu0 %v1028
        %v1205 = vpop.f32.mrb[0].mxu0
        %v1206 = vadd.f32 0.0, %v1205
        %v1207 = vpop.f32.mrb[0].mxu0
        %1208 = vmatprep.mubr.f32.mxu0 0.0
        %1209 = vmatmul.mubr.f32.gmra.mrb[0].mxu0 %v1031
        %v1210 = vpop.f32.mrb[0].mxu0
        %v1211 = vadd.f32 0.0, %v1210
        %v1212 = vpop.f32.mrb[0].mxu0
        %1213 = vmatprep.mubr.f32.mxu0 0.0
        %1214 = vmatmul.mubr.f32.gmra.mrb[0].mxu0 %v1034
        %v1215 = vpop.f32.mrb[0].mxu0
        %v1216 = vadd.f32 0.0, %v1215
        %v1217 = vpop.f32.mrb[0].mxu0
        %1218 = vmatprep.mubr.f32.mxu0 0.0
        %1219 = vmatmul.mubr.f32.gmra.mrb[0].mxu0 %v1037
        %v1220 = vpop.f32.mrb[0].mxu0
        %v1221 = vadd.f32 0.0, %v1220
        %v1222 = vpop.f32.mrb[0].mxu0
        %1223 = vmatprep.mubr.f32.mxu0 0.0
        %1224 = vmatmul.mubr.f32.gmra.mrb[0].mxu0 %v1040
        %v1225 = vpop.f32.mrb[0].mxu0
        %v1226 = vadd.f32 0.0, %v1225
        %v1227 = vpop.f32.mrb[0].mxu0
        %1228 = vmatprep.mubr.f32.mxu0 0.0
        %1229 = vmatmul.mubr.f32.gmra.mrb[0].mxu0 %v1043
        %v1230 = vpop.f32.mrb[0].mxu0
        %v1231 = vadd.f32 0.0, %v1230
        %v1232 = vpop.f32.mrb[0].mxu0
        %1233 = vmatprep.mubr.f32.mxu0 0.0
        %1234 = vmatmul.mubr.f32.gmra.mrb[0].mxu0 %v1046
        %v1235 = vpop.f32.mrb[0].mxu0
        %v1236 = vadd.f32 0.0, %v1235
        %v1237 = vpop.f32.mrb[0].mxu0
        %1238 = vmatprep.mubr.f32.mxu0 0.0
        %1239 = vmatmul.mubr.f32.gmra.mrb[0].mxu0 %v1049
        %v1240 = vpop.f32.mrb[0].mxu0
        %v1241 = vadd.f32 0.0, %v1240
        %v1242 = vpop.f32.mrb[0].mxu0
        %1243 = vmatprep.mubr.f32.mxu0 0.0
        %1244 = vmatmul.mubr.f32.gmra.mrb[0].mxu0 %v1052
        %v1245 = vpop.f32.mrb[0].mxu0
        %v1246 = vadd.f32 0.0, %v1245
        %v1247 = vpop.f32.mrb[0].mxu0
        %1248 = vmatprep.mubr.f32.mxu0 0.0
        %1249 = vmatmul.mubr.f32.gmra.mrb[0].mxu0 %v1055
        %v1250 = vpop.f32.mrb[0].mxu0
        %v1251 = vadd.f32 0.0, %v1250
        %v1252 = vpop.f32.mrb[0].mxu0
        %1253 = vmatprep.mubr.f32.mxu0 0.0
        %1254 = vmatmul.mubr.f32.gmra.mrb[0].mxu0 %v1058
        %v1255 = vpop.f32.mrb[0].mxu0
        %v1256 = vadd.f32 0.0, %v1255
        %v1257 = vpop.f32.mrb[0].mxu0
        %1258 = vmatprep.mubr.f32.mxu0 0.0
        %1259 = vmatmul.mubr.f32.gmra.mrb[0].mxu0 %v1061
        %v1260 = vpop.f32.mrb[0].mxu0
        %v1261 = vadd.f32 0.0, %v1260
        %v1262 = vpop.f32.mrb[0].mxu0
        %1263 = vmatprep.mubr.f32.mxu0 0.0
        %1264 = vmatmul.mubr.f32.gmra.mrb[0].mxu0 %v1064
        %v1265 = vpop.f32.mrb[0].mxu0
        %v1266 = vadd.f32 0.0, %v1265
        %v1267 = vpop.f32.mrb[0].mxu0
        %1268 = vmatprep.mubr.f32.mxu0 0.0
        %1269 = vmatmul.mubr.f32.gmra.mrb[0].mxu0 %v1067
        %v1270 = vpop.f32.mrb[0].mxu0
        %v1271 = vadd.f32 0.0, %v1270
        %v1272 = vpop.f32.mrb[0].mxu0
        %1273 = vmatprep.mubr.f32.mxu0 0.0
        %1274 = vmatmul.mubr.f32.gmra.mrb[0].mxu0 %v1070
        %v1275 = vpop.f32.mrb[0].mxu0
        %v1276 = vadd.f32 0.0, %v1275
        %v1277 = vpop.f32.mrb[0].mxu0
        %1278 = vmatprep.mubr.f32.mxu0 0.0
        %1279 = vmatmul.mubr.f32.gmra.mrb[0].mxu0 %v1073
        %v1280 = vpop.f32.mrb[0].mxu0
        %v1281 = vadd.f32 0.0, %v1280
        %v1282 = vpop.f32.mrb[0].mxu0
        %1283 = vmatprep.mubr.f32.mxu0 0.0
        %1284 = vmatmul.mubr.f32.gmra.mrb[0].mxu0 %v1076
        %v1285 = vpop.f32.mrb[0].mxu0
        %v1286 = vadd.f32 0.0, %v1285
        %v1287 = vpop.f32.mrb[0].mxu0
        %1288 = vmatprep.mubr.f32.mxu0 0.0
        %1289 = vmatmul.mubr.f32.gmra.mrb[0].mxu0 %v1079
        %v1290 = vpop.f32.mrb[0].mxu0
        %v1291 = vadd.f32 0.0, %v1290
        %v1292 = vpop.f32.mrb[0].mxu0
        %1293 = vmatprep.mubr.f32.mxu0 0.0
        %1294 = vmatmul.mubr.f32.gmra.mrb[0].mxu0 %v1082
        %v1295 = vpop.f32.mrb[0].mxu0
        %v1296 = vadd.f32 0.0, %v1295
        %v1297 = vpop.f32.mrb[0].mxu0
        %1298 = vmatprep.mubr.f32.mxu0 0.0
        %1299 = vmatmul.mubr.f32.gmra.mrb[0].mxu0 %v1085
        %v1300 = vpop.f32.mrb[0].mxu0
        %v1301 = vadd.f32 0.0, %v1300
        %v1302 = vpop.f32.mrb[0].mxu0
        %1303 = vmatprep.mubr.f32.mxu0 0.0
        %1304 = vmatmul.mubr.f32.gmra.mrb[0].mxu0 %v1088
        %v1305 = vpop.f32.mrb[0].mxu0
        %v1306 = vadd.f32 0.0, %v1305
        %v1307 = vpop.f32.mrb[0].mxu0
        %1308 = vmatprep.mubr.f32.mxu0 0.0
        %1309 = vmatmul.mubr.f32.gmra.mrb[0].mxu0 %v1091
        %v1310 = vpop.f32.mrb[0].mxu0
        %v1311 = vadd.f32 0.0, %v1310
        %v1312 = vpop.f32.mrb[0].mxu0
        %1313 = vmatprep.mubr.f32.mxu0 0.0
        %1314 = vmatmul.mubr.f32.gmra.mrb[0].mxu0 %v1094
        %v1315 = vpop.f32.mrb[0].mxu0
        %v1316 = vadd.f32 0.0, %v1315
        %v1317 = vpop.f32.mrb[0].mxu0
        %1318 = vmatprep.mubr.f32.mxu0 0.0
        %1319 = vmatmul.mubr.f32.gmra.mrb[0].mxu0 %v1097
        %v1320 = vpop.f32.mrb[0].mxu0
        %v1321 = vadd.f32 0.0, %v1320
        %v1322 = vpop.f32.mrb[0].mxu0
        %1323 = vdwg.mxu0
        %v1324 = vadd.f32 %v808, %v1166
        %v1325 = vadd.f32 %v813, %v1171
        %v1326 = vadd.f32 %v818, %v1176
        %v1327 = vadd.f32 %v823, %v1181
        %v1328 = vadd.f32 %v828, %v1186
        %v1329 = vadd.f32 %v833, %v1191
        %v1330 = vadd.f32 %v838, %v1196
        %v1331 = vadd.f32 %v843, %v1201
        %v1332 = vadd.f32 %v848, %v1206
        %v1333 = vadd.f32 %v853, %v1211
        %v1334 = vadd.f32 %v858, %v1216
        %v1335 = vadd.f32 %v863, %v1221
        %v1336 = vadd.f32 %v868, %v1226
        %v1337 = vadd.f32 %v873, %v1231
        %v1338 = vadd.f32 %v878, %v1236
        %v1339 = vadd.f32 %v883, %v1241
        %v1340 = vadd.f32 %v888, %v1246
        %v1341 = vadd.f32 %v893, %v1251
        %v1342 = vadd.f32 %v898, %v1256
        %v1343 = vadd.f32 %v903, %v1261
        %v1344 = vadd.f32 %v908, %v1266
        %v1345 = vadd.f32 %v913, %v1271
        %v1346 = vadd.f32 %v918, %v1276
        %v1347 = vadd.f32 %v923, %v1281
        %v1348 = vadd.f32 %v928, %v1286
        %v1349 = vadd.f32 %v933, %v1291
        %v1350 = vadd.f32 %v938, %v1296
        %v1351 = vadd.f32 %v943, %v1301
        %v1352 = vadd.f32 %v948, %v1306
        %v1353 = vadd.f32 %v953, %v1311
        %v1354 = vadd.f32 %v958, %v1316
        %v1355 = vadd.f32 %v963, %v1321
        %s1356 = scalar_lea.vmem %s249, 24
        %v1357 = vld [vmem:[%s1356] sm:$0xff]
        %v1358 = vld [vmem:[%s1356 + $0x8] sm:$0xff]
        %v1359 = vld [vmem:[%s1356 + $0x18] sm:$0xff]
        %v1360 = vld [vmem:[%s1356 + $0x20] sm:$0xff]
        %v1361 = vld [vmem:[%s1356 + $0x30] sm:$0xff]
        %v1362 = vld [vmem:[%s1356 + $0x38] sm:$0xff]
        %v1363 = vld [vmem:[%s1356 + $0x48] sm:$0xff]
        %v1364 = vld [vmem:[%s1356 + $0x50] sm:$0xff]
        %v1365 = vld [vmem:[%s1356 + $0x60] sm:$0xff]
        %v1366 = vld [vmem:[%s1356 + $0x68] sm:$0xff]
        %v1367 = vld [vmem:[%s1356 + $0x78] sm:$0xff]
        %v1368 = vld [vmem:[%s1356 + $0x80] sm:$0xff]
        %v1369 = vld [vmem:[%s1356 + $0x90] sm:$0xff]
        %v1370 = vld [vmem:[%s1356 + $0x98] sm:$0xff]
        %v1371 = vld [vmem:[%s1356 + $0xa8] sm:$0xff]
        %v1372 = vld [vmem:[%s1356 + $0xb0] sm:$0xff]
        %v1373 = vld [vmem:[%s1356 + $0xc0] sm:$0xff]
        %v1374 = vld [vmem:[%s1356 + $0xc8] sm:$0xff]
        %v1375 = vld [vmem:[%s1356 + $0xd8] sm:$0xff]
        %v1376 = vld [vmem:[%s1356 + $0xe0] sm:$0xff]
        %v1377 = vld [vmem:[%s1356 + $0xf0] sm:$0xff]
        %v1378 = vld [vmem:[%s1356 + $0xf8] sm:$0xff]
        %v1379 = vld [vmem:[%s1356 + $0x108] sm:$0xff]
        %v1380 = vld [vmem:[%s1356 + $0x110] sm:$0xff]
        %v1381 = vld [vmem:[%s1356 + $0x120] sm:$0xff]
        %v1382 = vld [vmem:[%s1356 + $0x128] sm:$0xff]
        %v1383 = vld [vmem:[%s1356 + $0x138] sm:$0xff]
        %v1384 = vld [vmem:[%s1356 + $0x140] sm:$0xff]
        %v1385 = vld [vmem:[%s1356 + $0x150] sm:$0xff]
        %v1386 = vld [vmem:[%s1356 + $0x158] sm:$0xff]
        %v1387 = vld [vmem:[%s1356 + $0x168] sm:$0xff]
        %v1388 = vld [vmem:[%s1356 + $0x170] sm:$0xff]
        %s1389 = scalar_lea.vmem %s1, 96
        %v1390 = vld [vmem:[%s1389] sm:$0xff]
        %v1391 = vld [vmem:[%s1389 + $0x8] sm:$0xff]
        %v1392 = vld [vmem:[%s1389 + $0x10] sm:$0xff]
        %v1393 = vld [vmem:[%s1389 + $0x18] sm:$0xff]
        %v1395 = vsel %vm323, %v1357, 0
        %v1398 = vsel %vm323, %v1358, 0
        %v1401 = vsel %vm323, %v1359, 0
        %v1404 = vsel %vm323, %v1360, 0
        %v1407 = vsel %vm323, %v1361, 0
        %v1410 = vsel %vm323, %v1362, 0
        %v1413 = vsel %vm323, %v1363, 0
        %v1416 = vsel %vm323, %v1364, 0
        %v1419 = vsel %vm323, %v1365, 0
        %v1422 = vsel %vm323, %v1366, 0
        %v1425 = vsel %vm323, %v1367, 0
        %v1428 = vsel %vm323, %v1368, 0
        %v1431 = vsel %vm323, %v1369, 0
        %v1434 = vsel %vm323, %v1370, 0
        %v1437 = vsel %vm323, %v1371, 0
        %v1440 = vsel %vm323, %v1372, 0
        %v1443 = vsel %vm323, %v1373, 0
        %v1446 = vsel %vm323, %v1374, 0
        %v1449 = vsel %vm323, %v1375, 0
        %v1452 = vsel %vm323, %v1376, 0
        %v1455 = vsel %vm323, %v1377, 0
        %v1458 = vsel %vm323, %v1378, 0
        %v1461 = vsel %vm323, %v1379, 0
        %v1464 = vsel %vm323, %v1380, 0
        %v1467 = vsel %vm323, %v1381, 0
        %v1470 = vsel %vm323, %v1382, 0
        %v1473 = vsel %vm323, %v1383, 0
        %v1476 = vsel %vm323, %v1384, 0
        %v1479 = vsel %vm323, %v1385, 0
        %v1482 = vsel %vm323, %v1386, 0
        %v1485 = vsel %vm323, %v1387, 0
        %v1488 = vsel %vm323, %v1388, 0
        %1490 = vmatprep.subr.mxu0 0.0
        %1491 = vmatpush1.msra.mxu0 %v1390
        %1492 = vmatprep.subr.mxu0 0.0
        %1493 = vmatpush1.msra.mxu0 %v1391
        %1494 = vmatprep.subr.mxu0 0.0
        %1495 = vmatpush1.msra.mxu0 %v1392
        %1496 = vmatprep.subr.mxu0 0.0
        %1497 = vmatpush1.msra.mxu0 %v1393
        %1498 = vmatprep.subr.mxu0 0.0
        %1499 = vmatpush1.msra.mxu0 0.0
        %1500 = vmatprep.subr.mxu0 0.0
        %1501 = vmatpush1.msra.mxu0 0.0
        %1502 = vmatprep.subr.mxu0 0.0
        %1503 = vmatpush1.msra.mxu0 0.0
        %1504 = vmatprep.subr.mxu0 0.0
        %1505 = vmatpush1.msra.mxu0 0.0
        %1506 = vmatprep.subr.mxu0 0.0
        %1507 = vmatpush1.msra.mxu0 0.0
        %1508 = vmatprep.subr.mxu0 0.0
        %1509 = vmatpush1.msra.mxu0 0.0
        %1510 = vmatprep.subr.mxu0 0.0
        %1511 = vmatpush1.msra.mxu0 0.0
        %1512 = vmatprep.subr.mxu0 0.0
        %1513 = vmatpush1.msra.mxu0 0.0
        %1514 = vmatprep.subr.mxu0 0.0
        %1515 = vmatpush1.msra.mxu0 0.0
        %1516 = vmatprep.subr.mxu0 0.0
        %1517 = vmatpush1.msra.mxu0 0.0
        %1518 = vmatprep.subr.mxu0 0.0
        %1519 = vmatpush1.msra.mxu0 0.0
        %1520 = vmatprep.subr.mxu0 0.0
        %1521 = vmatpush1.msra.mxu0 0.0
        %1522 = vmatprep.subr.mxu0 0.0
        %1523 = vmatpush1.msra.mxu0 0.0
        %1524 = vmatprep.subr.mxu0 0.0
        %1525 = vmatpush1.msra.mxu0 0.0
        %1526 = vmatprep.subr.mxu0 0.0
        %1527 = vmatpush1.msra.mxu0 0.0
        %1528 = vmatprep.subr.mxu0 0.0
        %1529 = vmatpush1.msra.mxu0 0.0
        %1530 = vmatprep.subr.mxu0 0.0
        %1531 = vmatpush1.msra.mxu0 0.0
        %1532 = vmatprep.subr.mxu0 0.0
        %1533 = vmatpush1.msra.mxu0 0.0
        %1534 = vmatprep.subr.mxu0 0.0
        %1535 = vmatpush1.msra.mxu0 0.0
        %1536 = vmatprep.subr.mxu0 0.0
        %1537 = vmatpush1.msra.mxu0 0.0
        %1538 = vmatprep.subr.mxu0 0.0
        %1539 = vmatpush1.msra.mxu0 0.0
        %1540 = vmatprep.subr.mxu0 0.0
        %1541 = vmatpush1.msra.mxu0 0.0
        %1542 = vmatprep.subr.mxu0 0.0
        %1543 = vmatpush1.msra.mxu0 0.0
        %1544 = vmatprep.subr.mxu0 0.0
        %1545 = vmatpush1.msra.mxu0 0.0
        %1546 = vmatprep.subr.mxu0 0.0
        %1547 = vmatpush1.msra.mxu0 0.0
        %1548 = vmatprep.subr.mxu0 0.0
        %1549 = vmatpush1.msra.mxu0 0.0
        %1550 = vmatprep.subr.mxu0 0.0
        %1551 = vmatpush1.msra.mxu0 0.0
        %1552 = vmatprep.subr.mxu0 0.0
        %1553 = vmatpush1.msra.mxu0 0.0
        %1554 = vmatprep.mubr.f32.mxu0 0.0
        %1555 = vmatmul.mubr.f32.gmra.mrb[0].mxu0 %v1395
        %v1556 = vpop.f32.mrb[0].mxu0
        %v1557 = vadd.f32 0.0, %v1556
        %v1558 = vpop.f32.mrb[0].mxu0
        %1559 = vmatprep.mubr.f32.mxu0 0.0
        %1560 = vmatmul.mubr.f32.gmra.mrb[0].mxu0 %v1398
        %v1561 = vpop.f32.mrb[0].mxu0
        %v1562 = vadd.f32 0.0, %v1561
        %v1563 = vpop.f32.mrb[0].mxu0
        %1564 = vmatprep.mubr.f32.mxu0 0.0
        %1565 = vmatmul.mubr.f32.gmra.mrb[0].mxu0 %v1401
        %v1566 = vpop.f32.mrb[0].mxu0
        %v1567 = vadd.f32 0.0, %v1566
        %v1568 = vpop.f32.mrb[0].mxu0
        %1569 = vmatprep.mubr.f32.mxu0 0.0
        %1570 = vmatmul.mubr.f32.gmra.mrb[0].mxu0 %v1404
        %v1571 = vpop.f32.mrb[0].mxu0
        %v1572 = vadd.f32 0.0, %v1571
        %v1573 = vpop.f32.mrb[0].mxu0
        %1574 = vmatprep.mubr.f32.mxu0 0.0
        %1575 = vmatmul.mubr.f32.gmra.mrb[0].mxu0 %v1407
        %v1576 = vpop.f32.mrb[0].mxu0
        %v1577 = vadd.f32 0.0, %v1576
        %v1578 = vpop.f32.mrb[0].mxu0
        %1579 = vmatprep.mubr.f32.mxu0 0.0
        %1580 = vmatmul.mubr.f32.gmra.mrb[0].mxu0 %v1410
        %v1581 = vpop.f32.mrb[0].mxu0
        %v1582 = vadd.f32 0.0, %v1581
        %v1583 = vpop.f32.mrb[0].mxu0
        %1584 = vmatprep.mubr.f32.mxu0 0.0
        %1585 = vmatmul.mubr.f32.gmra.mrb[0].mxu0 %v1413
        %v1586 = vpop.f32.mrb[0].mxu0
        %v1587 = vadd.f32 0.0, %v1586
        %v1588 = vpop.f32.mrb[0].mxu0
        %1589 = vmatprep.mubr.f32.mxu0 0.0
        %1590 = vmatmul.mubr.f32.gmra.mrb[0].mxu0 %v1416
        %v1591 = vpop.f32.mrb[0].mxu0
        %v1592 = vadd.f32 0.0, %v1591
        %v1593 = vpop.f32.mrb[0].mxu0
        %1594 = vmatprep.mubr.f32.mxu0 0.0
        %1595 = vmatmul.mubr.f32.gmra.mrb[0].mxu0 %v1419
        %v1596 = vpop.f32.mrb[0].mxu0
        %v1597 = vadd.f32 0.0, %v1596
        %v1598 = vpop.f32.mrb[0].mxu0
        %1599 = vmatprep.mubr.f32.mxu0 0.0
        %1600 = vmatmul.mubr.f32.gmra.mrb[0].mxu0 %v1422
        %v1601 = vpop.f32.mrb[0].mxu0
        %v1602 = vadd.f32 0.0, %v1601
        %v1603 = vpop.f32.mrb[0].mxu0
        %1604 = vmatprep.mubr.f32.mxu0 0.0
        %1605 = vmatmul.mubr.f32.gmra.mrb[0].mxu0 %v1425
        %v1606 = vpop.f32.mrb[0].mxu0
        %v1607 = vadd.f32 0.0, %v1606
        %v1608 = vpop.f32.mrb[0].mxu0
        %1609 = vmatprep.mubr.f32.mxu0 0.0
        %1610 = vmatmul.mubr.f32.gmra.mrb[0].mxu0 %v1428
        %v1611 = vpop.f32.mrb[0].mxu0
        %v1612 = vadd.f32 0.0, %v1611
        %v1613 = vpop.f32.mrb[0].mxu0
        %1614 = vmatprep.mubr.f32.mxu0 0.0
        %1615 = vmatmul.mubr.f32.gmra.mrb[0].mxu0 %v1431
        %v1616 = vpop.f32.mrb[0].mxu0
        %v1617 = vadd.f32 0.0, %v1616
        %v1618 = vpop.f32.mrb[0].mxu0
        %1619 = vmatprep.mubr.f32.mxu0 0.0
        %1620 = vmatmul.mubr.f32.gmra.mrb[0].mxu0 %v1434
        %v1621 = vpop.f32.mrb[0].mxu0
        %v1622 = vadd.f32 0.0, %v1621
        %v1623 = vpop.f32.mrb[0].mxu0
        %1624 = vmatprep.mubr.f32.mxu0 0.0
        %1625 = vmatmul.mubr.f32.gmra.mrb[0].mxu0 %v1437
        %v1626 = vpop.f32.mrb[0].mxu0
        %v1627 = vadd.f32 0.0, %v1626
        %v1628 = vpop.f32.mrb[0].mxu0
        %1629 = vmatprep.mubr.f32.mxu0 0.0
        %1630 = vmatmul.mubr.f32.gmra.mrb[0].mxu0 %v1440
        %v1631 = vpop.f32.mrb[0].mxu0
        %v1632 = vadd.f32 0.0, %v1631
        %v1633 = vpop.f32.mrb[0].mxu0
        %1634 = vmatprep.mubr.f32.mxu0 0.0
        %1635 = vmatmul.mubr.f32.gmra.mrb[0].mxu0 %v1443
        %v1636 = vpop.f32.mrb[0].mxu0
        %v1637 = vadd.f32 0.0, %v1636
        %v1638 = vpop.f32.mrb[0].mxu0
        %1639 = vmatprep.mubr.f32.mxu0 0.0
        %1640 = vmatmul.mubr.f32.gmra.mrb[0].mxu0 %v1446
        %v1641 = vpop.f32.mrb[0].mxu0
        %v1642 = vadd.f32 0.0, %v1641
        %v1643 = vpop.f32.mrb[0].mxu0
        %1644 = vmatprep.mubr.f32.mxu0 0.0
        %1645 = vmatmul.mubr.f32.gmra.mrb[0].mxu0 %v1449
        %v1646 = vpop.f32.mrb[0].mxu0
        %v1647 = vadd.f32 0.0, %v1646
        %v1648 = vpop.f32.mrb[0].mxu0
        %1649 = vmatprep.mubr.f32.mxu0 0.0
        %1650 = vmatmul.mubr.f32.gmra.mrb[0].mxu0 %v1452
        %v1651 = vpop.f32.mrb[0].mxu0
        %v1652 = vadd.f32 0.0, %v1651
        %v1653 = vpop.f32.mrb[0].mxu0
        %1654 = vmatprep.mubr.f32.mxu0 0.0
        %1655 = vmatmul.mubr.f32.gmra.mrb[0].mxu0 %v1455
        %v1656 = vpop.f32.mrb[0].mxu0
        %v1657 = vadd.f32 0.0, %v1656
        %v1658 = vpop.f32.mrb[0].mxu0
        %1659 = vmatprep.mubr.f32.mxu0 0.0
        %1660 = vmatmul.mubr.f32.gmra.mrb[0].mxu0 %v1458
        %v1661 = vpop.f32.mrb[0].mxu0
        %v1662 = vadd.f32 0.0, %v1661
        %v1663 = vpop.f32.mrb[0].mxu0
        %1664 = vmatprep.mubr.f32.mxu0 0.0
        %1665 = vmatmul.mubr.f32.gmra.mrb[0].mxu0 %v1461
        %v1666 = vpop.f32.mrb[0].mxu0
        %v1667 = vadd.f32 0.0, %v1666
        %v1668 = vpop.f32.mrb[0].mxu0
        %1669 = vmatprep.mubr.f32.mxu0 0.0
        %1670 = vmatmul.mubr.f32.gmra.mrb[0].mxu0 %v1464
        %v1671 = vpop.f32.mrb[0].mxu0
        %v1672 = vadd.f32 0.0, %v1671
        %v1673 = vpop.f32.mrb[0].mxu0
        %1674 = vmatprep.mubr.f32.mxu0 0.0
        %1675 = vmatmul.mubr.f32.gmra.mrb[0].mxu0 %v1467
        %v1676 = vpop.f32.mrb[0].mxu0
        %v1677 = vadd.f32 0.0, %v1676
        %v1678 = vpop.f32.mrb[0].mxu0
        %1679 = vmatprep.mubr.f32.mxu0 0.0
        %1680 = vmatmul.mubr.f32.gmra.mrb[0].mxu0 %v1470
        %v1681 = vpop.f32.mrb[0].mxu0
        %v1682 = vadd.f32 0.0, %v1681
        %v1683 = vpop.f32.mrb[0].mxu0
        %1684 = vmatprep.mubr.f32.mxu0 0.0
        %1685 = vmatmul.mubr.f32.gmra.mrb[0].mxu0 %v1473
        %v1686 = vpop.f32.mrb[0].mxu0
        %v1687 = vadd.f32 0.0, %v1686
        %v1688 = vpop.f32.mrb[0].mxu0
        %1689 = vmatprep.mubr.f32.mxu0 0.0
        %1690 = vmatmul.mubr.f32.gmra.mrb[0].mxu0 %v1476
        %v1691 = vpop.f32.mrb[0].mxu0
        %v1692 = vadd.f32 0.0, %v1691
        %v1693 = vpop.f32.mrb[0].mxu0
        %1694 = vmatprep.mubr.f32.mxu0 0.0
        %1695 = vmatmul.mubr.f32.gmra.mrb[0].mxu0 %v1479
        %v1696 = vpop.f32.mrb[0].mxu0
        %v1697 = vadd.f32 0.0, %v1696
        %v1698 = vpop.f32.mrb[0].mxu0
        %1699 = vmatprep.mubr.f32.mxu0 0.0
        %1700 = vmatmul.mubr.f32.gmra.mrb[0].mxu0 %v1482
        %v1701 = vpop.f32.mrb[0].mxu0
        %v1702 = vadd.f32 0.0, %v1701
        %v1703 = vpop.f32.mrb[0].mxu0
        %1704 = vmatprep.mubr.f32.mxu0 0.0
        %1705 = vmatmul.mubr.f32.gmra.mrb[0].mxu0 %v1485
        %v1706 = vpop.f32.mrb[0].mxu0
        %v1707 = vadd.f32 0.0, %v1706
        %v1708 = vpop.f32.mrb[0].mxu0
        %1709 = vmatprep.mubr.f32.mxu0 0.0
        %1710 = vmatmul.mubr.f32.gmra.mrb[0].mxu0 %v1488
        %v1711 = vpop.f32.mrb[0].mxu0
        %v1712 = vadd.f32 0.0, %v1711
        %v1713 = vpop.f32.mrb[0].mxu0
        %1714 = vdwg.mxu0
        %v1715 = vadd.f32 %v1324, %v1557
        %v1716 = vadd.f32 %v1325, %v1562
        %v1717 = vadd.f32 %v1326, %v1567
        %v1718 = vadd.f32 %v1327, %v1572
        %v1719 = vadd.f32 %v1328, %v1577
        %v1720 = vadd.f32 %v1329, %v1582
        %v1721 = vadd.f32 %v1330, %v1587
        %v1722 = vadd.f32 %v1331, %v1592
        %v1723 = vadd.f32 %v1332, %v1597
        %v1724 = vadd.f32 %v1333, %v1602
        %v1725 = vadd.f32 %v1334, %v1607
        %v1726 = vadd.f32 %v1335, %v1612
        %v1727 = vadd.f32 %v1336, %v1617
        %v1728 = vadd.f32 %v1337, %v1622
        %v1729 = vadd.f32 %v1338, %v1627
        %v1730 = vadd.f32 %v1339, %v1632
        %v1731 = vadd.f32 %v1340, %v1637
        %v1732 = vadd.f32 %v1341, %v1642
        %v1733 = vadd.f32 %v1342, %v1647
        %v1734 = vadd.f32 %v1343, %v1652
        %v1735 = vadd.f32 %v1344, %v1657
        %v1736 = vadd.f32 %v1345, %v1662
        %v1737 = vadd.f32 %v1346, %v1667
        %v1738 = vadd.f32 %v1347, %v1672
        %v1739 = vadd.f32 %v1348, %v1677
        %v1740 = vadd.f32 %v1349, %v1682
        %v1741 = vadd.f32 %v1350, %v1687
        %v1742 = vadd.f32 %v1351, %v1692
        %v1743 = vadd.f32 %v1352, %v1697
        %v1744 = vadd.f32 %v1353, %v1702
        %v1745 = vadd.f32 %v1354, %v1707
        %v1746 = vadd.f32 %v1355, %v1712
        %v1747 = vld [vmem:[%s1356 + $0x1] sm:$0xff]
        %v1748 = vld [vmem:[%s1356 + $0x9] sm:$0xff]
        %v1749 = vld [vmem:[%s1356 + $0x19] sm:$0xff]
        %v1750 = vld [vmem:[%s1356 + $0x21] sm:$0xff]
        %v1751 = vld [vmem:[%s1356 + $0x31] sm:$0xff]
        %v1752 = vld [vmem:[%s1356 + $0x39] sm:$0xff]
        %v1753 = vld [vmem:[%s1356 + $0x49] sm:$0xff]
        %v1754 = vld [vmem:[%s1356 + $0x51] sm:$0xff]
        %v1755 = vld [vmem:[%s1356 + $0x61] sm:$0xff]
        %v1756 = vld [vmem:[%s1356 + $0x69] sm:$0xff]
        %v1757 = vld [vmem:[%s1356 + $0x79] sm:$0xff]
        %v1758 = vld [vmem:[%s1356 + $0x81] sm:$0xff]
        %v1759 = vld [vmem:[%s1356 + $0x91] sm:$0xff]
        %v1760 = vld [vmem:[%s1356 + $0x99] sm:$0xff]
        %v1761 = vld [vmem:[%s1356 + $0xa9] sm:$0xff]
        %v1762 = vld [vmem:[%s1356 + $0xb1] sm:$0xff]
        %v1763 = vld [vmem:[%s1356 + $0xc1] sm:$0xff]
        %v1764 = vld [vmem:[%s1356 + $0xc9] sm:$0xff]
        %v1765 = vld [vmem:[%s1356 + $0xd9] sm:$0xff]
        %v1766 = vld [vmem:[%s1356 + $0xe1] sm:$0xff]
        %v1767 = vld [vmem:[%s1356 + $0xf1] sm:$0xff]
        %v1768 = vld [vmem:[%s1356 + $0xf9] sm:$0xff]
        %v1769 = vld [vmem:[%s1356 + $0x109] sm:$0xff]
        %v1770 = vld [vmem:[%s1356 + $0x111] sm:$0xff]
        %v1771 = vld [vmem:[%s1356 + $0x121] sm:$0xff]
        %v1772 = vld [vmem:[%s1356 + $0x129] sm:$0xff]
        %v1773 = vld [vmem:[%s1356 + $0x139] sm:$0xff]
        %v1774 = vld [vmem:[%s1356 + $0x141] sm:$0xff]
        %v1775 = vld [vmem:[%s1356 + $0x151] sm:$0xff]
        %v1776 = vld [vmem:[%s1356 + $0x159] sm:$0xff]
        %v1777 = vld [vmem:[%s1356 + $0x169] sm:$0xff]
        %v1778 = vld [vmem:[%s1356 + $0x171] sm:$0xff]
        %s1779 = scalar_lea.vmem %s1, 128
        %v1780 = vld [vmem:[%s1779] sm:$0xff]
        %v1781 = vld [vmem:[%s1779 + $0x8] sm:$0xff]
        %v1782 = vld [vmem:[%s1779 + $0x10] sm:$0xff]
        %v1783 = vld [vmem:[%s1779 + $0x18] sm:$0xff]
        %v1785 = vsel %vm323, %v1747, 0
        %v1788 = vsel %vm323, %v1748, 0
        %v1791 = vsel %vm323, %v1749, 0
        %v1794 = vsel %vm323, %v1750, 0
        %v1797 = vsel %vm323, %v1751, 0
        %v1800 = vsel %vm323, %v1752, 0
        %v1803 = vsel %vm323, %v1753, 0
        %v1806 = vsel %vm323, %v1754, 0
        %v1809 = vsel %vm323, %v1755, 0
        %v1812 = vsel %vm323, %v1756, 0
        %v1815 = vsel %vm323, %v1757, 0
        %v1818 = vsel %vm323, %v1758, 0
        %v1821 = vsel %vm323, %v1759, 0
        %v1824 = vsel %vm323, %v1760, 0
        %v1827 = vsel %vm323, %v1761, 0
        %v1830 = vsel %vm323, %v1762, 0
        %v1833 = vsel %vm323, %v1763, 0
        %v1836 = vsel %vm323, %v1764, 0
        %v1839 = vsel %vm323, %v1765, 0
        %v1842 = vsel %vm323, %v1766, 0
        %v1845 = vsel %vm323, %v1767, 0
        %v1848 = vsel %vm323, %v1768, 0
        %v1851 = vsel %vm323, %v1769, 0
        %v1854 = vsel %vm323, %v1770, 0
        %v1857 = vsel %vm323, %v1771, 0
        %v1860 = vsel %vm323, %v1772, 0
        %v1863 = vsel %vm323, %v1773, 0
        %v1866 = vsel %vm323, %v1774, 0
        %v1869 = vsel %vm323, %v1775, 0
        %v1872 = vsel %vm323, %v1776, 0
        %v1875 = vsel %vm323, %v1777, 0
        %v1878 = vsel %vm323, %v1778, 0
        %1880 = vmatprep.subr.mxu0 0.0
        %1881 = vmatpush1.msra.mxu0 %v1780
        %1882 = vmatprep.subr.mxu0 0.0
        %1883 = vmatpush1.msra.mxu0 %v1781
        %1884 = vmatprep.subr.mxu0 0.0
        %1885 = vmatpush1.msra.mxu0 %v1782
        %1886 = vmatprep.subr.mxu0 0.0
        %1887 = vmatpush1.msra.mxu0 %v1783
        %1888 = vmatprep.subr.mxu0 0.0
        %1889 = vmatpush1.msra.mxu0 0.0
        %1890 = vmatprep.subr.mxu0 0.0
        %1891 = vmatpush1.msra.mxu0 0.0
        %1892 = vmatprep.subr.mxu0 0.0
        %1893 = vmatpush1.msra.mxu0 0.0
        %1894 = vmatprep.subr.mxu0 0.0
        %1895 = vmatpush1.msra.mxu0 0.0
        %1896 = vmatprep.subr.mxu0 0.0
        %1897 = vmatpush1.msra.mxu0 0.0
        %1898 = vmatprep.subr.mxu0 0.0
        %1899 = vmatpush1.msra.mxu0 0.0
        %1900 = vmatprep.subr.mxu0 0.0
        %1901 = vmatpush1.msra.mxu0 0.0
        %1902 = vmatprep.subr.mxu0 0.0
        %1903 = vmatpush1.msra.mxu0 0.0
        %1904 = vmatprep.subr.mxu0 0.0
        %1905 = vmatpush1.msra.mxu0 0.0
        %1906 = vmatprep.subr.mxu0 0.0
        %1907 = vmatpush1.msra.mxu0 0.0
        %1908 = vmatprep.subr.mxu0 0.0
        %1909 = vmatpush1.msra.mxu0 0.0
        %1910 = vmatprep.subr.mxu0 0.0
        %1911 = vmatpush1.msra.mxu0 0.0
        %1912 = vmatprep.subr.mxu0 0.0
        %1913 = vmatpush1.msra.mxu0 0.0
        %1914 = vmatprep.subr.mxu0 0.0
        %1915 = vmatpush1.msra.mxu0 0.0
        %1916 = vmatprep.subr.mxu0 0.0
        %1917 = vmatpush1.msra.mxu0 0.0
        %1918 = vmatprep.subr.mxu0 0.0
        %1919 = vmatpush1.msra.mxu0 0.0
        %1920 = vmatprep.subr.mxu0 0.0
        %1921 = vmatpush1.msra.mxu0 0.0
        %1922 = vmatprep.subr.mxu0 0.0
        %1923 = vmatpush1.msra.mxu0 0.0
        %1924 = vmatprep.subr.mxu0 0.0
        %1925 = vmatpush1.msra.mxu0 0.0
        %1926 = vmatprep.subr.mxu0 0.0
        %1927 = vmatpush1.msra.mxu0 0.0
        %1928 = vmatprep.subr.mxu0 0.0
        %1929 = vmatpush1.msra.mxu0 0.0
        %1930 = vmatprep.subr.mxu0 0.0
        %1931 = vmatpush1.msra.mxu0 0.0
        %1932 = vmatprep.subr.mxu0 0.0
        %1933 = vmatpush1.msra.mxu0 0.0
        %1934 = vmatprep.subr.mxu0 0.0
        %1935 = vmatpush1.msra.mxu0 0.0
        %1936 = vmatprep.subr.mxu0 0.0
        %1937 = vmatpush1.msra.mxu0 0.0
        %1938 = vmatprep.subr.mxu0 0.0
        %1939 = vmatpush1.msra.mxu0 0.0
        %1940 = vmatprep.subr.mxu0 0.0
        %1941 = vmatpush1.msra.mxu0 0.0
        %1942 = vmatprep.subr.mxu0 0.0
        %1943 = vmatpush1.msra.mxu0 0.0
        %1944 = vmatprep.mubr.f32.mxu0 0.0
        %1945 = vmatmul.mubr.f32.gmra.mrb[0].mxu0 %v1785
        %v1946 = vpop.f32.mrb[0].mxu0
        %v1947 = vadd.f32 0.0, %v1946
        %v1948 = vpop.f32.mrb[0].mxu0
        %1949 = vmatprep.mubr.f32.mxu0 0.0
        %1950 = vmatmul.mubr.f32.gmra.mrb[0].mxu0 %v1788
        %v1951 = vpop.f32.mrb[0].mxu0
        %v1952 = vadd.f32 0.0, %v1951
        %v1953 = vpop.f32.mrb[0].mxu0
        %1954 = vmatprep.mubr.f32.mxu0 0.0
        %1955 = vmatmul.mubr.f32.gmra.mrb[0].mxu0 %v1791
        %v1956 = vpop.f32.mrb[0].mxu0
        %v1957 = vadd.f32 0.0, %v1956
        %v1958 = vpop.f32.mrb[0].mxu0
        %1959 = vmatprep.mubr.f32.mxu0 0.0
        %1960 = vmatmul.mubr.f32.gmra.mrb[0].mxu0 %v1794
        %v1961 = vpop.f32.mrb[0].mxu0
        %v1962 = vadd.f32 0.0, %v1961
        %v1963 = vpop.f32.mrb[0].mxu0
        %1964 = vmatprep.mubr.f32.mxu0 0.0
        %1965 = vmatmul.mubr.f32.gmra.mrb[0].mxu0 %v1797
        %v1966 = vpop.f32.mrb[0].mxu0
        %v1967 = vadd.f32 0.0, %v1966
        %v1968 = vpop.f32.mrb[0].mxu0
        %1969 = vmatprep.mubr.f32.mxu0 0.0
        %1970 = vmatmul.mubr.f32.gmra.mrb[0].mxu0 %v1800
        %v1971 = vpop.f32.mrb[0].mxu0
        %v1972 = vadd.f32 0.0, %v1971
        %v1973 = vpop.f32.mrb[0].mxu0
        %1974 = vmatprep.mubr.f32.mxu0 0.0
        %1975 = vmatmul.mubr.f32.gmra.mrb[0].mxu0 %v1803
        %v1976 = vpop.f32.mrb[0].mxu0
        %v1977 = vadd.f32 0.0, %v1976
        %v1978 = vpop.f32.mrb[0].mxu0
        %1979 = vmatprep.mubr.f32.mxu0 0.0
        %1980 = vmatmul.mubr.f32.gmra.mrb[0].mxu0 %v1806
        %v1981 = vpop.f32.mrb[0].mxu0
        %v1982 = vadd.f32 0.0, %v1981
        %v1983 = vpop.f32.mrb[0].mxu0
        %1984 = vmatprep.mubr.f32.mxu0 0.0
        %1985 = vmatmul.mubr.f32.gmra.mrb[0].mxu0 %v1809
        %v1986 = vpop.f32.mrb[0].mxu0
        %v1987 = vadd.f32 0.0, %v1986
        %v1988 = vpop.f32.mrb[0].mxu0
        %1989 = vmatprep.mubr.f32.mxu0 0.0
        %1990 = vmatmul.mubr.f32.gmra.mrb[0].mxu0 %v1812
        %v1991 = vpop.f32.mrb[0].mxu0
        %v1992 = vadd.f32 0.0, %v1991
        %v1993 = vpop.f32.mrb[0].mxu0
        %1994 = vmatprep.mubr.f32.mxu0 0.0
        %1995 = vmatmul.mubr.f32.gmra.mrb[0].mxu0 %v1815
        %v1996 = vpop.f32.mrb[0].mxu0
        %v1997 = vadd.f32 0.0, %v1996
        %v1998 = vpop.f32.mrb[0].mxu0
        %1999 = vmatprep.mubr.f32.mxu0 0.0
        %2000 = vmatmul.mubr.f32.gmra.mrb[0].mxu0 %v1818
        %v2001 = vpop.f32.mrb[0].mxu0
        %v2002 = vadd.f32 0.0, %v2001
        %v2003 = vpop.f32.mrb[0].mxu0
        %2004 = vmatprep.mubr.f32.mxu0 0.0
        %2005 = vmatmul.mubr.f32.gmra.mrb[0].mxu0 %v1821
        %v2006 = vpop.f32.mrb[0].mxu0
        %v2007 = vadd.f32 0.0, %v2006
        %v2008 = vpop.f32.mrb[0].mxu0
        %2009 = vmatprep.mubr.f32.mxu0 0.0
        %2010 = vmatmul.mubr.f32.gmra.mrb[0].mxu0 %v1824
        %v2011 = vpop.f32.mrb[0].mxu0
        %v2012 = vadd.f32 0.0, %v2011
        %v2013 = vpop.f32.mrb[0].mxu0
        %2014 = vmatprep.mubr.f32.mxu0 0.0
        %2015 = vmatmul.mubr.f32.gmra.mrb[0].mxu0 %v1827
        %v2016 = vpop.f32.mrb[0].mxu0
        %v2017 = vadd.f32 0.0, %v2016
        %v2018 = vpop.f32.mrb[0].mxu0
        %2019 = vmatprep.mubr.f32.mxu0 0.0
        %2020 = vmatmul.mubr.f32.gmra.mrb[0].mxu0 %v1830
        %v2021 = vpop.f32.mrb[0].mxu0
        %v2022 = vadd.f32 0.0, %v2021
        %v2023 = vpop.f32.mrb[0].mxu0
        %2024 = vmatprep.mubr.f32.mxu0 0.0
        %2025 = vmatmul.mubr.f32.gmra.mrb[0].mxu0 %v1833
        %v2026 = vpop.f32.mrb[0].mxu0
        %v2027 = vadd.f32 0.0, %v2026
        %v2028 = vpop.f32.mrb[0].mxu0
        %2029 = vmatprep.mubr.f32.mxu0 0.0
        %2030 = vmatmul.mubr.f32.gmra.mrb[0].mxu0 %v1836
        %v2031 = vpop.f32.mrb[0].mxu0
        %v2032 = vadd.f32 0.0, %v2031
        %v2033 = vpop.f32.mrb[0].mxu0
        %2034 = vmatprep.mubr.f32.mxu0 0.0
        %2035 = vmatmul.mubr.f32.gmra.mrb[0].mxu0 %v1839
        %v2036 = vpop.f32.mrb[0].mxu0
        %v2037 = vadd.f32 0.0, %v2036
        %v2038 = vpop.f32.mrb[0].mxu0
        %2039 = vmatprep.mubr.f32.mxu0 0.0
        %2040 = vmatmul.mubr.f32.gmra.mrb[0].mxu0 %v1842
        %v2041 = vpop.f32.mrb[0].mxu0
        %v2042 = vadd.f32 0.0, %v2041
        %v2043 = vpop.f32.mrb[0].mxu0
        %2044 = vmatprep.mubr.f32.mxu0 0.0
        %2045 = vmatmul.mubr.f32.gmra.mrb[0].mxu0 %v1845
        %v2046 = vpop.f32.mrb[0].mxu0
        %v2047 = vadd.f32 0.0, %v2046
        %v2048 = vpop.f32.mrb[0].mxu0
        %2049 = vmatprep.mubr.f32.mxu0 0.0
        %2050 = vmatmul.mubr.f32.gmra.mrb[0].mxu0 %v1848
        %v2051 = vpop.f32.mrb[0].mxu0
        %v2052 = vadd.f32 0.0, %v2051
        %v2053 = vpop.f32.mrb[0].mxu0
        %2054 = vmatprep.mubr.f32.mxu0 0.0
        %2055 = vmatmul.mubr.f32.gmra.mrb[0].mxu0 %v1851
        %v2056 = vpop.f32.mrb[0].mxu0
        %v2057 = vadd.f32 0.0, %v2056
        %v2058 = vpop.f32.mrb[0].mxu0
        %2059 = vmatprep.mubr.f32.mxu0 0.0
        %2060 = vmatmul.mubr.f32.gmra.mrb[0].mxu0 %v1854
        %v2061 = vpop.f32.mrb[0].mxu0
        %v2062 = vadd.f32 0.0, %v2061
        %v2063 = vpop.f32.mrb[0].mxu0
        %2064 = vmatprep.mubr.f32.mxu0 0.0
        %2065 = vmatmul.mubr.f32.gmra.mrb[0].mxu0 %v1857
        %v2066 = vpop.f32.mrb[0].mxu0
        %v2067 = vadd.f32 0.0, %v2066
        %v2068 = vpop.f32.mrb[0].mxu0
        %2069 = vmatprep.mubr.f32.mxu0 0.0
        %2070 = vmatmul.mubr.f32.gmra.mrb[0].mxu0 %v1860
        %v2071 = vpop.f32.mrb[0].mxu0
        %v2072 = vadd.f32 0.0, %v2071
        %v2073 = vpop.f32.mrb[0].mxu0
        %2074 = vmatprep.mubr.f32.mxu0 0.0
        %2075 = vmatmul.mubr.f32.gmra.mrb[0].mxu0 %v1863
        %v2076 = vpop.f32.mrb[0].mxu0
        %v2077 = vadd.f32 0.0, %v2076
        %v2078 = vpop.f32.mrb[0].mxu0
        %2079 = vmatprep.mubr.f32.mxu0 0.0
        %2080 = vmatmul.mubr.f32.gmra.mrb[0].mxu0 %v1866
        %v2081 = vpop.f32.mrb[0].mxu0
        %v2082 = vadd.f32 0.0, %v2081
        %v2083 = vpop.f32.mrb[0].mxu0
        %2084 = vmatprep.mubr.f32.mxu0 0.0
        %2085 = vmatmul.mubr.f32.gmra.mrb[0].mxu0 %v1869
        %v2086 = vpop.f32.mrb[0].mxu0
        %v2087 = vadd.f32 0.0, %v2086
        %v2088 = vpop.f32.mrb[0].mxu0
        %2089 = vmatprep.mubr.f32.mxu0 0.0
        %2090 = vmatmul.mubr.f32.gmra.mrb[0].mxu0 %v1872
        %v2091 = vpop.f32.mrb[0].mxu0
        %v2092 = vadd.f32 0.0, %v2091
        %v2093 = vpop.f32.mrb[0].mxu0
        %2094 = vmatprep.mubr.f32.mxu0 0.0
        %2095 = vmatmul.mubr.f32.gmra.mrb[0].mxu0 %v1875
        %v2096 = vpop.f32.mrb[0].mxu0
        %v2097 = vadd.f32 0.0, %v2096
        %v2098 = vpop.f32.mrb[0].mxu0
        %2099 = vmatprep.mubr.f32.mxu0 0.0
        %2100 = vmatmul.mubr.f32.gmra.mrb[0].mxu0 %v1878
        %v2101 = vpop.f32.mrb[0].mxu0
        %v2102 = vadd.f32 0.0, %v2101
        %v2103 = vpop.f32.mrb[0].mxu0
        %2104 = vdwg.mxu0
        %v2105 = vadd.f32 %v1715, %v1947
        %v2106 = vadd.f32 %v1716, %v1952
        %v2107 = vadd.f32 %v1717, %v1957
        %v2108 = vadd.f32 %v1718, %v1962
        %v2109 = vadd.f32 %v1719, %v1967
        %v2110 = vadd.f32 %v1720, %v1972
        %v2111 = vadd.f32 %v1721, %v1977
        %v2112 = vadd.f32 %v1722, %v1982
        %v2113 = vadd.f32 %v1723, %v1987
        %v2114 = vadd.f32 %v1724, %v1992
        %v2115 = vadd.f32 %v1725, %v1997
        %v2116 = vadd.f32 %v1726, %v2002
        %v2117 = vadd.f32 %v1727, %v2007
        %v2118 = vadd.f32 %v1728, %v2012
        %v2119 = vadd.f32 %v1729, %v2017
        %v2120 = vadd.f32 %v1730, %v2022
        %v2121 = vadd.f32 %v1731, %v2027
        %v2122 = vadd.f32 %v1732, %v2032
        %v2123 = vadd.f32 %v1733, %v2037
        %v2124 = vadd.f32 %v1734, %v2042
        %v2125 = vadd.f32 %v1735, %v2047
        %v2126 = vadd.f32 %v1736, %v2052
        %v2127 = vadd.f32 %v1737, %v2057
        %v2128 = vadd.f32 %v1738, %v2062
        %v2129 = vadd.f32 %v1739, %v2067
        %v2130 = vadd.f32 %v1740, %v2072
        %v2131 = vadd.f32 %v1741, %v2077
        %v2132 = vadd.f32 %v1742, %v2082
        %v2133 = vadd.f32 %v1743, %v2087
        %v2134 = vadd.f32 %v1744, %v2092
        %v2135 = vadd.f32 %v1745, %v2097
        %v2136 = vadd.f32 %v1746, %v2102
        %v2137 = vld [vmem:[%s1356 + $0x2] sm:$0xff]
        %v2138 = vld [vmem:[%s1356 + $0xa] sm:$0xff]
        %v2139 = vld [vmem:[%s1356 + $0x1a] sm:$0xff]
        %v2140 = vld [vmem:[%s1356 + $0x22] sm:$0xff]
        %v2141 = vld [vmem:[%s1356 + $0x32] sm:$0xff]
        %v2142 = vld [vmem:[%s1356 + $0x3a] sm:$0xff]
        %v2143 = vld [vmem:[%s1356 + $0x4a] sm:$0xff]
        %v2144 = vld [vmem:[%s1356 + $0x52] sm:$0xff]
        %v2145 = vld [vmem:[%s1356 + $0x62] sm:$0xff]
        %v2146 = vld [vmem:[%s1356 + $0x6a] sm:$0xff]
        %v2147 = vld [vmem:[%s1356 + $0x7a] sm:$0xff]
        %v2148 = vld [vmem:[%s1356 + $0x82] sm:$0xff]
        %v2149 = vld [vmem:[%s1356 + $0x92] sm:$0xff]
        %v2150 = vld [vmem:[%s1356 + $0x9a] sm:$0xff]
        %v2151 = vld [vmem:[%s1356 + $0xaa] sm:$0xff]
        %v2152 = vld [vmem:[%s1356 + $0xb2] sm:$0xff]
        %v2153 = vld [vmem:[%s1356 + $0xc2] sm:$0xff]
        %v2154 = vld [vmem:[%s1356 + $0xca] sm:$0xff]
        %v2155 = vld [vmem:[%s1356 + $0xda] sm:$0xff]
        %v2156 = vld [vmem:[%s1356 + $0xe2] sm:$0xff]
        %v2157 = vld [vmem:[%s1356 + $0xf2] sm:$0xff]
        %v2158 = vld [vmem:[%s1356 + $0xfa] sm:$0xff]
        %v2159 = vld [vmem:[%s1356 + $0x10a] sm:$0xff]
        %v2160 = vld [vmem:[%s1356 + $0x112] sm:$0xff]
        %v2161 = vld [vmem:[%s1356 + $0x122] sm:$0xff]
        %v2162 = vld [vmem:[%s1356 + $0x12a] sm:$0xff]
        %v2163 = vld [vmem:[%s1356 + $0x13a] sm:$0xff]
        %v2164 = vld [vmem:[%s1356 + $0x142] sm:$0xff]
        %v2165 = vld [vmem:[%s1356 + $0x152] sm:$0xff]
        %v2166 = vld [vmem:[%s1356 + $0x15a] sm:$0xff]
        %v2167 = vld [vmem:[%s1356 + $0x16a] sm:$0xff]
        %v2168 = vld [vmem:[%s1356 + $0x172] sm:$0xff]
        %s2169 = scalar_lea.vmem %s1, 160
        %v2170 = vld [vmem:[%s2169] sm:$0xff]
        %v2171 = vld [vmem:[%s2169 + $0x8] sm:$0xff]
        %v2172 = vld [vmem:[%s2169 + $0x10] sm:$0xff]
        %v2173 = vld [vmem:[%s2169 + $0x18] sm:$0xff]
        %v2175 = vsel %vm323, %v2137, 0
        %v2178 = vsel %vm323, %v2138, 0
        %v2181 = vsel %vm323, %v2139, 0
        %v2184 = vsel %vm323, %v2140, 0
        %v2187 = vsel %vm323, %v2141, 0
        %v2190 = vsel %vm323, %v2142, 0
        %v2193 = vsel %vm323, %v2143, 0
        %v2196 = vsel %vm323, %v2144, 0
        %v2199 = vsel %vm323, %v2145, 0
        %v2202 = vsel %vm323, %v2146, 0
        %v2205 = vsel %vm323, %v2147, 0
        %v2208 = vsel %vm323, %v2148, 0
        %v2211 = vsel %vm323, %v2149, 0
        %v2214 = vsel %vm323, %v2150, 0
        %v2217 = vsel %vm323, %v2151, 0
        %v2220 = vsel %vm323, %v2152, 0
        %v2223 = vsel %vm323, %v2153, 0
        %v2226 = vsel %vm323, %v2154, 0
        %v2229 = vsel %vm323, %v2155, 0
        %v2232 = vsel %vm323, %v2156, 0
        %v2235 = vsel %vm323, %v2157, 0
        %v2238 = vsel %vm323, %v2158, 0
        %v2241 = vsel %vm323, %v2159, 0
        %v2244 = vsel %vm323, %v2160, 0
        %v2247 = vsel %vm323, %v2161, 0
        %v2250 = vsel %vm323, %v2162, 0
        %v2253 = vsel %vm323, %v2163, 0
        %v2256 = vsel %vm323, %v2164, 0
        %v2259 = vsel %vm323, %v2165, 0
        %v2262 = vsel %vm323, %v2166, 0
        %v2265 = vsel %vm323, %v2167, 0
        %v2268 = vsel %vm323, %v2168, 0
        %2270 = vmatprep.subr.mxu0 0.0
        %2271 = vmatpush1.msra.mxu0 %v2170
        %2272 = vmatprep.subr.mxu0 0.0
        %2273 = vmatpush1.msra.mxu0 %v2171
        %2274 = vmatprep.subr.mxu0 0.0
        %2275 = vmatpush1.msra.mxu0 %v2172
        %2276 = vmatprep.subr.mxu0 0.0
        %2277 = vmatpush1.msra.mxu0 %v2173
        %2278 = vmatprep.subr.mxu0 0.0
        %2279 = vmatpush1.msra.mxu0 0.0
        %2280 = vmatprep.subr.mxu0 0.0
        %2281 = vmatpush1.msra.mxu0 0.0
        %2282 = vmatprep.subr.mxu0 0.0
        %2283 = vmatpush1.msra.mxu0 0.0
        %2284 = vmatprep.subr.mxu0 0.0
        %2285 = vmatpush1.msra.mxu0 0.0
        %2286 = vmatprep.subr.mxu0 0.0
        %2287 = vmatpush1.msra.mxu0 0.0
        %2288 = vmatprep.subr.mxu0 0.0
        %2289 = vmatpush1.msra.mxu0 0.0
        %2290 = vmatprep.subr.mxu0 0.0
        %2291 = vmatpush1.msra.mxu0 0.0
        %2292 = vmatprep.subr.mxu0 0.0
        %2293 = vmatpush1.msra.mxu0 0.0
        %2294 = vmatprep.subr.mxu0 0.0
        %2295 = vmatpush1.msra.mxu0 0.0
        %2296 = vmatprep.subr.mxu0 0.0
        %2297 = vmatpush1.msra.mxu0 0.0
        %2298 = vmatprep.subr.mxu0 0.0
        %2299 = vmatpush1.msra.mxu0 0.0
        %2300 = vmatprep.subr.mxu0 0.0
        %2301 = vmatpush1.msra.mxu0 0.0
        %2302 = vmatprep.subr.mxu0 0.0
        %2303 = vmatpush1.msra.mxu0 0.0
        %2304 = vmatprep.subr.mxu0 0.0
        %2305 = vmatpush1.msra.mxu0 0.0
        %2306 = vmatprep.subr.mxu0 0.0
        %2307 = vmatpush1.msra.mxu0 0.0
        %2308 = vmatprep.subr.mxu0 0.0
        %2309 = vmatpush1.msra.mxu0 0.0
        %2310 = vmatprep.subr.mxu0 0.0
        %2311 = vmatpush1.msra.mxu0 0.0
        %2312 = vmatprep.subr.mxu0 0.0
        %2313 = vmatpush1.msra.mxu0 0.0
        %2314 = vmatprep.subr.mxu0 0.0
        %2315 = vmatpush1.msra.mxu0 0.0
        %2316 = vmatprep.subr.mxu0 0.0
        %2317 = vmatpush1.msra.mxu0 0.0
        %2318 = vmatprep.subr.mxu0 0.0
        %2319 = vmatpush1.msra.mxu0 0.0
        %2320 = vmatprep.subr.mxu0 0.0
        %2321 = vmatpush1.msra.mxu0 0.0
        %2322 = vmatprep.subr.mxu0 0.0
        %2323 = vmatpush1.msra.mxu0 0.0
        %2324 = vmatprep.subr.mxu0 0.0
        %2325 = vmatpush1.msra.mxu0 0.0
        %2326 = vmatprep.subr.mxu0 0.0
        %2327 = vmatpush1.msra.mxu0 0.0
        %2328 = vmatprep.subr.mxu0 0.0
        %2329 = vmatpush1.msra.mxu0 0.0
        %2330 = vmatprep.subr.mxu0 0.0
        %2331 = vmatpush1.msra.mxu0 0.0
        %2332 = vmatprep.subr.mxu0 0.0
        %2333 = vmatpush1.msra.mxu0 0.0
        %2334 = vmatprep.mubr.f32.mxu0 0.0
        %2335 = vmatmul.mubr.f32.gmra.mrb[0].mxu0 %v2175
        %v2336 = vpop.f32.mrb[0].mxu0
        %v2337 = vadd.f32 0.0, %v2336
        %v2338 = vpop.f32.mrb[0].mxu0
        %2339 = vmatprep.mubr.f32.mxu0 0.0
        %2340 = vmatmul.mubr.f32.gmra.mrb[0].mxu0 %v2178
        %v2341 = vpop.f32.mrb[0].mxu0
        %v2342 = vadd.f32 0.0, %v2341
        %v2343 = vpop.f32.mrb[0].mxu0
        %2344 = vmatprep.mubr.f32.mxu0 0.0
        %2345 = vmatmul.mubr.f32.gmra.mrb[0].mxu0 %v2181
        %v2346 = vpop.f32.mrb[0].mxu0
        %v2347 = vadd.f32 0.0, %v2346
        %v2348 = vpop.f32.mrb[0].mxu0
        %2349 = vmatprep.mubr.f32.mxu0 0.0
        %2350 = vmatmul.mubr.f32.gmra.mrb[0].mxu0 %v2184
        %v2351 = vpop.f32.mrb[0].mxu0
        %v2352 = vadd.f32 0.0, %v2351
        %v2353 = vpop.f32.mrb[0].mxu0
        %2354 = vmatprep.mubr.f32.mxu0 0.0
        %2355 = vmatmul.mubr.f32.gmra.mrb[0].mxu0 %v2187
        %v2356 = vpop.f32.mrb[0].mxu0
        %v2357 = vadd.f32 0.0, %v2356
        %v2358 = vpop.f32.mrb[0].mxu0
        %2359 = vmatprep.mubr.f32.mxu0 0.0
        %2360 = vmatmul.mubr.f32.gmra.mrb[0].mxu0 %v2190
        %v2361 = vpop.f32.mrb[0].mxu0
        %v2362 = vadd.f32 0.0, %v2361
        %v2363 = vpop.f32.mrb[0].mxu0
        %2364 = vmatprep.mubr.f32.mxu0 0.0
        %2365 = vmatmul.mubr.f32.gmra.mrb[0].mxu0 %v2193
        %v2366 = vpop.f32.mrb[0].mxu0
        %v2367 = vadd.f32 0.0, %v2366
        %v2368 = vpop.f32.mrb[0].mxu0
        %2369 = vmatprep.mubr.f32.mxu0 0.0
        %2370 = vmatmul.mubr.f32.gmra.mrb[0].mxu0 %v2196
        %v2371 = vpop.f32.mrb[0].mxu0
        %v2372 = vadd.f32 0.0, %v2371
        %v2373 = vpop.f32.mrb[0].mxu0
        %2374 = vmatprep.mubr.f32.mxu0 0.0
        %2375 = vmatmul.mubr.f32.gmra.mrb[0].mxu0 %v2199
        %v2376 = vpop.f32.mrb[0].mxu0
        %v2377 = vadd.f32 0.0, %v2376
        %v2378 = vpop.f32.mrb[0].mxu0
        %2379 = vmatprep.mubr.f32.mxu0 0.0
        %2380 = vmatmul.mubr.f32.gmra.mrb[0].mxu0 %v2202
        %v2381 = vpop.f32.mrb[0].mxu0
        %v2382 = vadd.f32 0.0, %v2381
        %v2383 = vpop.f32.mrb[0].mxu0
        %2384 = vmatprep.mubr.f32.mxu0 0.0
        %2385 = vmatmul.mubr.f32.gmra.mrb[0].mxu0 %v2205
        %v2386 = vpop.f32.mrb[0].mxu0
        %v2387 = vadd.f32 0.0, %v2386
        %v2388 = vpop.f32.mrb[0].mxu0
        %2389 = vmatprep.mubr.f32.mxu0 0.0
        %2390 = vmatmul.mubr.f32.gmra.mrb[0].mxu0 %v2208
        %v2391 = vpop.f32.mrb[0].mxu0
        %v2392 = vadd.f32 0.0, %v2391
        %v2393 = vpop.f32.mrb[0].mxu0
        %2394 = vmatprep.mubr.f32.mxu0 0.0
        %2395 = vmatmul.mubr.f32.gmra.mrb[0].mxu0 %v2211
        %v2396 = vpop.f32.mrb[0].mxu0
        %v2397 = vadd.f32 0.0, %v2396
        %v2398 = vpop.f32.mrb[0].mxu0
        %2399 = vmatprep.mubr.f32.mxu0 0.0
        %2400 = vmatmul.mubr.f32.gmra.mrb[0].mxu0 %v2214
        %v2401 = vpop.f32.mrb[0].mxu0
        %v2402 = vadd.f32 0.0, %v2401
        %v2403 = vpop.f32.mrb[0].mxu0
        %2404 = vmatprep.mubr.f32.mxu0 0.0
        %2405 = vmatmul.mubr.f32.gmra.mrb[0].mxu0 %v2217
        %v2406 = vpop.f32.mrb[0].mxu0
        %v2407 = vadd.f32 0.0, %v2406
        %v2408 = vpop.f32.mrb[0].mxu0
        %2409 = vmatprep.mubr.f32.mxu0 0.0
        %2410 = vmatmul.mubr.f32.gmra.mrb[0].mxu0 %v2220
        %v2411 = vpop.f32.mrb[0].mxu0
        %v2412 = vadd.f32 0.0, %v2411
        %v2413 = vpop.f32.mrb[0].mxu0
        %2414 = vmatprep.mubr.f32.mxu0 0.0
        %2415 = vmatmul.mubr.f32.gmra.mrb[0].mxu0 %v2223
        %v2416 = vpop.f32.mrb[0].mxu0
        %v2417 = vadd.f32 0.0, %v2416
        %v2418 = vpop.f32.mrb[0].mxu0
        %2419 = vmatprep.mubr.f32.mxu0 0.0
        %2420 = vmatmul.mubr.f32.gmra.mrb[0].mxu0 %v2226
        %v2421 = vpop.f32.mrb[0].mxu0
        %v2422 = vadd.f32 0.0, %v2421
        %v2423 = vpop.f32.mrb[0].mxu0
        %2424 = vmatprep.mubr.f32.mxu0 0.0
        %2425 = vmatmul.mubr.f32.gmra.mrb[0].mxu0 %v2229
        %v2426 = vpop.f32.mrb[0].mxu0
        %v2427 = vadd.f32 0.0, %v2426
        %v2428 = vpop.f32.mrb[0].mxu0
        %2429 = vmatprep.mubr.f32.mxu0 0.0
        %2430 = vmatmul.mubr.f32.gmra.mrb[0].mxu0 %v2232
        %v2431 = vpop.f32.mrb[0].mxu0
        %v2432 = vadd.f32 0.0, %v2431
        %v2433 = vpop.f32.mrb[0].mxu0
        %2434 = vmatprep.mubr.f32.mxu0 0.0
        %2435 = vmatmul.mubr.f32.gmra.mrb[0].mxu0 %v2235
        %v2436 = vpop.f32.mrb[0].mxu0
        %v2437 = vadd.f32 0.0, %v2436
        %v2438 = vpop.f32.mrb[0].mxu0
        %2439 = vmatprep.mubr.f32.mxu0 0.0
        %2440 = vmatmul.mubr.f32.gmra.mrb[0].mxu0 %v2238
        %v2441 = vpop.f32.mrb[0].mxu0
        %v2442 = vadd.f32 0.0, %v2441
        %v2443 = vpop.f32.mrb[0].mxu0
        %2444 = vmatprep.mubr.f32.mxu0 0.0
        %2445 = vmatmul.mubr.f32.gmra.mrb[0].mxu0 %v2241
        %v2446 = vpop.f32.mrb[0].mxu0
        %v2447 = vadd.f32 0.0, %v2446
        %v2448 = vpop.f32.mrb[0].mxu0
        %2449 = vmatprep.mubr.f32.mxu0 0.0
        %2450 = vmatmul.mubr.f32.gmra.mrb[0].mxu0 %v2244
        %v2451 = vpop.f32.mrb[0].mxu0
        %v2452 = vadd.f32 0.0, %v2451
        %v2453 = vpop.f32.mrb[0].mxu0
        %2454 = vmatprep.mubr.f32.mxu0 0.0
        %2455 = vmatmul.mubr.f32.gmra.mrb[0].mxu0 %v2247
        %v2456 = vpop.f32.mrb[0].mxu0
        %v2457 = vadd.f32 0.0, %v2456
        %v2458 = vpop.f32.mrb[0].mxu0
        %2459 = vmatprep.mubr.f32.mxu0 0.0
        %2460 = vmatmul.mubr.f32.gmra.mrb[0].mxu0 %v2250
        %v2461 = vpop.f32.mrb[0].mxu0
        %v2462 = vadd.f32 0.0, %v2461
        %v2463 = vpop.f32.mrb[0].mxu0
        %2464 = vmatprep.mubr.f32.mxu0 0.0
        %2465 = vmatmul.mubr.f32.gmra.mrb[0].mxu0 %v2253
        %v2466 = vpop.f32.mrb[0].mxu0
        %v2467 = vadd.f32 0.0, %v2466
        %v2468 = vpop.f32.mrb[0].mxu0
        %2469 = vmatprep.mubr.f32.mxu0 0.0
        %2470 = vmatmul.mubr.f32.gmra.mrb[0].mxu0 %v2256
        %v2471 = vpop.f32.mrb[0].mxu0
        %v2472 = vadd.f32 0.0, %v2471
        %v2473 = vpop.f32.mrb[0].mxu0
        %2474 = vmatprep.mubr.f32.mxu0 0.0
        %2475 = vmatmul.mubr.f32.gmra.mrb[0].mxu0 %v2259
        %v2476 = vpop.f32.mrb[0].mxu0
        %v2477 = vadd.f32 0.0, %v2476
        %v2478 = vpop.f32.mrb[0].mxu0
        %2479 = vmatprep.mubr.f32.mxu0 0.0
        %2480 = vmatmul.mubr.f32.gmra.mrb[0].mxu0 %v2262
        %v2481 = vpop.f32.mrb[0].mxu0
        %v2482 = vadd.f32 0.0, %v2481
        %v2483 = vpop.f32.mrb[0].mxu0
        %2484 = vmatprep.mubr.f32.mxu0 0.0
        %2485 = vmatmul.mubr.f32.gmra.mrb[0].mxu0 %v2265
        %v2486 = vpop.f32.mrb[0].mxu0
        %v2487 = vadd.f32 0.0, %v2486
        %v2488 = vpop.f32.mrb[0].mxu0
        %2489 = vmatprep.mubr.f32.mxu0 0.0
        %2490 = vmatmul.mubr.f32.gmra.mrb[0].mxu0 %v2268
        %v2491 = vpop.f32.mrb[0].mxu0
        %v2492 = vadd.f32 0.0, %v2491
        %v2493 = vpop.f32.mrb[0].mxu0
        %2494 = vdwg.mxu0
        %v2495 = vadd.f32 %v2105, %v2337
        %v2496 = vadd.f32 %v2106, %v2342
        %v2497 = vadd.f32 %v2107, %v2347
        %v2498 = vadd.f32 %v2108, %v2352
        %v2499 = vadd.f32 %v2109, %v2357
        %v2500 = vadd.f32 %v2110, %v2362
        %v2501 = vadd.f32 %v2111, %v2367
        %v2502 = vadd.f32 %v2112, %v2372
        %v2503 = vadd.f32 %v2113, %v2377
        %v2504 = vadd.f32 %v2114, %v2382
        %v2505 = vadd.f32 %v2115, %v2387
        %v2506 = vadd.f32 %v2116, %v2392
        %v2507 = vadd.f32 %v2117, %v2397
        %v2508 = vadd.f32 %v2118, %v2402
        %v2509 = vadd.f32 %v2119, %v2407
        %v2510 = vadd.f32 %v2120, %v2412
        %v2511 = vadd.f32 %v2121, %v2417
        %v2512 = vadd.f32 %v2122, %v2422
        %v2513 = vadd.f32 %v2123, %v2427
        %v2514 = vadd.f32 %v2124, %v2432
        %v2515 = vadd.f32 %v2125, %v2437
        %v2516 = vadd.f32 %v2126, %v2442
        %v2517 = vadd.f32 %v2127, %v2447
        %v2518 = vadd.f32 %v2128, %v2452
        %v2519 = vadd.f32 %v2129, %v2457
        %v2520 = vadd.f32 %v2130, %v2462
        %v2521 = vadd.f32 %v2131, %v2467
        %v2522 = vadd.f32 %v2132, %v2472
        %v2523 = vadd.f32 %v2133, %v2477
        %v2524 = vadd.f32 %v2134, %v2482
        %v2525 = vadd.f32 %v2135, %v2487
        %v2526 = vadd.f32 %v2136, %v2492
        %s2527 = scalar_lea.vmem %s249, 48
        %v2528 = vld [vmem:[%s2527] sm:$0xff]
        %v2529 = vld [vmem:[%s2527 + $0x8] sm:$0xff]
        %v2530 = vld [vmem:[%s2527 + $0x18] sm:$0xff]
        %v2531 = vld [vmem:[%s2527 + $0x20] sm:$0xff]
        %v2532 = vld [vmem:[%s2527 + $0x30] sm:$0xff]
        %v2533 = vld [vmem:[%s2527 + $0x38] sm:$0xff]
        %v2534 = vld [vmem:[%s2527 + $0x48] sm:$0xff]
        %v2535 = vld [vmem:[%s2527 + $0x50] sm:$0xff]
        %v2536 = vld [vmem:[%s2527 + $0x60] sm:$0xff]
        %v2537 = vld [vmem:[%s2527 + $0x68] sm:$0xff]
        %v2538 = vld [vmem:[%s2527 + $0x78] sm:$0xff]
        %v2539 = vld [vmem:[%s2527 + $0x80] sm:$0xff]
        %v2540 = vld [vmem:[%s2527 + $0x90] sm:$0xff]
        %v2541 = vld [vmem:[%s2527 + $0x98] sm:$0xff]
        %v2542 = vld [vmem:[%s2527 + $0xa8] sm:$0xff]
        %v2543 = vld [vmem:[%s2527 + $0xb0] sm:$0xff]
        %v2544 = vld [vmem:[%s2527 + $0xc0] sm:$0xff]
        %v2545 = vld [vmem:[%s2527 + $0xc8] sm:$0xff]
        %v2546 = vld [vmem:[%s2527 + $0xd8] sm:$0xff]
        %v2547 = vld [vmem:[%s2527 + $0xe0] sm:$0xff]
        %v2548 = vld [vmem:[%s2527 + $0xf0] sm:$0xff]
        %v2549 = vld [vmem:[%s2527 + $0xf8] sm:$0xff]
        %v2550 = vld [vmem:[%s2527 + $0x108] sm:$0xff]
        %v2551 = vld [vmem:[%s2527 + $0x110] sm:$0xff]
        %v2552 = vld [vmem:[%s2527 + $0x120] sm:$0xff]
        %v2553 = vld [vmem:[%s2527 + $0x128] sm:$0xff]
        %v2554 = vld [vmem:[%s2527 + $0x138] sm:$0xff]
        %v2555 = vld [vmem:[%s2527 + $0x140] sm:$0xff]
        %v2556 = vld [vmem:[%s2527 + $0x150] sm:$0xff]
        %v2557 = vld [vmem:[%s2527 + $0x158] sm:$0xff]
        %v2558 = vld [vmem:[%s2527 + $0x168] sm:$0xff]
        %v2559 = vld [vmem:[%s2527 + $0x170] sm:$0xff]
        %s2560 = scalar_lea.vmem %s1, 192
        %v2561 = vld [vmem:[%s2560] sm:$0xff]
        %v2562 = vld [vmem:[%s2560 + $0x8] sm:$0xff]
        %v2563 = vld [vmem:[%s2560 + $0x10] sm:$0xff]
        %v2564 = vld [vmem:[%s2560 + $0x18] sm:$0xff]
        %v2566 = vsel %vm323, %v2528, 0
        %v2569 = vsel %vm323, %v2529, 0
        %v2572 = vsel %vm323, %v2530, 0
        %v2575 = vsel %vm323, %v2531, 0
        %v2578 = vsel %vm323, %v2532, 0
        %v2581 = vsel %vm323, %v2533, 0
        %v2584 = vsel %vm323, %v2534, 0
        %v2587 = vsel %vm323, %v2535, 0
        %v2590 = vsel %vm323, %v2536, 0
        %v2593 = vsel %vm323, %v2537, 0
        %v2596 = vsel %vm323, %v2538, 0
        %v2599 = vsel %vm323, %v2539, 0
        %v2602 = vsel %vm323, %v2540, 0
        %v2605 = vsel %vm323, %v2541, 0
        %v2608 = vsel %vm323, %v2542, 0
        %v2611 = vsel %vm323, %v2543, 0
        %v2614 = vsel %vm323, %v2544, 0
        %v2617 = vsel %vm323, %v2545, 0
        %v2620 = vsel %vm323, %v2546, 0
        %v2623 = vsel %vm323, %v2547, 0
        %v2626 = vsel %vm323, %v2548, 0
        %v2629 = vsel %vm323, %v2549, 0
        %v2632 = vsel %vm323, %v2550, 0
        %v2635 = vsel %vm323, %v2551, 0
        %v2638 = vsel %vm323, %v2552, 0
        %v2641 = vsel %vm323, %v2553, 0
        %v2644 = vsel %vm323, %v2554, 0
        %v2647 = vsel %vm323, %v2555, 0
        %v2650 = vsel %vm323, %v2556, 0
        %v2653 = vsel %vm323, %v2557, 0
        %v2656 = vsel %vm323, %v2558, 0
        %v2659 = vsel %vm323, %v2559, 0
        %2661 = vmatprep.subr.mxu0 0.0
        %2662 = vmatpush1.msra.mxu0 %v2561
        %2663 = vmatprep.subr.mxu0 0.0
        %2664 = vmatpush1.msra.mxu0 %v2562
        %2665 = vmatprep.subr.mxu0 0.0
        %2666 = vmatpush1.msra.mxu0 %v2563
        %2667 = vmatprep.subr.mxu0 0.0
        %2668 = vmatpush1.msra.mxu0 %v2564
        %2669 = vmatprep.subr.mxu0 0.0
        %2670 = vmatpush1.msra.mxu0 0.0
        %2671 = vmatprep.subr.mxu0 0.0
        %2672 = vmatpush1.msra.mxu0 0.0
        %2673 = vmatprep.subr.mxu0 0.0
        %2674 = vmatpush1.msra.mxu0 0.0
        %2675 = vmatprep.subr.mxu0 0.0
        %2676 = vmatpush1.msra.mxu0 0.0
        %2677 = vmatprep.subr.mxu0 0.0
        %2678 = vmatpush1.msra.mxu0 0.0
        %2679 = vmatprep.subr.mxu0 0.0
        %2680 = vmatpush1.msra.mxu0 0.0
        %2681 = vmatprep.subr.mxu0 0.0
        %2682 = vmatpush1.msra.mxu0 0.0
        %2683 = vmatprep.subr.mxu0 0.0
        %2684 = vmatpush1.msra.mxu0 0.0
        %2685 = vmatprep.subr.mxu0 0.0
        %2686 = vmatpush1.msra.mxu0 0.0
        %2687 = vmatprep.subr.mxu0 0.0
        %2688 = vmatpush1.msra.mxu0 0.0
        %2689 = vmatprep.subr.mxu0 0.0
        %2690 = vmatpush1.msra.mxu0 0.0
        %2691 = vmatprep.subr.mxu0 0.0
        %2692 = vmatpush1.msra.mxu0 0.0
        %2693 = vmatprep.subr.mxu0 0.0
        %2694 = vmatpush1.msra.mxu0 0.0
        %2695 = vmatprep.subr.mxu0 0.0
        %2696 = vmatpush1.msra.mxu0 0.0
        %2697 = vmatprep.subr.mxu0 0.0
        %2698 = vmatpush1.msra.mxu0 0.0
        %2699 = vmatprep.subr.mxu0 0.0
        %2700 = vmatpush1.msra.mxu0 0.0
        %2701 = vmatprep.subr.mxu0 0.0
        %2702 = vmatpush1.msra.mxu0 0.0
        %2703 = vmatprep.subr.mxu0 0.0
        %2704 = vmatpush1.msra.mxu0 0.0
        %2705 = vmatprep.subr.mxu0 0.0
        %2706 = vmatpush1.msra.mxu0 0.0
        %2707 = vmatprep.subr.mxu0 0.0
        %2708 = vmatpush1.msra.mxu0 0.0
        %2709 = vmatprep.subr.mxu0 0.0
        %2710 = vmatpush1.msra.mxu0 0.0
        %2711 = vmatprep.subr.mxu0 0.0
        %2712 = vmatpush1.msra.mxu0 0.0
        %2713 = vmatprep.subr.mxu0 0.0
        %2714 = vmatpush1.msra.mxu0 0.0
        %2715 = vmatprep.subr.mxu0 0.0
        %2716 = vmatpush1.msra.mxu0 0.0
        %2717 = vmatprep.subr.mxu0 0.0
        %2718 = vmatpush1.msra.mxu0 0.0
        %2719 = vmatprep.subr.mxu0 0.0
        %2720 = vmatpush1.msra.mxu0 0.0
        %2721 = vmatprep.subr.mxu0 0.0
        %2722 = vmatpush1.msra.mxu0 0.0
        %2723 = vmatprep.subr.mxu0 0.0
        %2724 = vmatpush1.msra.mxu0 0.0
        %2725 = vmatprep.mubr.f32.mxu0 0.0
        %2726 = vmatmul.mubr.f32.gmra.mrb[0].mxu0 %v2566
        %v2727 = vpop.f32.mrb[0].mxu0
        %v2728 = vadd.f32 0.0, %v2727
        %v2729 = vpop.f32.mrb[0].mxu0
        %2730 = vmatprep.mubr.f32.mxu0 0.0
        %2731 = vmatmul.mubr.f32.gmra.mrb[0].mxu0 %v2569
        %v2732 = vpop.f32.mrb[0].mxu0
        %v2733 = vadd.f32 0.0, %v2732
        %v2734 = vpop.f32.mrb[0].mxu0
        %2735 = vmatprep.mubr.f32.mxu0 0.0
        %2736 = vmatmul.mubr.f32.gmra.mrb[0].mxu0 %v2572
        %v2737 = vpop.f32.mrb[0].mxu0
        %v2738 = vadd.f32 0.0, %v2737
        %v2739 = vpop.f32.mrb[0].mxu0
        %2740 = vmatprep.mubr.f32.mxu0 0.0
        %2741 = vmatmul.mubr.f32.gmra.mrb[0].mxu0 %v2575
        %v2742 = vpop.f32.mrb[0].mxu0
        %v2743 = vadd.f32 0.0, %v2742
        %v2744 = vpop.f32.mrb[0].mxu0
        %2745 = vmatprep.mubr.f32.mxu0 0.0
        %2746 = vmatmul.mubr.f32.gmra.mrb[0].mxu0 %v2578
        %v2747 = vpop.f32.mrb[0].mxu0
        %v2748 = vadd.f32 0.0, %v2747
        %v2749 = vpop.f32.mrb[0].mxu0
        %2750 = vmatprep.mubr.f32.mxu0 0.0
        %2751 = vmatmul.mubr.f32.gmra.mrb[0].mxu0 %v2581
        %v2752 = vpop.f32.mrb[0].mxu0
        %v2753 = vadd.f32 0.0, %v2752
        %v2754 = vpop.f32.mrb[0].mxu0
        %2755 = vmatprep.mubr.f32.mxu0 0.0
        %2756 = vmatmul.mubr.f32.gmra.mrb[0].mxu0 %v2584
        %v2757 = vpop.f32.mrb[0].mxu0
        %v2758 = vadd.f32 0.0, %v2757
        %v2759 = vpop.f32.mrb[0].mxu0
        %2760 = vmatprep.mubr.f32.mxu0 0.0
        %2761 = vmatmul.mubr.f32.gmra.mrb[0].mxu0 %v2587
        %v2762 = vpop.f32.mrb[0].mxu0
        %v2763 = vadd.f32 0.0, %v2762
        %v2764 = vpop.f32.mrb[0].mxu0
        %2765 = vmatprep.mubr.f32.mxu0 0.0
        %2766 = vmatmul.mubr.f32.gmra.mrb[0].mxu0 %v2590
        %v2767 = vpop.f32.mrb[0].mxu0
        %v2768 = vadd.f32 0.0, %v2767
        %v2769 = vpop.f32.mrb[0].mxu0
        %2770 = vmatprep.mubr.f32.mxu0 0.0
        %2771 = vmatmul.mubr.f32.gmra.mrb[0].mxu0 %v2593
        %v2772 = vpop.f32.mrb[0].mxu0
        %v2773 = vadd.f32 0.0, %v2772
        %v2774 = vpop.f32.mrb[0].mxu0
        %2775 = vmatprep.mubr.f32.mxu0 0.0
        %2776 = vmatmul.mubr.f32.gmra.mrb[0].mxu0 %v2596
        %v2777 = vpop.f32.mrb[0].mxu0
        %v2778 = vadd.f32 0.0, %v2777
        %v2779 = vpop.f32.mrb[0].mxu0
        %2780 = vmatprep.mubr.f32.mxu0 0.0
        %2781 = vmatmul.mubr.f32.gmra.mrb[0].mxu0 %v2599
        %v2782 = vpop.f32.mrb[0].mxu0
        %v2783 = vadd.f32 0.0, %v2782
        %v2784 = vpop.f32.mrb[0].mxu0
        %2785 = vmatprep.mubr.f32.mxu0 0.0
        %2786 = vmatmul.mubr.f32.gmra.mrb[0].mxu0 %v2602
        %v2787 = vpop.f32.mrb[0].mxu0
        %v2788 = vadd.f32 0.0, %v2787
        %v2789 = vpop.f32.mrb[0].mxu0
        %2790 = vmatprep.mubr.f32.mxu0 0.0
        %2791 = vmatmul.mubr.f32.gmra.mrb[0].mxu0 %v2605
        %v2792 = vpop.f32.mrb[0].mxu0
        %v2793 = vadd.f32 0.0, %v2792
        %v2794 = vpop.f32.mrb[0].mxu0
        %2795 = vmatprep.mubr.f32.mxu0 0.0
        %2796 = vmatmul.mubr.f32.gmra.mrb[0].mxu0 %v2608
        %v2797 = vpop.f32.mrb[0].mxu0
        %v2798 = vadd.f32 0.0, %v2797
        %v2799 = vpop.f32.mrb[0].mxu0
        %2800 = vmatprep.mubr.f32.mxu0 0.0
        %2801 = vmatmul.mubr.f32.gmra.mrb[0].mxu0 %v2611
        %v2802 = vpop.f32.mrb[0].mxu0
        %v2803 = vadd.f32 0.0, %v2802
        %v2804 = vpop.f32.mrb[0].mxu0
        %2805 = vmatprep.mubr.f32.mxu0 0.0
        %2806 = vmatmul.mubr.f32.gmra.mrb[0].mxu0 %v2614
        %v2807 = vpop.f32.mrb[0].mxu0
        %v2808 = vadd.f32 0.0, %v2807
        %v2809 = vpop.f32.mrb[0].mxu0
        %2810 = vmatprep.mubr.f32.mxu0 0.0
        %2811 = vmatmul.mubr.f32.gmra.mrb[0].mxu0 %v2617
        %v2812 = vpop.f32.mrb[0].mxu0
        %v2813 = vadd.f32 0.0, %v2812
        %v2814 = vpop.f32.mrb[0].mxu0
        %2815 = vmatprep.mubr.f32.mxu0 0.0
        %2816 = vmatmul.mubr.f32.gmra.mrb[0].mxu0 %v2620
        %v2817 = vpop.f32.mrb[0].mxu0
        %v2818 = vadd.f32 0.0, %v2817
        %v2819 = vpop.f32.mrb[0].mxu0
        %2820 = vmatprep.mubr.f32.mxu0 0.0
        %2821 = vmatmul.mubr.f32.gmra.mrb[0].mxu0 %v2623
        %v2822 = vpop.f32.mrb[0].mxu0
        %v2823 = vadd.f32 0.0, %v2822
        %v2824 = vpop.f32.mrb[0].mxu0
        %2825 = vmatprep.mubr.f32.mxu0 0.0
        %2826 = vmatmul.mubr.f32.gmra.mrb[0].mxu0 %v2626
        %v2827 = vpop.f32.mrb[0].mxu0
        %v2828 = vadd.f32 0.0, %v2827
        %v2829 = vpop.f32.mrb[0].mxu0
        %2830 = vmatprep.mubr.f32.mxu0 0.0
        %2831 = vmatmul.mubr.f32.gmra.mrb[0].mxu0 %v2629
        %v2832 = vpop.f32.mrb[0].mxu0
        %v2833 = vadd.f32 0.0, %v2832
        %v2834 = vpop.f32.mrb[0].mxu0
        %2835 = vmatprep.mubr.f32.mxu0 0.0
        %2836 = vmatmul.mubr.f32.gmra.mrb[0].mxu0 %v2632
        %v2837 = vpop.f32.mrb[0].mxu0
        %v2838 = vadd.f32 0.0, %v2837
        %v2839 = vpop.f32.mrb[0].mxu0
        %2840 = vmatprep.mubr.f32.mxu0 0.0
        %2841 = vmatmul.mubr.f32.gmra.mrb[0].mxu0 %v2635
        %v2842 = vpop.f32.mrb[0].mxu0
        %v2843 = vadd.f32 0.0, %v2842
        %v2844 = vpop.f32.mrb[0].mxu0
        %2845 = vmatprep.mubr.f32.mxu0 0.0
        %2846 = vmatmul.mubr.f32.gmra.mrb[0].mxu0 %v2638
        %v2847 = vpop.f32.mrb[0].mxu0
        %v2848 = vadd.f32 0.0, %v2847
        %v2849 = vpop.f32.mrb[0].mxu0
        %2850 = vmatprep.mubr.f32.mxu0 0.0
        %2851 = vmatmul.mubr.f32.gmra.mrb[0].mxu0 %v2641
        %v2852 = vpop.f32.mrb[0].mxu0
        %v2853 = vadd.f32 0.0, %v2852
        %v2854 = vpop.f32.mrb[0].mxu0
        %2855 = vmatprep.mubr.f32.mxu0 0.0
        %2856 = vmatmul.mubr.f32.gmra.mrb[0].mxu0 %v2644
        %v2857 = vpop.f32.mrb[0].mxu0
        %v2858 = vadd.f32 0.0, %v2857
        %v2859 = vpop.f32.mrb[0].mxu0
        %2860 = vmatprep.mubr.f32.mxu0 0.0
        %2861 = vmatmul.mubr.f32.gmra.mrb[0].mxu0 %v2647
        %v2862 = vpop.f32.mrb[0].mxu0
        %v2863 = vadd.f32 0.0, %v2862
        %v2864 = vpop.f32.mrb[0].mxu0
        %2865 = vmatprep.mubr.f32.mxu0 0.0
        %2866 = vmatmul.mubr.f32.gmra.mrb[0].mxu0 %v2650
        %v2867 = vpop.f32.mrb[0].mxu0
        %v2868 = vadd.f32 0.0, %v2867
        %v2869 = vpop.f32.mrb[0].mxu0
        %2870 = vmatprep.mubr.f32.mxu0 0.0
        %2871 = vmatmul.mubr.f32.gmra.mrb[0].mxu0 %v2653
        %v2872 = vpop.f32.mrb[0].mxu0
        %v2873 = vadd.f32 0.0, %v2872
        %v2874 = vpop.f32.mrb[0].mxu0
        %2875 = vmatprep.mubr.f32.mxu0 0.0
        %2876 = vmatmul.mubr.f32.gmra.mrb[0].mxu0 %v2656
        %v2877 = vpop.f32.mrb[0].mxu0
        %v2878 = vadd.f32 0.0, %v2877
        %v2879 = vpop.f32.mrb[0].mxu0
        %2880 = vmatprep.mubr.f32.mxu0 0.0
        %2881 = vmatmul.mubr.f32.gmra.mrb[0].mxu0 %v2659
        %v2882 = vpop.f32.mrb[0].mxu0
        %v2883 = vadd.f32 0.0, %v2882
        %v2884 = vpop.f32.mrb[0].mxu0
        %2885 = vdwg.mxu0
        %v2886 = vadd.f32 %v2495, %v2728
        %v2887 = vadd.f32 %v2496, %v2733
        %v2888 = vadd.f32 %v2497, %v2738
        %v2889 = vadd.f32 %v2498, %v2743
        %v2890 = vadd.f32 %v2499, %v2748
        %v2891 = vadd.f32 %v2500, %v2753
        %v2892 = vadd.f32 %v2501, %v2758
        %v2893 = vadd.f32 %v2502, %v2763
        %v2894 = vadd.f32 %v2503, %v2768
        %v2895 = vadd.f32 %v2504, %v2773
        %v2896 = vadd.f32 %v2505, %v2778
        %v2897 = vadd.f32 %v2506, %v2783
        %v2898 = vadd.f32 %v2507, %v2788
        %v2899 = vadd.f32 %v2508, %v2793
        %v2900 = vadd.f32 %v2509, %v2798
        %v2901 = vadd.f32 %v2510, %v2803
        %v2902 = vadd.f32 %v2511, %v2808
        %v2903 = vadd.f32 %v2512, %v2813
        %v2904 = vadd.f32 %v2513, %v2818
        %v2905 = vadd.f32 %v2514, %v2823
        %v2906 = vadd.f32 %v2515, %v2828
        %v2907 = vadd.f32 %v2516, %v2833
        %v2908 = vadd.f32 %v2517, %v2838
        %v2909 = vadd.f32 %v2518, %v2843
        %v2910 = vadd.f32 %v2519, %v2848
        %v2911 = vadd.f32 %v2520, %v2853
        %v2912 = vadd.f32 %v2521, %v2858
        %v2913 = vadd.f32 %v2522, %v2863
        %v2914 = vadd.f32 %v2523, %v2868
        %v2915 = vadd.f32 %v2524, %v2873
        %v2916 = vadd.f32 %v2525, %v2878
        %v2917 = vadd.f32 %v2526, %v2883
        %v2918 = vld [vmem:[%s2527 + $0x1] sm:$0xff]
        %v2919 = vld [vmem:[%s2527 + $0x9] sm:$0xff]
        %v2920 = vld [vmem:[%s2527 + $0x19] sm:$0xff]
        %v2921 = vld [vmem:[%s2527 + $0x21] sm:$0xff]
        %v2922 = vld [vmem:[%s2527 + $0x31] sm:$0xff]
        %v2923 = vld [vmem:[%s2527 + $0x39] sm:$0xff]
        %v2924 = vld [vmem:[%s2527 + $0x49] sm:$0xff]
        %v2925 = vld [vmem:[%s2527 + $0x51] sm:$0xff]
        %v2926 = vld [vmem:[%s2527 + $0x61] sm:$0xff]
        %v2927 = vld [vmem:[%s2527 + $0x69] sm:$0xff]
        %v2928 = vld [vmem:[%s2527 + $0x79] sm:$0xff]
        %v2929 = vld [vmem:[%s2527 + $0x81] sm:$0xff]
        %v2930 = vld [vmem:[%s2527 + $0x91] sm:$0xff]
        %v2931 = vld [vmem:[%s2527 + $0x99] sm:$0xff]
        %v2932 = vld [vmem:[%s2527 + $0xa9] sm:$0xff]
        %v2933 = vld [vmem:[%s2527 + $0xb1] sm:$0xff]
        %v2934 = vld [vmem:[%s2527 + $0xc1] sm:$0xff]
        %v2935 = vld [vmem:[%s2527 + $0xc9] sm:$0xff]
        %v2936 = vld [vmem:[%s2527 + $0xd9] sm:$0xff]
        %v2937 = vld [vmem:[%s2527 + $0xe1] sm:$0xff]
        %v2938 = vld [vmem:[%s2527 + $0xf1] sm:$0xff]
        %v2939 = vld [vmem:[%s2527 + $0xf9] sm:$0xff]
        %v2940 = vld [vmem:[%s2527 + $0x109] sm:$0xff]
        %v2941 = vld [vmem:[%s2527 + $0x111] sm:$0xff]
        %v2942 = vld [vmem:[%s2527 + $0x121] sm:$0xff]
        %v2943 = vld [vmem:[%s2527 + $0x129] sm:$0xff]
        %v2944 = vld [vmem:[%s2527 + $0x139] sm:$0xff]
        %v2945 = vld [vmem:[%s2527 + $0x141] sm:$0xff]
        %v2946 = vld [vmem:[%s2527 + $0x151] sm:$0xff]
        %v2947 = vld [vmem:[%s2527 + $0x159] sm:$0xff]
        %v2948 = vld [vmem:[%s2527 + $0x169] sm:$0xff]
        %v2949 = vld [vmem:[%s2527 + $0x171] sm:$0xff]
        %s2950 = scalar_lea.vmem %s1, 224
        %v2951 = vld [vmem:[%s2950] sm:$0xff]
        %v2952 = vld [vmem:[%s2950 + $0x8] sm:$0xff]
        %v2953 = vld [vmem:[%s2950 + $0x10] sm:$0xff]
        %v2954 = vld [vmem:[%s2950 + $0x18] sm:$0xff]
        %v2956 = vsel %vm323, %v2918, 0
        %v2959 = vsel %vm323, %v2919, 0
        %v2962 = vsel %vm323, %v2920, 0
        %v2965 = vsel %vm323, %v2921, 0
        %v2968 = vsel %vm323, %v2922, 0
        %v2971 = vsel %vm323, %v2923, 0
        %v2974 = vsel %vm323, %v2924, 0
        %v2977 = vsel %vm323, %v2925, 0
        %v2980 = vsel %vm323, %v2926, 0
        %v2983 = vsel %vm323, %v2927, 0
        %v2986 = vsel %vm323, %v2928, 0
        %v2989 = vsel %vm323, %v2929, 0
        %v2992 = vsel %vm323, %v2930, 0
        %v2995 = vsel %vm323, %v2931, 0
        %v2998 = vsel %vm323, %v2932, 0
        %v3001 = vsel %vm323, %v2933, 0
        %v3004 = vsel %vm323, %v2934, 0
        %v3007 = vsel %vm323, %v2935, 0
        %v3010 = vsel %vm323, %v2936, 0
        %v3013 = vsel %vm323, %v2937, 0
        %v3016 = vsel %vm323, %v2938, 0
        %v3019 = vsel %vm323, %v2939, 0
        %v3022 = vsel %vm323, %v2940, 0
        %v3025 = vsel %vm323, %v2941, 0
        %v3028 = vsel %vm323, %v2942, 0
        %v3031 = vsel %vm323, %v2943, 0
        %v3034 = vsel %vm323, %v2944, 0
        %v3037 = vsel %vm323, %v2945, 0
        %v3040 = vsel %vm323, %v2946, 0
        %v3043 = vsel %vm323, %v2947, 0
        %v3046 = vsel %vm323, %v2948, 0
        %v3049 = vsel %vm323, %v2949, 0
        %3051 = vmatprep.subr.mxu0 0.0
        %3052 = vmatpush1.msra.mxu0 %v2951
        %3053 = vmatprep.subr.mxu0 0.0
        %3054 = vmatpush1.msra.mxu0 %v2952
        %3055 = vmatprep.subr.mxu0 0.0
        %3056 = vmatpush1.msra.mxu0 %v2953
        %3057 = vmatprep.subr.mxu0 0.0
        %3058 = vmatpush1.msra.mxu0 %v2954
        %3059 = vmatprep.subr.mxu0 0.0
        %3060 = vmatpush1.msra.mxu0 0.0
        %3061 = vmatprep.subr.mxu0 0.0
        %3062 = vmatpush1.msra.mxu0 0.0
        %3063 = vmatprep.subr.mxu0 0.0
        %3064 = vmatpush1.msra.mxu0 0.0
        %3065 = vmatprep.subr.mxu0 0.0
        %3066 = vmatpush1.msra.mxu0 0.0
        %3067 = vmatprep.subr.mxu0 0.0
        %3068 = vmatpush1.msra.mxu0 0.0
        %3069 = vmatprep.subr.mxu0 0.0
        %3070 = vmatpush1.msra.mxu0 0.0
        %3071 = vmatprep.subr.mxu0 0.0
        %3072 = vmatpush1.msra.mxu0 0.0
        %3073 = vmatprep.subr.mxu0 0.0
        %3074 = vmatpush1.msra.mxu0 0.0
        %3075 = vmatprep.subr.mxu0 0.0
        %3076 = vmatpush1.msra.mxu0 0.0
        %3077 = vmatprep.subr.mxu0 0.0
        %3078 = vmatpush1.msra.mxu0 0.0
        %3079 = vmatprep.subr.mxu0 0.0
        %3080 = vmatpush1.msra.mxu0 0.0
        %3081 = vmatprep.subr.mxu0 0.0
        %3082 = vmatpush1.msra.mxu0 0.0
        %3083 = vmatprep.subr.mxu0 0.0
        %3084 = vmatpush1.msra.mxu0 0.0
        %3085 = vmatprep.subr.mxu0 0.0
        %3086 = vmatpush1.msra.mxu0 0.0
        %3087 = vmatprep.subr.mxu0 0.0
        %3088 = vmatpush1.msra.mxu0 0.0
        %3089 = vmatprep.subr.mxu0 0.0
        %3090 = vmatpush1.msra.mxu0 0.0
        %3091 = vmatprep.subr.mxu0 0.0
        %3092 = vmatpush1.msra.mxu0 0.0
        %3093 = vmatprep.subr.mxu0 0.0
        %3094 = vmatpush1.msra.mxu0 0.0
        %3095 = vmatprep.subr.mxu0 0.0
        %3096 = vmatpush1.msra.mxu0 0.0
        %3097 = vmatprep.subr.mxu0 0.0
        %3098 = vmatpush1.msra.mxu0 0.0
        %3099 = vmatprep.subr.mxu0 0.0
        %3100 = vmatpush1.msra.mxu0 0.0
        %3101 = vmatprep.subr.mxu0 0.0
        %3102 = vmatpush1.msra.mxu0 0.0
        %3103 = vmatprep.subr.mxu0 0.0
        %3104 = vmatpush1.msra.mxu0 0.0
        %3105 = vmatprep.subr.mxu0 0.0
        %3106 = vmatpush1.msra.mxu0 0.0
        %3107 = vmatprep.subr.mxu0 0.0
        %3108 = vmatpush1.msra.mxu0 0.0
        %3109 = vmatprep.subr.mxu0 0.0
        %3110 = vmatpush1.msra.mxu0 0.0
        %3111 = vmatprep.subr.mxu0 0.0
        %3112 = vmatpush1.msra.mxu0 0.0
        %3113 = vmatprep.subr.mxu0 0.0
        %3114 = vmatpush1.msra.mxu0 0.0
        %3115 = vmatprep.mubr.f32.mxu0 0.0
        %3116 = vmatmul.mubr.f32.gmra.mrb[0].mxu0 %v2956
        %v3117 = vpop.f32.mrb[0].mxu0
        %v3118 = vadd.f32 0.0, %v3117
        %v3119 = vpop.f32.mrb[0].mxu0
        %3120 = vmatprep.mubr.f32.mxu0 0.0
        %3121 = vmatmul.mubr.f32.gmra.mrb[0].mxu0 %v2959
        %v3122 = vpop.f32.mrb[0].mxu0
        %v3123 = vadd.f32 0.0, %v3122
        %v3124 = vpop.f32.mrb[0].mxu0
        %3125 = vmatprep.mubr.f32.mxu0 0.0
        %3126 = vmatmul.mubr.f32.gmra.mrb[0].mxu0 %v2962
        %v3127 = vpop.f32.mrb[0].mxu0
        %v3128 = vadd.f32 0.0, %v3127
        %v3129 = vpop.f32.mrb[0].mxu0
        %3130 = vmatprep.mubr.f32.mxu0 0.0
        %3131 = vmatmul.mubr.f32.gmra.mrb[0].mxu0 %v2965
        %v3132 = vpop.f32.mrb[0].mxu0
        %v3133 = vadd.f32 0.0, %v3132
        %v3134 = vpop.f32.mrb[0].mxu0
        %3135 = vmatprep.mubr.f32.mxu0 0.0
        %3136 = vmatmul.mubr.f32.gmra.mrb[0].mxu0 %v2968
        %v3137 = vpop.f32.mrb[0].mxu0
        %v3138 = vadd.f32 0.0, %v3137
        %v3139 = vpop.f32.mrb[0].mxu0
        %3140 = vmatprep.mubr.f32.mxu0 0.0
        %3141 = vmatmul.mubr.f32.gmra.mrb[0].mxu0 %v2971
        %v3142 = vpop.f32.mrb[0].mxu0
        %v3143 = vadd.f32 0.0, %v3142
        %v3144 = vpop.f32.mrb[0].mxu0
        %3145 = vmatprep.mubr.f32.mxu0 0.0
        %3146 = vmatmul.mubr.f32.gmra.mrb[0].mxu0 %v2974
        %v3147 = vpop.f32.mrb[0].mxu0
        %v3148 = vadd.f32 0.0, %v3147
        %v3149 = vpop.f32.mrb[0].mxu0
        %3150 = vmatprep.mubr.f32.mxu0 0.0
        %3151 = vmatmul.mubr.f32.gmra.mrb[0].mxu0 %v2977
        %v3152 = vpop.f32.mrb[0].mxu0
        %v3153 = vadd.f32 0.0, %v3152
        %v3154 = vpop.f32.mrb[0].mxu0
        %3155 = vmatprep.mubr.f32.mxu0 0.0
        %3156 = vmatmul.mubr.f32.gmra.mrb[0].mxu0 %v2980
        %v3157 = vpop.f32.mrb[0].mxu0
        %v3158 = vadd.f32 0.0, %v3157
        %v3159 = vpop.f32.mrb[0].mxu0
        %3160 = vmatprep.mubr.f32.mxu0 0.0
        %3161 = vmatmul.mubr.f32.gmra.mrb[0].mxu0 %v2983
        %v3162 = vpop.f32.mrb[0].mxu0
        %v3163 = vadd.f32 0.0, %v3162
        %v3164 = vpop.f32.mrb[0].mxu0
        %3165 = vmatprep.mubr.f32.mxu0 0.0
        %3166 = vmatmul.mubr.f32.gmra.mrb[0].mxu0 %v2986
        %v3167 = vpop.f32.mrb[0].mxu0
        %v3168 = vadd.f32 0.0, %v3167
        %v3169 = vpop.f32.mrb[0].mxu0
        %3170 = vmatprep.mubr.f32.mxu0 0.0
        %3171 = vmatmul.mubr.f32.gmra.mrb[0].mxu0 %v2989
        %v3172 = vpop.f32.mrb[0].mxu0
        %v3173 = vadd.f32 0.0, %v3172
        %v3174 = vpop.f32.mrb[0].mxu0
        %3175 = vmatprep.mubr.f32.mxu0 0.0
        %3176 = vmatmul.mubr.f32.gmra.mrb[0].mxu0 %v2992
        %v3177 = vpop.f32.mrb[0].mxu0
        %v3178 = vadd.f32 0.0, %v3177
        %v3179 = vpop.f32.mrb[0].mxu0
        %3180 = vmatprep.mubr.f32.mxu0 0.0
        %3181 = vmatmul.mubr.f32.gmra.mrb[0].mxu0 %v2995
        %v3182 = vpop.f32.mrb[0].mxu0
        %v3183 = vadd.f32 0.0, %v3182
        %v3184 = vpop.f32.mrb[0].mxu0
        %3185 = vmatprep.mubr.f32.mxu0 0.0
        %3186 = vmatmul.mubr.f32.gmra.mrb[0].mxu0 %v2998
        %v3187 = vpop.f32.mrb[0].mxu0
        %v3188 = vadd.f32 0.0, %v3187
        %v3189 = vpop.f32.mrb[0].mxu0
        %3190 = vmatprep.mubr.f32.mxu0 0.0
        %3191 = vmatmul.mubr.f32.gmra.mrb[0].mxu0 %v3001
        %v3192 = vpop.f32.mrb[0].mxu0
        %v3193 = vadd.f32 0.0, %v3192
        %v3194 = vpop.f32.mrb[0].mxu0
        %3195 = vmatprep.mubr.f32.mxu0 0.0
        %3196 = vmatmul.mubr.f32.gmra.mrb[0].mxu0 %v3004
        %v3197 = vpop.f32.mrb[0].mxu0
        %v3198 = vadd.f32 0.0, %v3197
        %v3199 = vpop.f32.mrb[0].mxu0
        %3200 = vmatprep.mubr.f32.mxu0 0.0
        %3201 = vmatmul.mubr.f32.gmra.mrb[0].mxu0 %v3007
        %v3202 = vpop.f32.mrb[0].mxu0
        %v3203 = vadd.f32 0.0, %v3202
        %v3204 = vpop.f32.mrb[0].mxu0
        %3205 = vmatprep.mubr.f32.mxu0 0.0
        %3206 = vmatmul.mubr.f32.gmra.mrb[0].mxu0 %v3010
        %v3207 = vpop.f32.mrb[0].mxu0
        %v3208 = vadd.f32 0.0, %v3207
        %v3209 = vpop.f32.mrb[0].mxu0
        %3210 = vmatprep.mubr.f32.mxu0 0.0
        %3211 = vmatmul.mubr.f32.gmra.mrb[0].mxu0 %v3013
        %v3212 = vpop.f32.mrb[0].mxu0
        %v3213 = vadd.f32 0.0, %v3212
        %v3214 = vpop.f32.mrb[0].mxu0
        %3215 = vmatprep.mubr.f32.mxu0 0.0
        %3216 = vmatmul.mubr.f32.gmra.mrb[0].mxu0 %v3016
        %v3217 = vpop.f32.mrb[0].mxu0
        %v3218 = vadd.f32 0.0, %v3217
        %v3219 = vpop.f32.mrb[0].mxu0
        %3220 = vmatprep.mubr.f32.mxu0 0.0
        %3221 = vmatmul.mubr.f32.gmra.mrb[0].mxu0 %v3019
        %v3222 = vpop.f32.mrb[0].mxu0
        %v3223 = vadd.f32 0.0, %v3222
        %v3224 = vpop.f32.mrb[0].mxu0
        %3225 = vmatprep.mubr.f32.mxu0 0.0
        %3226 = vmatmul.mubr.f32.gmra.mrb[0].mxu0 %v3022
        %v3227 = vpop.f32.mrb[0].mxu0
        %v3228 = vadd.f32 0.0, %v3227
        %v3229 = vpop.f32.mrb[0].mxu0
        %3230 = vmatprep.mubr.f32.mxu0 0.0
        %3231 = vmatmul.mubr.f32.gmra.mrb[0].mxu0 %v3025
        %v3232 = vpop.f32.mrb[0].mxu0
        %v3233 = vadd.f32 0.0, %v3232
        %v3234 = vpop.f32.mrb[0].mxu0
        %3235 = vmatprep.mubr.f32.mxu0 0.0
        %3236 = vmatmul.mubr.f32.gmra.mrb[0].mxu0 %v3028
        %v3237 = vpop.f32.mrb[0].mxu0
        %v3238 = vadd.f32 0.0, %v3237
        %v3239 = vpop.f32.mrb[0].mxu0
        %3240 = vmatprep.mubr.f32.mxu0 0.0
        %3241 = vmatmul.mubr.f32.gmra.mrb[0].mxu0 %v3031
        %v3242 = vpop.f32.mrb[0].mxu0
        %v3243 = vadd.f32 0.0, %v3242
        %v3244 = vpop.f32.mrb[0].mxu0
        %3245 = vmatprep.mubr.f32.mxu0 0.0
        %3246 = vmatmul.mubr.f32.gmra.mrb[0].mxu0 %v3034
        %v3247 = vpop.f32.mrb[0].mxu0
        %v3248 = vadd.f32 0.0, %v3247
        %v3249 = vpop.f32.mrb[0].mxu0
        %3250 = vmatprep.mubr.f32.mxu0 0.0
        %3251 = vmatmul.mubr.f32.gmra.mrb[0].mxu0 %v3037
        %v3252 = vpop.f32.mrb[0].mxu0
        %v3253 = vadd.f32 0.0, %v3252
        %v3254 = vpop.f32.mrb[0].mxu0
        %3255 = vmatprep.mubr.f32.mxu0 0.0
        %3256 = vmatmul.mubr.f32.gmra.mrb[0].mxu0 %v3040
        %v3257 = vpop.f32.mrb[0].mxu0
        %v3258 = vadd.f32 0.0, %v3257
        %v3259 = vpop.f32.mrb[0].mxu0
        %3260 = vmatprep.mubr.f32.mxu0 0.0
        %3261 = vmatmul.mubr.f32.gmra.mrb[0].mxu0 %v3043
        %v3262 = vpop.f32.mrb[0].mxu0
        %v3263 = vadd.f32 0.0, %v3262
        %v3264 = vpop.f32.mrb[0].mxu0
        %3265 = vmatprep.mubr.f32.mxu0 0.0
        %3266 = vmatmul.mubr.f32.gmra.mrb[0].mxu0 %v3046
        %v3267 = vpop.f32.mrb[0].mxu0
        %v3268 = vadd.f32 0.0, %v3267
        %v3269 = vpop.f32.mrb[0].mxu0
        %3270 = vmatprep.mubr.f32.mxu0 0.0
        %3271 = vmatmul.mubr.f32.gmra.mrb[0].mxu0 %v3049
        %v3272 = vpop.f32.mrb[0].mxu0
        %v3273 = vadd.f32 0.0, %v3272
        %v3274 = vpop.f32.mrb[0].mxu0
        %3275 = vdwg.mxu0
        %v3276 = vadd.f32 %v2886, %v3118
        %v3277 = vadd.f32 %v2887, %v3123
        %v3278 = vadd.f32 %v2888, %v3128
        %v3279 = vadd.f32 %v2889, %v3133
        %v3280 = vadd.f32 %v2890, %v3138
        %v3281 = vadd.f32 %v2891, %v3143
        %v3282 = vadd.f32 %v2892, %v3148
        %v3283 = vadd.f32 %v2893, %v3153
        %v3284 = vadd.f32 %v2894, %v3158
        %v3285 = vadd.f32 %v2895, %v3163
        %v3286 = vadd.f32 %v2896, %v3168
        %v3287 = vadd.f32 %v2897, %v3173
        %v3288 = vadd.f32 %v2898, %v3178
        %v3289 = vadd.f32 %v2899, %v3183
        %v3290 = vadd.f32 %v2900, %v3188
        %v3291 = vadd.f32 %v2901, %v3193
        %v3292 = vadd.f32 %v2902, %v3198
        %v3293 = vadd.f32 %v2903, %v3203
        %v3294 = vadd.f32 %v2904, %v3208
        %v3295 = vadd.f32 %v2905, %v3213
        %v3296 = vadd.f32 %v2906, %v3218
        %v3297 = vadd.f32 %v2907, %v3223
        %v3298 = vadd.f32 %v2908, %v3228
        %v3299 = vadd.f32 %v2909, %v3233
        %v3300 = vadd.f32 %v2910, %v3238
        %v3301 = vadd.f32 %v2911, %v3243
        %v3302 = vadd.f32 %v2912, %v3248
        %v3303 = vadd.f32 %v2913, %v3253
        %v3304 = vadd.f32 %v2914, %v3258
        %v3305 = vadd.f32 %v2915, %v3263
        %v3306 = vadd.f32 %v2916, %v3268
        %v3307 = vadd.f32 %v2917, %v3273
        %v3308 = vld [vmem:[%s2527 + $0x2] sm:$0xff]
        %v3309 = vld [vmem:[%s2527 + $0xa] sm:$0xff]
        %v3310 = vld [vmem:[%s2527 + $0x1a] sm:$0xff]
        %v3311 = vld [vmem:[%s2527 + $0x22] sm:$0xff]
        %v3312 = vld [vmem:[%s2527 + $0x32] sm:$0xff]
        %v3313 = vld [vmem:[%s2527 + $0x3a] sm:$0xff]
        %v3314 = vld [vmem:[%s2527 + $0x4a] sm:$0xff]
        %v3315 = vld [vmem:[%s2527 + $0x52] sm:$0xff]
        %v3316 = vld [vmem:[%s2527 + $0x62] sm:$0xff]
        %v3317 = vld [vmem:[%s2527 + $0x6a] sm:$0xff]
        %v3318 = vld [vmem:[%s2527 + $0x7a] sm:$0xff]
        %v3319 = vld [vmem:[%s2527 + $0x82] sm:$0xff]
        %v3320 = vld [vmem:[%s2527 + $0x92] sm:$0xff]
        %v3321 = vld [vmem:[%s2527 + $0x9a] sm:$0xff]
        %v3322 = vld [vmem:[%s2527 + $0xaa] sm:$0xff]
        %v3323 = vld [vmem:[%s2527 + $0xb2] sm:$0xff]
        %v3324 = vld [vmem:[%s2527 + $0xc2] sm:$0xff]
        %v3325 = vld [vmem:[%s2527 + $0xca] sm:$0xff]
        %v3326 = vld [vmem:[%s2527 + $0xda] sm:$0xff]
        %v3327 = vld [vmem:[%s2527 + $0xe2] sm:$0xff]
        %v3328 = vld [vmem:[%s2527 + $0xf2] sm:$0xff]
        %v3329 = vld [vmem:[%s2527 + $0xfa] sm:$0xff]
        %v3330 = vld [vmem:[%s2527 + $0x10a] sm:$0xff]
        %v3331 = vld [vmem:[%s2527 + $0x112] sm:$0xff]
        %v3332 = vld [vmem:[%s2527 + $0x122] sm:$0xff]
        %v3333 = vld [vmem:[%s2527 + $0x12a] sm:$0xff]
        %v3334 = vld [vmem:[%s2527 + $0x13a] sm:$0xff]
        %v3335 = vld [vmem:[%s2527 + $0x142] sm:$0xff]
        %v3336 = vld [vmem:[%s2527 + $0x152] sm:$0xff]
        %v3337 = vld [vmem:[%s2527 + $0x15a] sm:$0xff]
        %v3338 = vld [vmem:[%s2527 + $0x16a] sm:$0xff]
        %v3339 = vld [vmem:[%s2527 + $0x172] sm:$0xff]
        %s3340 = scalar_lea.vmem %s1, 256
        %v3341 = vld [vmem:[%s3340] sm:$0xff]
        %v3342 = vld [vmem:[%s3340 + $0x8] sm:$0xff]
        %v3343 = vld [vmem:[%s3340 + $0x10] sm:$0xff]
        %v3344 = vld [vmem:[%s3340 + $0x18] sm:$0xff]
        %v3346 = vsel %vm323, %v3308, 0
        %v3349 = vsel %vm323, %v3309, 0
        %v3352 = vsel %vm323, %v3310, 0
        %v3355 = vsel %vm323, %v3311, 0
        %v3358 = vsel %vm323, %v3312, 0
        %v3361 = vsel %vm323, %v3313, 0
        %v3364 = vsel %vm323, %v3314, 0
        %v3367 = vsel %vm323, %v3315, 0
        %v3370 = vsel %vm323, %v3316, 0
        %v3373 = vsel %vm323, %v3317, 0
        %v3376 = vsel %vm323, %v3318, 0
        %v3379 = vsel %vm323, %v3319, 0
        %v3382 = vsel %vm323, %v3320, 0
        %v3385 = vsel %vm323, %v3321, 0
        %v3388 = vsel %vm323, %v3322, 0
        %v3391 = vsel %vm323, %v3323, 0
        %v3394 = vsel %vm323, %v3324, 0
        %v3397 = vsel %vm323, %v3325, 0
        %v3400 = vsel %vm323, %v3326, 0
        %v3403 = vsel %vm323, %v3327, 0
        %v3406 = vsel %vm323, %v3328, 0
        %v3409 = vsel %vm323, %v3329, 0
        %v3412 = vsel %vm323, %v3330, 0
        %v3415 = vsel %vm323, %v3331, 0
        %v3418 = vsel %vm323, %v3332, 0
        %v3421 = vsel %vm323, %v3333, 0
        %v3424 = vsel %vm323, %v3334, 0
        %v3427 = vsel %vm323, %v3335, 0
        %v3430 = vsel %vm323, %v3336, 0
        %v3433 = vsel %vm323, %v3337, 0
        %v3436 = vsel %vm323, %v3338, 0
        %v3439 = vsel %vm323, %v3339, 0
        %3441 = vmatprep.subr.mxu0 0.0
        %3442 = vmatpush1.msra.mxu0 %v3341
        %3443 = vmatprep.subr.mxu0 0.0
        %3444 = vmatpush1.msra.mxu0 %v3342
        %3445 = vmatprep.subr.mxu0 0.0
        %3446 = vmatpush1.msra.mxu0 %v3343
        %3447 = vmatprep.subr.mxu0 0.0
        %3448 = vmatpush1.msra.mxu0 %v3344
        %3449 = vmatprep.subr.mxu0 0.0
        %3450 = vmatpush1.msra.mxu0 0.0
        %3451 = vmatprep.subr.mxu0 0.0
        %3452 = vmatpush1.msra.mxu0 0.0
        %3453 = vmatprep.subr.mxu0 0.0
        %3454 = vmatpush1.msra.mxu0 0.0
        %3455 = vmatprep.subr.mxu0 0.0
        %3456 = vmatpush1.msra.mxu0 0.0
        %3457 = vmatprep.subr.mxu0 0.0
        %3458 = vmatpush1.msra.mxu0 0.0
        %3459 = vmatprep.subr.mxu0 0.0
        %3460 = vmatpush1.msra.mxu0 0.0
        %3461 = vmatprep.subr.mxu0 0.0
        %3462 = vmatpush1.msra.mxu0 0.0
        %3463 = vmatprep.subr.mxu0 0.0
        %3464 = vmatpush1.msra.mxu0 0.0
        %3465 = vmatprep.subr.mxu0 0.0
        %3466 = vmatpush1.msra.mxu0 0.0
        %3467 = vmatprep.subr.mxu0 0.0
        %3468 = vmatpush1.msra.mxu0 0.0
        %3469 = vmatprep.subr.mxu0 0.0
        %3470 = vmatpush1.msra.mxu0 0.0
        %3471 = vmatprep.subr.mxu0 0.0
        %3472 = vmatpush1.msra.mxu0 0.0
        %3473 = vmatprep.subr.mxu0 0.0
        %3474 = vmatpush1.msra.mxu0 0.0
        %3475 = vmatprep.subr.mxu0 0.0
        %3476 = vmatpush1.msra.mxu0 0.0
        %3477 = vmatprep.subr.mxu0 0.0
        %3478 = vmatpush1.msra.mxu0 0.0
        %3479 = vmatprep.subr.mxu0 0.0
        %3480 = vmatpush1.msra.mxu0 0.0
        %3481 = vmatprep.subr.mxu0 0.0
        %3482 = vmatpush1.msra.mxu0 0.0
        %3483 = vmatprep.subr.mxu0 0.0
        %3484 = vmatpush1.msra.mxu0 0.0
        %3485 = vmatprep.subr.mxu0 0.0
        %3486 = vmatpush1.msra.mxu0 0.0
        %3487 = vmatprep.subr.mxu0 0.0
        %3488 = vmatpush1.msra.mxu0 0.0
        %3489 = vmatprep.subr.mxu0 0.0
        %3490 = vmatpush1.msra.mxu0 0.0
        %3491 = vmatprep.subr.mxu0 0.0
        %3492 = vmatpush1.msra.mxu0 0.0
        %3493 = vmatprep.subr.mxu0 0.0
        %3494 = vmatpush1.msra.mxu0 0.0
        %3495 = vmatprep.subr.mxu0 0.0
        %3496 = vmatpush1.msra.mxu0 0.0
        %3497 = vmatprep.subr.mxu0 0.0
        %3498 = vmatpush1.msra.mxu0 0.0
        %3499 = vmatprep.subr.mxu0 0.0
        %3500 = vmatpush1.msra.mxu0 0.0
        %3501 = vmatprep.subr.mxu0 0.0
        %3502 = vmatpush1.msra.mxu0 0.0
        %3503 = vmatprep.subr.mxu0 0.0
        %3504 = vmatpush1.msra.mxu0 0.0
        %3505 = vmatprep.mubr.f32.mxu0 0.0
        %3506 = vmatmul.mubr.f32.gmra.mrb[0].mxu0 %v3346
        %v3507 = vpop.f32.mrb[0].mxu0
        %v3508 = vadd.f32 0.0, %v3507
        %v3509 = vpop.f32.mrb[0].mxu0
        %3510 = vmatprep.mubr.f32.mxu0 0.0
        %3511 = vmatmul.mubr.f32.gmra.mrb[0].mxu0 %v3349
        %v3512 = vpop.f32.mrb[0].mxu0
        %v3513 = vadd.f32 0.0, %v3512
        %v3514 = vpop.f32.mrb[0].mxu0
        %3515 = vmatprep.mubr.f32.mxu0 0.0
        %3516 = vmatmul.mubr.f32.gmra.mrb[0].mxu0 %v3352
        %v3517 = vpop.f32.mrb[0].mxu0
        %v3518 = vadd.f32 0.0, %v3517
        %v3519 = vpop.f32.mrb[0].mxu0
        %3520 = vmatprep.mubr.f32.mxu0 0.0
        %3521 = vmatmul.mubr.f32.gmra.mrb[0].mxu0 %v3355
        %v3522 = vpop.f32.mrb[0].mxu0
        %v3523 = vadd.f32 0.0, %v3522
        %v3524 = vpop.f32.mrb[0].mxu0
        %3525 = vmatprep.mubr.f32.mxu0 0.0
        %3526 = vmatmul.mubr.f32.gmra.mrb[0].mxu0 %v3358
        %v3527 = vpop.f32.mrb[0].mxu0
        %v3528 = vadd.f32 0.0, %v3527
        %v3529 = vpop.f32.mrb[0].mxu0
        %3530 = vmatprep.mubr.f32.mxu0 0.0
        %3531 = vmatmul.mubr.f32.gmra.mrb[0].mxu0 %v3361
        %v3532 = vpop.f32.mrb[0].mxu0
        %v3533 = vadd.f32 0.0, %v3532
        %v3534 = vpop.f32.mrb[0].mxu0
        %3535 = vmatprep.mubr.f32.mxu0 0.0
        %3536 = vmatmul.mubr.f32.gmra.mrb[0].mxu0 %v3364
        %v3537 = vpop.f32.mrb[0].mxu0
        %v3538 = vadd.f32 0.0, %v3537
        %v3539 = vpop.f32.mrb[0].mxu0
        %3540 = vmatprep.mubr.f32.mxu0 0.0
        %3541 = vmatmul.mubr.f32.gmra.mrb[0].mxu0 %v3367
        %v3542 = vpop.f32.mrb[0].mxu0
        %v3543 = vadd.f32 0.0, %v3542
        %v3544 = vpop.f32.mrb[0].mxu0
        %3545 = vmatprep.mubr.f32.mxu0 0.0
        %3546 = vmatmul.mubr.f32.gmra.mrb[0].mxu0 %v3370
        %v3547 = vpop.f32.mrb[0].mxu0
        %v3548 = vadd.f32 0.0, %v3547
        %v3549 = vpop.f32.mrb[0].mxu0
        %3550 = vmatprep.mubr.f32.mxu0 0.0
        %3551 = vmatmul.mubr.f32.gmra.mrb[0].mxu0 %v3373
        %v3552 = vpop.f32.mrb[0].mxu0
        %v3553 = vadd.f32 0.0, %v3552
        %v3554 = vpop.f32.mrb[0].mxu0
        %3555 = vmatprep.mubr.f32.mxu0 0.0
        %3556 = vmatmul.mubr.f32.gmra.mrb[0].mxu0 %v3376
        %v3557 = vpop.f32.mrb[0].mxu0
        %v3558 = vadd.f32 0.0, %v3557
        %v3559 = vpop.f32.mrb[0].mxu0
        %3560 = vmatprep.mubr.f32.mxu0 0.0
        %3561 = vmatmul.mubr.f32.gmra.mrb[0].mxu0 %v3379
        %v3562 = vpop.f32.mrb[0].mxu0
        %v3563 = vadd.f32 0.0, %v3562
        %v3564 = vpop.f32.mrb[0].mxu0
        %3565 = vmatprep.mubr.f32.mxu0 0.0
        %3566 = vmatmul.mubr.f32.gmra.mrb[0].mxu0 %v3382
        %v3567 = vpop.f32.mrb[0].mxu0
        %v3568 = vadd.f32 0.0, %v3567
        %v3569 = vpop.f32.mrb[0].mxu0
        %3570 = vmatprep.mubr.f32.mxu0 0.0
        %3571 = vmatmul.mubr.f32.gmra.mrb[0].mxu0 %v3385
        %v3572 = vpop.f32.mrb[0].mxu0
        %v3573 = vadd.f32 0.0, %v3572
        %v3574 = vpop.f32.mrb[0].mxu0
        %3575 = vmatprep.mubr.f32.mxu0 0.0
        %3576 = vmatmul.mubr.f32.gmra.mrb[0].mxu0 %v3388
        %v3577 = vpop.f32.mrb[0].mxu0
        %v3578 = vadd.f32 0.0, %v3577
        %v3579 = vpop.f32.mrb[0].mxu0
        %3580 = vmatprep.mubr.f32.mxu0 0.0
        %3581 = vmatmul.mubr.f32.gmra.mrb[0].mxu0 %v3391
        %v3582 = vpop.f32.mrb[0].mxu0
        %v3583 = vadd.f32 0.0, %v3582
        %v3584 = vpop.f32.mrb[0].mxu0
        %3585 = vmatprep.mubr.f32.mxu0 0.0
        %3586 = vmatmul.mubr.f32.gmra.mrb[0].mxu0 %v3394
        %v3587 = vpop.f32.mrb[0].mxu0
        %v3588 = vadd.f32 0.0, %v3587
        %v3589 = vpop.f32.mrb[0].mxu0
        %3590 = vmatprep.mubr.f32.mxu0 0.0
        %3591 = vmatmul.mubr.f32.gmra.mrb[0].mxu0 %v3397
        %v3592 = vpop.f32.mrb[0].mxu0
        %v3593 = vadd.f32 0.0, %v3592
        %v3594 = vpop.f32.mrb[0].mxu0
        %3595 = vmatprep.mubr.f32.mxu0 0.0
        %3596 = vmatmul.mubr.f32.gmra.mrb[0].mxu0 %v3400
        %v3597 = vpop.f32.mrb[0].mxu0
        %v3598 = vadd.f32 0.0, %v3597
        %v3599 = vpop.f32.mrb[0].mxu0
        %3600 = vmatprep.mubr.f32.mxu0 0.0
        %3601 = vmatmul.mubr.f32.gmra.mrb[0].mxu0 %v3403
        %v3602 = vpop.f32.mrb[0].mxu0
        %v3603 = vadd.f32 0.0, %v3602
        %v3604 = vpop.f32.mrb[0].mxu0
        %3605 = vmatprep.mubr.f32.mxu0 0.0
        %3606 = vmatmul.mubr.f32.gmra.mrb[0].mxu0 %v3406
        %v3607 = vpop.f32.mrb[0].mxu0
        %v3608 = vadd.f32 0.0, %v3607
        %v3609 = vpop.f32.mrb[0].mxu0
        %3610 = vmatprep.mubr.f32.mxu0 0.0
        %3611 = vmatmul.mubr.f32.gmra.mrb[0].mxu0 %v3409
        %v3612 = vpop.f32.mrb[0].mxu0
        %v3613 = vadd.f32 0.0, %v3612
        %v3614 = vpop.f32.mrb[0].mxu0
        %3615 = vmatprep.mubr.f32.mxu0 0.0
        %3616 = vmatmul.mubr.f32.gmra.mrb[0].mxu0 %v3412
        %v3617 = vpop.f32.mrb[0].mxu0
        %v3618 = vadd.f32 0.0, %v3617
        %v3619 = vpop.f32.mrb[0].mxu0
        %3620 = vmatprep.mubr.f32.mxu0 0.0
        %3621 = vmatmul.mubr.f32.gmra.mrb[0].mxu0 %v3415
        %v3622 = vpop.f32.mrb[0].mxu0
        %v3623 = vadd.f32 0.0, %v3622
        %v3624 = vpop.f32.mrb[0].mxu0
        %3625 = vmatprep.mubr.f32.mxu0 0.0
        %3626 = vmatmul.mubr.f32.gmra.mrb[0].mxu0 %v3418
        %v3627 = vpop.f32.mrb[0].mxu0
        %v3628 = vadd.f32 0.0, %v3627
        %v3629 = vpop.f32.mrb[0].mxu0
        %3630 = vmatprep.mubr.f32.mxu0 0.0
        %3631 = vmatmul.mubr.f32.gmra.mrb[0].mxu0 %v3421
        %v3632 = vpop.f32.mrb[0].mxu0
        %v3633 = vadd.f32 0.0, %v3632
        %v3634 = vpop.f32.mrb[0].mxu0
        %3635 = vmatprep.mubr.f32.mxu0 0.0
        %3636 = vmatmul.mubr.f32.gmra.mrb[0].mxu0 %v3424
        %v3637 = vpop.f32.mrb[0].mxu0
        %v3638 = vadd.f32 0.0, %v3637
        %v3639 = vpop.f32.mrb[0].mxu0
        %3640 = vmatprep.mubr.f32.mxu0 0.0
        %3641 = vmatmul.mubr.f32.gmra.mrb[0].mxu0 %v3427
        %v3642 = vpop.f32.mrb[0].mxu0
        %v3643 = vadd.f32 0.0, %v3642
        %v3644 = vpop.f32.mrb[0].mxu0
        %3645 = vmatprep.mubr.f32.mxu0 0.0
        %3646 = vmatmul.mubr.f32.gmra.mrb[0].mxu0 %v3430
        %v3647 = vpop.f32.mrb[0].mxu0
        %v3648 = vadd.f32 0.0, %v3647
        %v3649 = vpop.f32.mrb[0].mxu0
        %3650 = vmatprep.mubr.f32.mxu0 0.0
        %3651 = vmatmul.mubr.f32.gmra.mrb[0].mxu0 %v3433
        %v3652 = vpop.f32.mrb[0].mxu0
        %v3653 = vadd.f32 0.0, %v3652
        %v3654 = vpop.f32.mrb[0].mxu0
        %3655 = vmatprep.mubr.f32.mxu0 0.0
        %3656 = vmatmul.mubr.f32.gmra.mrb[0].mxu0 %v3436
        %v3657 = vpop.f32.mrb[0].mxu0
        %v3658 = vadd.f32 0.0, %v3657
        %v3659 = vpop.f32.mrb[0].mxu0
        %3660 = vmatprep.mubr.f32.mxu0 0.0
        %3661 = vmatmul.mubr.f32.gmra.mrb[0].mxu0 %v3439
        %v3662 = vpop.f32.mrb[0].mxu0
        %v3663 = vadd.f32 0.0, %v3662
        %v3664 = vpop.f32.mrb[0].mxu0
        %3665 = vdwg.mxu0
        %v3666 = vadd.f32 %v3276, %v3508
        %v3667 = vadd.f32 %v3277, %v3513
        %v3668 = vadd.f32 %v3278, %v3518
        %v3669 = vadd.f32 %v3279, %v3523
        %v3670 = vadd.f32 %v3280, %v3528
        %v3671 = vadd.f32 %v3281, %v3533
        %v3672 = vadd.f32 %v3282, %v3538
        %v3673 = vadd.f32 %v3283, %v3543
        %v3674 = vadd.f32 %v3284, %v3548
        %v3675 = vadd.f32 %v3285, %v3553
        %v3676 = vadd.f32 %v3286, %v3558
        %v3677 = vadd.f32 %v3287, %v3563
        %v3678 = vadd.f32 %v3288, %v3568
        %v3679 = vadd.f32 %v3289, %v3573
        %v3680 = vadd.f32 %v3290, %v3578
        %v3681 = vadd.f32 %v3291, %v3583
        %v3682 = vadd.f32 %v3292, %v3588
        %v3683 = vadd.f32 %v3293, %v3593
        %v3684 = vadd.f32 %v3294, %v3598
        %v3685 = vadd.f32 %v3295, %v3603
        %v3686 = vadd.f32 %v3296, %v3608
        %v3687 = vadd.f32 %v3297, %v3613
        %v3688 = vadd.f32 %v3298, %v3618
        %v3689 = vadd.f32 %v3299, %v3623
        %v3690 = vadd.f32 %v3300, %v3628
        %v3691 = vadd.f32 %v3301, %v3633
        %v3692 = vadd.f32 %v3302, %v3638
        %v3693 = vadd.f32 %v3303, %v3643
        %v3694 = vadd.f32 %v3304, %v3648
        %v3695 = vadd.f32 %v3305, %v3653
        %v3696 = vadd.f32 %v3306, %v3658
        %v3697 = vadd.f32 %v3307, %v3663
        %v3698 = vld [vmem:[%s2] sm:$0x1]
        %v3700 = vlaneseq
        %v3701 = vshrl.u32 %v3700, 7
        %v3702 = vsub.s32 0, %v3701
        %v3703 = vrot.slane %v3698, %v3702
        %v3705 = vadd.f32 %v3666, %v3703
        %v3706 = vadd.f32 %v3667, %v3703
        %v3707 = vadd.f32 %v3668, %v3703
        %v3708 = vadd.f32 %v3669, %v3703
        %v3709 = vadd.f32 %v3670, %v3703
        %v3710 = vadd.f32 %v3671, %v3703
        %v3711 = vadd.f32 %v3672, %v3703
        %v3712 = vadd.f32 %v3673, %v3703
        %v3713 = vadd.f32 %v3674, %v3703
        %v3714 = vadd.f32 %v3675, %v3703
        %v3715 = vadd.f32 %v3676, %v3703
        %v3716 = vadd.f32 %v3677, %v3703
        %v3717 = vadd.f32 %v3678, %v3703
        %v3718 = vadd.f32 %v3679, %v3703
        %v3719 = vadd.f32 %v3680, %v3703
        %v3720 = vadd.f32 %v3681, %v3703
        %v3721 = vadd.f32 %v3682, %v3703
        %v3722 = vadd.f32 %v3683, %v3703
        %v3723 = vadd.f32 %v3684, %v3703
        %v3724 = vadd.f32 %v3685, %v3703
        %v3725 = vadd.f32 %v3686, %v3703
        %v3726 = vadd.f32 %v3687, %v3703
        %v3727 = vadd.f32 %v3688, %v3703
        %v3728 = vadd.f32 %v3689, %v3703
        %v3729 = vadd.f32 %v3690, %v3703
        %v3730 = vadd.f32 %v3691, %v3703
        %v3731 = vadd.f32 %v3692, %v3703
        %v3732 = vadd.f32 %v3693, %v3703
        %v3733 = vadd.f32 %v3694, %v3703
        %v3734 = vadd.f32 %v3695, %v3703
        %v3735 = vadd.f32 %v3696, %v3703
        %v3736 = vadd.f32 %v3697, %v3703
        %v3737 = vmax.f32 %v3705, 0.0
        %v3738 = vmax.f32 %v3706, 0.0
        %v3739 = vmax.f32 %v3707, 0.0
        %v3740 = vmax.f32 %v3708, 0.0
        %v3741 = vmax.f32 %v3709, 0.0
        %v3742 = vmax.f32 %v3710, 0.0
        %v3743 = vmax.f32 %v3711, 0.0
        %v3744 = vmax.f32 %v3712, 0.0
        %v3745 = vmax.f32 %v3713, 0.0
        %v3746 = vmax.f32 %v3714, 0.0
        %v3747 = vmax.f32 %v3715, 0.0
        %v3748 = vmax.f32 %v3716, 0.0
        %v3749 = vmax.f32 %v3717, 0.0
        %v3750 = vmax.f32 %v3718, 0.0
        %v3751 = vmax.f32 %v3719, 0.0
        %v3752 = vmax.f32 %v3720, 0.0
        %v3753 = vmax.f32 %v3721, 0.0
        %v3754 = vmax.f32 %v3722, 0.0
        %v3755 = vmax.f32 %v3723, 0.0
        %v3756 = vmax.f32 %v3724, 0.0
        %v3757 = vmax.f32 %v3725, 0.0
        %v3758 = vmax.f32 %v3726, 0.0
        %v3759 = vmax.f32 %v3727, 0.0
        %v3760 = vmax.f32 %v3728, 0.0
        %v3761 = vmax.f32 %v3729, 0.0
        %v3762 = vmax.f32 %v3730, 0.0
        %v3763 = vmax.f32 %v3731, 0.0
        %v3764 = vmax.f32 %v3732, 0.0
        %v3765 = vmax.f32 %v3733, 0.0
        %v3766 = vmax.f32 %v3734, 0.0
        %v3767 = vmax.f32 %v3735, 0.0
        %v3768 = vmax.f32 %v3736, 0.0
        %v3769 = vmul.f32 %v3737, %v3737
        %v3770 = vmul.f32 %v3738, %v3738
        %v3771 = vmul.f32 %v3739, %v3739
        %v3772 = vmul.f32 %v3740, %v3740
        %v3773 = vmul.f32 %v3741, %v3741
        %v3774 = vmul.f32 %v3742, %v3742
        %v3775 = vmul.f32 %v3743, %v3743
        %v3776 = vmul.f32 %v3744, %v3744
        %v3777 = vmul.f32 %v3745, %v3745
        %v3778 = vmul.f32 %v3746, %v3746
        %v3779 = vmul.f32 %v3747, %v3747
        %v3780 = vmul.f32 %v3748, %v3748
        %v3781 = vmul.f32 %v3749, %v3749
        %v3782 = vmul.f32 %v3750, %v3750
        %v3783 = vmul.f32 %v3751, %v3751
        %v3784 = vmul.f32 %v3752, %v3752
        %v3785 = vmul.f32 %v3753, %v3753
        %v3786 = vmul.f32 %v3754, %v3754
        %v3787 = vmul.f32 %v3755, %v3755
        %v3788 = vmul.f32 %v3756, %v3756
        %v3789 = vmul.f32 %v3757, %v3757
        %v3790 = vmul.f32 %v3758, %v3758
        %v3791 = vmul.f32 %v3759, %v3759
        %v3792 = vmul.f32 %v3760, %v3760
        %v3793 = vmul.f32 %v3761, %v3761
        %v3794 = vmul.f32 %v3762, %v3762
        %v3795 = vmul.f32 %v3763, %v3763
        %v3796 = vmul.f32 %v3764, %v3764
        %v3797 = vmul.f32 %v3765, %v3765
        %v3798 = vmul.f32 %v3766, %v3766
        %v3799 = vmul.f32 %v3767, %v3767
        %v3800 = vmul.f32 %v3768, %v3768
        %v3801 = vsel %vm323, %v3769, 0.0
        %3802 = vadd.xlane.f32.xlu0 %v3801
        %v3803 = vpop.xlane.xlu0 %3802
        %v3804 = vsel %vm323, %v3770, 0.0
        %3805 = vadd.xlane.f32.xlu0 %v3804
        %v3806 = vpop.xlane.xlu0 %3805
        %v3807 = vsel %vm323, %v3771, 0.0
        %3808 = vadd.xlane.f32.xlu0 %v3807
        %v3809 = vpop.xlane.xlu0 %3808
        %v3810 = vsel %vm323, %v3772, 0.0
        %3811 = vadd.xlane.f32.xlu0 %v3810
        %v3812 = vpop.xlane.xlu0 %3811
        %v3813 = vsel %vm323, %v3773, 0.0
        %3814 = vadd.xlane.f32.xlu0 %v3813
        %v3815 = vpop.xlane.xlu0 %3814
        %v3816 = vsel %vm323, %v3774, 0.0
        %3817 = vadd.xlane.f32.xlu0 %v3816
        %v3818 = vpop.xlane.xlu0 %3817
        %v3819 = vsel %vm323, %v3775, 0.0
        %3820 = vadd.xlane.f32.xlu0 %v3819
        %v3821 = vpop.xlane.xlu0 %3820
        %v3822 = vsel %vm323, %v3776, 0.0
        %3823 = vadd.xlane.f32.xlu0 %v3822
        %v3824 = vpop.xlane.xlu0 %3823
        %v3825 = vsel %vm323, %v3777, 0.0
        %3826 = vadd.xlane.f32.xlu0 %v3825
        %v3827 = vpop.xlane.xlu0 %3826
        %v3828 = vsel %vm323, %v3778, 0.0
        %3829 = vadd.xlane.f32.xlu0 %v3828
        %v3830 = vpop.xlane.xlu0 %3829
        %v3831 = vsel %vm323, %v3779, 0.0
        %3832 = vadd.xlane.f32.xlu0 %v3831
        %v3833 = vpop.xlane.xlu0 %3832
        %v3834 = vsel %vm323, %v3780, 0.0
        %3835 = vadd.xlane.f32.xlu0 %v3834
        %v3836 = vpop.xlane.xlu0 %3835
        %v3837 = vsel %vm323, %v3781, 0.0
        %3838 = vadd.xlane.f32.xlu0 %v3837
        %v3839 = vpop.xlane.xlu0 %3838
        %v3840 = vsel %vm323, %v3782, 0.0
        %3841 = vadd.xlane.f32.xlu0 %v3840
        %v3842 = vpop.xlane.xlu0 %3841
        %v3843 = vsel %vm323, %v3783, 0.0
        %3844 = vadd.xlane.f32.xlu0 %v3843
        %v3845 = vpop.xlane.xlu0 %3844
        %v3846 = vsel %vm323, %v3784, 0.0
        %3847 = vadd.xlane.f32.xlu0 %v3846
        %v3848 = vpop.xlane.xlu0 %3847
        %v3849 = vsel %vm323, %v3785, 0.0
        %3850 = vadd.xlane.f32.xlu0 %v3849
        %v3851 = vpop.xlane.xlu0 %3850
        %v3852 = vsel %vm323, %v3786, 0.0
        %3853 = vadd.xlane.f32.xlu0 %v3852
        %v3854 = vpop.xlane.xlu0 %3853
        %v3855 = vsel %vm323, %v3787, 0.0
        %3856 = vadd.xlane.f32.xlu0 %v3855
        %v3857 = vpop.xlane.xlu0 %3856
        %v3858 = vsel %vm323, %v3788, 0.0
        %3859 = vadd.xlane.f32.xlu0 %v3858
        %v3860 = vpop.xlane.xlu0 %3859
        %v3861 = vsel %vm323, %v3789, 0.0
        %3862 = vadd.xlane.f32.xlu0 %v3861
        %v3863 = vpop.xlane.xlu0 %3862
        %v3864 = vsel %vm323, %v3790, 0.0
        %3865 = vadd.xlane.f32.xlu0 %v3864
        %v3866 = vpop.xlane.xlu0 %3865
        %v3867 = vsel %vm323, %v3791, 0.0
        %3868 = vadd.xlane.f32.xlu0 %v3867
        %v3869 = vpop.xlane.xlu0 %3868
        %v3870 = vsel %vm323, %v3792, 0.0
        %3871 = vadd.xlane.f32.xlu0 %v3870
        %v3872 = vpop.xlane.xlu0 %3871
        %v3873 = vsel %vm323, %v3793, 0.0
        %3874 = vadd.xlane.f32.xlu0 %v3873
        %v3875 = vpop.xlane.xlu0 %3874
        %v3876 = vsel %vm323, %v3794, 0.0
        %3877 = vadd.xlane.f32.xlu0 %v3876
        %v3878 = vpop.xlane.xlu0 %3877
        %v3879 = vsel %vm323, %v3795, 0.0
        %3880 = vadd.xlane.f32.xlu0 %v3879
        %v3881 = vpop.xlane.xlu0 %3880
        %v3882 = vsel %vm323, %v3796, 0.0
        %3883 = vadd.xlane.f32.xlu0 %v3882
        %v3884 = vpop.xlane.xlu0 %3883
        %v3885 = vsel %vm323, %v3797, 0.0
        %3886 = vadd.xlane.f32.xlu0 %v3885
        %v3887 = vpop.xlane.xlu0 %3886
        %v3888 = vsel %vm323, %v3798, 0.0
        %3889 = vadd.xlane.f32.xlu0 %v3888
        %v3890 = vpop.xlane.xlu0 %3889
        %v3891 = vsel %vm323, %v3799, 0.0
        %3892 = vadd.xlane.f32.xlu0 %v3891
        %v3893 = vpop.xlane.xlu0 %3892
        %v3894 = vsel %vm323, %v3800, 0.0
        %3895 = vadd.xlane.f32.xlu0 %v3894
        %v3896 = vpop.xlane.xlu0 %3895
        %v3897 = vrsqrt.pop %v3803
        %v3898 = vmul.f32 %v3803, %v3897
        %vm3899 = vcmp.eq.f32.partialorder %v3803, inf
        %v3900 = vsel %vm3899, %v3803, %v3898
        %vm3901 = vcmp.eq.f32.partialorder %v3803, 0.0
        %v3902 = vand.u32 %v3803, 2147483648
        %v3903 = vsel %vm3901, %v3902, %v3900
        %v3904 = vrsqrt.pop %v3806
        %v3905 = vmul.f32 %v3806, %v3904
        %vm3906 = vcmp.eq.f32.partialorder %v3806, inf
        %v3907 = vsel %vm3906, %v3806, %v3905
        %vm3908 = vcmp.eq.f32.partialorder %v3806, 0.0
        %v3909 = vand.u32 %v3806, 2147483648
        %v3910 = vsel %vm3908, %v3909, %v3907
        %v3911 = vrsqrt.pop %v3809
        %v3912 = vmul.f32 %v3809, %v3911
        %vm3913 = vcmp.eq.f32.partialorder %v3809, inf
        %v3914 = vsel %vm3913, %v3809, %v3912
        %vm3915 = vcmp.eq.f32.partialorder %v3809, 0.0
        %v3916 = vand.u32 %v3809, 2147483648
        %v3917 = vsel %vm3915, %v3916, %v3914
        %v3918 = vrsqrt.pop %v3812
        %v3919 = vmul.f32 %v3812, %v3918
        %vm3920 = vcmp.eq.f32.partialorder %v3812, inf
        %v3921 = vsel %vm3920, %v3812, %v3919
        %vm3922 = vcmp.eq.f32.partialorder %v3812, 0.0
        %v3923 = vand.u32 %v3812, 2147483648
        %v3924 = vsel %vm3922, %v3923, %v3921
        %v3925 = vrsqrt.pop %v3815
        %v3926 = vmul.f32 %v3815, %v3925
        %vm3927 = vcmp.eq.f32.partialorder %v3815, inf
        %v3928 = vsel %vm3927, %v3815, %v3926
        %vm3929 = vcmp.eq.f32.partialorder %v3815, 0.0
        %v3930 = vand.u32 %v3815, 2147483648
        %v3931 = vsel %vm3929, %v3930, %v3928
        %v3932 = vrsqrt.pop %v3818
        %v3933 = vmul.f32 %v3818, %v3932
        %vm3934 = vcmp.eq.f32.partialorder %v3818, inf
        %v3935 = vsel %vm3934, %v3818, %v3933
        %vm3936 = vcmp.eq.f32.partialorder %v3818, 0.0
        %v3937 = vand.u32 %v3818, 2147483648
        %v3938 = vsel %vm3936, %v3937, %v3935
        %v3939 = vrsqrt.pop %v3821
        %v3940 = vmul.f32 %v3821, %v3939
        %vm3941 = vcmp.eq.f32.partialorder %v3821, inf
        %v3942 = vsel %vm3941, %v3821, %v3940
        %vm3943 = vcmp.eq.f32.partialorder %v3821, 0.0
        %v3944 = vand.u32 %v3821, 2147483648
        %v3945 = vsel %vm3943, %v3944, %v3942
        %v3946 = vrsqrt.pop %v3824
        %v3947 = vmul.f32 %v3824, %v3946
        %vm3948 = vcmp.eq.f32.partialorder %v3824, inf
        %v3949 = vsel %vm3948, %v3824, %v3947
        %vm3950 = vcmp.eq.f32.partialorder %v3824, 0.0
        %v3951 = vand.u32 %v3824, 2147483648
        %v3952 = vsel %vm3950, %v3951, %v3949
        %v3953 = vrsqrt.pop %v3827
        %v3954 = vmul.f32 %v3827, %v3953
        %vm3955 = vcmp.eq.f32.partialorder %v3827, inf
        %v3956 = vsel %vm3955, %v3827, %v3954
        %vm3957 = vcmp.eq.f32.partialorder %v3827, 0.0
        %v3958 = vand.u32 %v3827, 2147483648
        %v3959 = vsel %vm3957, %v3958, %v3956
        %v3960 = vrsqrt.pop %v3830
        %v3961 = vmul.f32 %v3830, %v3960
        %vm3962 = vcmp.eq.f32.partialorder %v3830, inf
        %v3963 = vsel %vm3962, %v3830, %v3961
        %vm3964 = vcmp.eq.f32.partialorder %v3830, 0.0
        %v3965 = vand.u32 %v3830, 2147483648
        %v3966 = vsel %vm3964, %v3965, %v3963
        %v3967 = vrsqrt.pop %v3833
        %v3968 = vmul.f32 %v3833, %v3967
        %vm3969 = vcmp.eq.f32.partialorder %v3833, inf
        %v3970 = vsel %vm3969, %v3833, %v3968
        %vm3971 = vcmp.eq.f32.partialorder %v3833, 0.0
        %v3972 = vand.u32 %v3833, 2147483648
        %v3973 = vsel %vm3971, %v3972, %v3970
        %v3974 = vrsqrt.pop %v3836
        %v3975 = vmul.f32 %v3836, %v3974
        %vm3976 = vcmp.eq.f32.partialorder %v3836, inf
        %v3977 = vsel %vm3976, %v3836, %v3975
        %vm3978 = vcmp.eq.f32.partialorder %v3836, 0.0
        %v3979 = vand.u32 %v3836, 2147483648
        %v3980 = vsel %vm3978, %v3979, %v3977
        %v3981 = vrsqrt.pop %v3839
        %v3982 = vmul.f32 %v3839, %v3981
        %vm3983 = vcmp.eq.f32.partialorder %v3839, inf
        %v3984 = vsel %vm3983, %v3839, %v3982
        %vm3985 = vcmp.eq.f32.partialorder %v3839, 0.0
        %v3986 = vand.u32 %v3839, 2147483648
        %v3987 = vsel %vm3985, %v3986, %v3984
        %v3988 = vrsqrt.pop %v3842
        %v3989 = vmul.f32 %v3842, %v3988
        %vm3990 = vcmp.eq.f32.partialorder %v3842, inf
        %v3991 = vsel %vm3990, %v3842, %v3989
        %vm3992 = vcmp.eq.f32.partialorder %v3842, 0.0
        %v3993 = vand.u32 %v3842, 2147483648
        %v3994 = vsel %vm3992, %v3993, %v3991
        %v3995 = vrsqrt.pop %v3845
        %v3996 = vmul.f32 %v3845, %v3995
        %vm3997 = vcmp.eq.f32.partialorder %v3845, inf
        %v3998 = vsel %vm3997, %v3845, %v3996
        %vm3999 = vcmp.eq.f32.partialorder %v3845, 0.0
        %v4000 = vand.u32 %v3845, 2147483648
        %v4001 = vsel %vm3999, %v4000, %v3998
        %v4002 = vrsqrt.pop %v3848
        %v4003 = vmul.f32 %v3848, %v4002
        %vm4004 = vcmp.eq.f32.partialorder %v3848, inf
        %v4005 = vsel %vm4004, %v3848, %v4003
        %vm4006 = vcmp.eq.f32.partialorder %v3848, 0.0
        %v4007 = vand.u32 %v3848, 2147483648
        %v4008 = vsel %vm4006, %v4007, %v4005
        %v4009 = vrsqrt.pop %v3851
        %v4010 = vmul.f32 %v3851, %v4009
        %vm4011 = vcmp.eq.f32.partialorder %v3851, inf
        %v4012 = vsel %vm4011, %v3851, %v4010
        %vm4013 = vcmp.eq.f32.partialorder %v3851, 0.0
        %v4014 = vand.u32 %v3851, 2147483648
        %v4015 = vsel %vm4013, %v4014, %v4012
        %v4016 = vrsqrt.pop %v3854
        %v4017 = vmul.f32 %v3854, %v4016
        %vm4018 = vcmp.eq.f32.partialorder %v3854, inf
        %v4019 = vsel %vm4018, %v3854, %v4017
        %vm4020 = vcmp.eq.f32.partialorder %v3854, 0.0
        %v4021 = vand.u32 %v3854, 2147483648
        %v4022 = vsel %vm4020, %v4021, %v4019
        %v4023 = vrsqrt.pop %v3857
        %v4024 = vmul.f32 %v3857, %v4023
        %vm4025 = vcmp.eq.f32.partialorder %v3857, inf
        %v4026 = vsel %vm4025, %v3857, %v4024
        %vm4027 = vcmp.eq.f32.partialorder %v3857, 0.0
        %v4028 = vand.u32 %v3857, 2147483648
        %v4029 = vsel %vm4027, %v4028, %v4026
        %v4030 = vrsqrt.pop %v3860
        %v4031 = vmul.f32 %v3860, %v4030
        %vm4032 = vcmp.eq.f32.partialorder %v3860, inf
        %v4033 = vsel %vm4032, %v3860, %v4031
        %vm4034 = vcmp.eq.f32.partialorder %v3860, 0.0
        %v4035 = vand.u32 %v3860, 2147483648
        %v4036 = vsel %vm4034, %v4035, %v4033
        %v4037 = vrsqrt.pop %v3863
        %v4038 = vmul.f32 %v3863, %v4037
        %vm4039 = vcmp.eq.f32.partialorder %v3863, inf
        %v4040 = vsel %vm4039, %v3863, %v4038
        %vm4041 = vcmp.eq.f32.partialorder %v3863, 0.0
        %v4042 = vand.u32 %v3863, 2147483648
        %v4043 = vsel %vm4041, %v4042, %v4040
        %v4044 = vrsqrt.pop %v3866
        %v4045 = vmul.f32 %v3866, %v4044
        %vm4046 = vcmp.eq.f32.partialorder %v3866, inf
        %v4047 = vsel %vm4046, %v3866, %v4045
        %vm4048 = vcmp.eq.f32.partialorder %v3866, 0.0
        %v4049 = vand.u32 %v3866, 2147483648
        %v4050 = vsel %vm4048, %v4049, %v4047
        %v4051 = vrsqrt.pop %v3869
        %v4052 = vmul.f32 %v3869, %v4051
        %vm4053 = vcmp.eq.f32.partialorder %v3869, inf
        %v4054 = vsel %vm4053, %v3869, %v4052
        %vm4055 = vcmp.eq.f32.partialorder %v3869, 0.0
        %v4056 = vand.u32 %v3869, 2147483648
        %v4057 = vsel %vm4055, %v4056, %v4054
        %v4058 = vrsqrt.pop %v3872
        %v4059 = vmul.f32 %v3872, %v4058
        %vm4060 = vcmp.eq.f32.partialorder %v3872, inf
        %v4061 = vsel %vm4060, %v3872, %v4059
        %vm4062 = vcmp.eq.f32.partialorder %v3872, 0.0
        %v4063 = vand.u32 %v3872, 2147483648
        %v4064 = vsel %vm4062, %v4063, %v4061
        %v4065 = vrsqrt.pop %v3875
        %v4066 = vmul.f32 %v3875, %v4065
        %vm4067 = vcmp.eq.f32.partialorder %v3875, inf
        %v4068 = vsel %vm4067, %v3875, %v4066
        %vm4069 = vcmp.eq.f32.partialorder %v3875, 0.0
        %v4070 = vand.u32 %v3875, 2147483648
        %v4071 = vsel %vm4069, %v4070, %v4068
        %v4072 = vrsqrt.pop %v3878
        %v4073 = vmul.f32 %v3878, %v4072
        %vm4074 = vcmp.eq.f32.partialorder %v3878, inf
        %v4075 = vsel %vm4074, %v3878, %v4073
        %vm4076 = vcmp.eq.f32.partialorder %v3878, 0.0
        %v4077 = vand.u32 %v3878, 2147483648
        %v4078 = vsel %vm4076, %v4077, %v4075
        %v4079 = vrsqrt.pop %v3881
        %v4080 = vmul.f32 %v3881, %v4079
        %vm4081 = vcmp.eq.f32.partialorder %v3881, inf
        %v4082 = vsel %vm4081, %v3881, %v4080
        %vm4083 = vcmp.eq.f32.partialorder %v3881, 0.0
        %v4084 = vand.u32 %v3881, 2147483648
        %v4085 = vsel %vm4083, %v4084, %v4082
        %v4086 = vrsqrt.pop %v3884
        %v4087 = vmul.f32 %v3884, %v4086
        %vm4088 = vcmp.eq.f32.partialorder %v3884, inf
        %v4089 = vsel %vm4088, %v3884, %v4087
        %vm4090 = vcmp.eq.f32.partialorder %v3884, 0.0
        %v4091 = vand.u32 %v3884, 2147483648
        %v4092 = vsel %vm4090, %v4091, %v4089
        %v4093 = vrsqrt.pop %v3887
        %v4094 = vmul.f32 %v3887, %v4093
        %vm4095 = vcmp.eq.f32.partialorder %v3887, inf
        %v4096 = vsel %vm4095, %v3887, %v4094
        %vm4097 = vcmp.eq.f32.partialorder %v3887, 0.0
        %v4098 = vand.u32 %v3887, 2147483648
        %v4099 = vsel %vm4097, %v4098, %v4096
        %v4100 = vrsqrt.pop %v3890
        %v4101 = vmul.f32 %v3890, %v4100
        %vm4102 = vcmp.eq.f32.partialorder %v3890, inf
        %v4103 = vsel %vm4102, %v3890, %v4101
        %vm4104 = vcmp.eq.f32.partialorder %v3890, 0.0
        %v4105 = vand.u32 %v3890, 2147483648
        %v4106 = vsel %vm4104, %v4105, %v4103
        %v4107 = vrsqrt.pop %v3893
        %v4108 = vmul.f32 %v3893, %v4107
        %vm4109 = vcmp.eq.f32.partialorder %v3893, inf
        %v4110 = vsel %vm4109, %v3893, %v4108
        %vm4111 = vcmp.eq.f32.partialorder %v3893, 0.0
        %v4112 = vand.u32 %v3893, 2147483648
        %v4113 = vsel %vm4111, %v4112, %v4110
        %v4114 = vrsqrt.pop %v3896
        %v4115 = vmul.f32 %v3896, %v4114
        %vm4116 = vcmp.eq.f32.partialorder %v3896, inf
        %v4117 = vsel %vm4116, %v3896, %v4115
        %vm4118 = vcmp.eq.f32.partialorder %v3896, 0.0
        %v4119 = vand.u32 %v3896, 2147483648
        %v4120 = vsel %vm4118, %v4119, %v4117
        %v4121 = vmax.f32 %v3903, 1e-12
        %v4122 = vmax.f32 %v3910, 1e-12
        %v4123 = vmax.f32 %v3917, 1e-12
        %v4124 = vmax.f32 %v3924, 1e-12
        %v4125 = vmax.f32 %v3931, 1e-12
        %v4126 = vmax.f32 %v3938, 1e-12
        %v4127 = vmax.f32 %v3945, 1e-12
        %v4128 = vmax.f32 %v3952, 1e-12
        %v4129 = vmax.f32 %v3959, 1e-12
        %v4130 = vmax.f32 %v3966, 1e-12
        %v4131 = vmax.f32 %v3973, 1e-12
        %v4132 = vmax.f32 %v3980, 1e-12
        %v4133 = vmax.f32 %v3987, 1e-12
        %v4134 = vmax.f32 %v3994, 1e-12
        %v4135 = vmax.f32 %v4001, 1e-12
        %v4136 = vmax.f32 %v4008, 1e-12
        %v4137 = vmax.f32 %v4015, 1e-12
        %v4138 = vmax.f32 %v4022, 1e-12
        %v4139 = vmax.f32 %v4029, 1e-12
        %v4140 = vmax.f32 %v4036, 1e-12
        %v4141 = vmax.f32 %v4043, 1e-12
        %v4142 = vmax.f32 %v4050, 1e-12
        %v4143 = vmax.f32 %v4057, 1e-12
        %v4144 = vmax.f32 %v4064, 1e-12
        %v4145 = vmax.f32 %v4071, 1e-12
        %v4146 = vmax.f32 %v4078, 1e-12
        %v4147 = vmax.f32 %v4085, 1e-12
        %v4148 = vmax.f32 %v4092, 1e-12
        %v4149 = vmax.f32 %v4099, 1e-12
        %v4150 = vmax.f32 %v4106, 1e-12
        %v4151 = vmax.f32 %v4113, 1e-12
        %v4152 = vmax.f32 %v4120, 1e-12
        %v4153 = vrcp.pop %v4121
        %v4154 = vmul.f32 %v3737, %v4153
        %v4155 = vrcp.pop %v4122
        %v4156 = vmul.f32 %v3738, %v4155
        %v4157 = vrcp.pop %v4123
        %v4158 = vmul.f32 %v3739, %v4157
        %v4159 = vrcp.pop %v4124
        %v4160 = vmul.f32 %v3740, %v4159
        %v4161 = vrcp.pop %v4125
        %v4162 = vmul.f32 %v3741, %v4161
        %v4163 = vrcp.pop %v4126
        %v4164 = vmul.f32 %v3742, %v4163
        %v4165 = vrcp.pop %v4127
        %v4166 = vmul.f32 %v3743, %v4165
        %v4167 = vrcp.pop %v4128
        %v4168 = vmul.f32 %v3744, %v4167
        %v4169 = vrcp.pop %v4129
        %v4170 = vmul.f32 %v3745, %v4169
        %v4171 = vrcp.pop %v4130
        %v4172 = vmul.f32 %v3746, %v4171
        %v4173 = vrcp.pop %v4131
        %v4174 = vmul.f32 %v3747, %v4173
        %v4175 = vrcp.pop %v4132
        %v4176 = vmul.f32 %v3748, %v4175
        %v4177 = vrcp.pop %v4133
        %v4178 = vmul.f32 %v3749, %v4177
        %v4179 = vrcp.pop %v4134
        %v4180 = vmul.f32 %v3750, %v4179
        %v4181 = vrcp.pop %v4135
        %v4182 = vmul.f32 %v3751, %v4181
        %v4183 = vrcp.pop %v4136
        %v4184 = vmul.f32 %v3752, %v4183
        %v4185 = vrcp.pop %v4137
        %v4186 = vmul.f32 %v3753, %v4185
        %v4187 = vrcp.pop %v4138
        %v4188 = vmul.f32 %v3754, %v4187
        %v4189 = vrcp.pop %v4139
        %v4190 = vmul.f32 %v3755, %v4189
        %v4191 = vrcp.pop %v4140
        %v4192 = vmul.f32 %v3756, %v4191
        %v4193 = vrcp.pop %v4141
        %v4194 = vmul.f32 %v3757, %v4193
        %v4195 = vrcp.pop %v4142
        %v4196 = vmul.f32 %v3758, %v4195
        %v4197 = vrcp.pop %v4143
        %v4198 = vmul.f32 %v3759, %v4197
        %v4199 = vrcp.pop %v4144
        %v4200 = vmul.f32 %v3760, %v4199
        %v4201 = vrcp.pop %v4145
        %v4202 = vmul.f32 %v3761, %v4201
        %v4203 = vrcp.pop %v4146
        %v4204 = vmul.f32 %v3762, %v4203
        %v4205 = vrcp.pop %v4147
        %v4206 = vmul.f32 %v3763, %v4205
        %v4207 = vrcp.pop %v4148
        %v4208 = vmul.f32 %v3764, %v4207
        %v4209 = vrcp.pop %v4149
        %v4210 = vmul.f32 %v3765, %v4209
        %v4211 = vrcp.pop %v4150
        %v4212 = vmul.f32 %v3766, %v4211
        %v4213 = vrcp.pop %v4151
        %v4214 = vmul.f32 %v3767, %v4213
        %v4215 = vrcp.pop %v4152
        %v4216 = vmul.f32 %v3768, %v4215
        %v4217 = vld [vmem:[%s3] sm:$0xff]
        %v4218 = vld [vmem:[%s3 + $0x8] sm:$0xff]
        %v4219 = vld [vmem:[%s4] sm:$0xff]
        %v4220 = vld [vmem:[%s4 + $0x8] sm:$0xff]
        %4222 = vset.pattern.permute.xlu0 0
        %4223 = vperm.xlu0 %4222, %v4219
        %v4224 = vpop.permute.xlu0 %4223
        %4227 = vset.pattern.permute.xlu0 0
        %4228 = vperm.xlu0 %4227, %v4220
        %v4229 = vpop.permute.xlu0 %4228
        %v4232 = vsel %vm323, %v4217, 0
        %v4235 = vsel %vm323, %v4218, 0
        %v4238 = vsel %vm323, %v4154, 0
        %v4241 = vsel %vm323, %v4156, 0
        %v4244 = vsel %vm323, %v4158, 0
        %v4247 = vsel %vm323, %v4160, 0
        %v4250 = vsel %vm323, %v4162, 0
        %v4253 = vsel %vm323, %v4164, 0
        %v4256 = vsel %vm323, %v4166, 0
        %v4259 = vsel %vm323, %v4168, 0
        %v4262 = vsel %vm323, %v4170, 0
        %v4265 = vsel %vm323, %v4172, 0
        %v4268 = vsel %vm323, %v4174, 0
        %v4271 = vsel %vm323, %v4176, 0
        %v4274 = vsel %vm323, %v4178, 0
        %v4277 = vsel %vm323, %v4180, 0
        %v4280 = vsel %vm323, %v4182, 0
        %v4283 = vsel %vm323, %v4184, 0
        %v4286 = vsel %vm323, %v4186, 0
        %v4289 = vsel %vm323, %v4188, 0
        %v4292 = vsel %vm323, %v4190, 0
        %v4295 = vsel %vm323, %v4192, 0
        %v4298 = vsel %vm323, %v4194, 0
        %v4301 = vsel %vm323, %v4196, 0
        %v4304 = vsel %vm323, %v4198, 0
        %v4307 = vsel %vm323, %v4200, 0
        %v4310 = vsel %vm323, %v4202, 0
        %v4313 = vsel %vm323, %v4204, 0
        %v4316 = vsel %vm323, %v4206, 0
        %v4319 = vsel %vm323, %v4208, 0
        %v4322 = vsel %vm323, %v4210, 0
        %v4325 = vsel %vm323, %v4212, 0
        %v4328 = vsel %vm323, %v4214, 0
        %v4331 = vsel %vm323, %v4216, 0
        %4333 = vmatprep.subr.mxu0 0.0
        %4334 = vmatpush1.xpose.msra.mxu0 %v4238
        %4335 = vmatprep.subr.mxu0 0.0
        %4336 = vmatpush1.xpose.msra.mxu0 %v4241
        %4337 = vmatprep.subr.mxu0 0.0
        %4338 = vmatpush1.xpose.msra.mxu0 %v4244
        %4339 = vmatprep.subr.mxu0 0.0
        %4340 = vmatpush1.xpose.msra.mxu0 %v4247
        %4341 = vmatprep.subr.mxu0 0.0
        %4342 = vmatpush1.xpose.msra.mxu0 %v4250
        %4343 = vmatprep.subr.mxu0 0.0
        %4344 = vmatpush1.xpose.msra.mxu0 %v4253
        %4345 = vmatprep.subr.mxu0 0.0
        %4346 = vmatpush1.xpose.msra.mxu0 %v4256
        %4347 = vmatprep.subr.mxu0 0.0
        %4348 = vmatpush1.xpose.msra.mxu0 %v4259
        %4349 = vmatprep.subr.mxu0 0.0
        %4350 = vmatpush1.xpose.msra.mxu0 %v4262
        %4351 = vmatprep.subr.mxu0 0.0
        %4352 = vmatpush1.xpose.msra.mxu0 %v4265
        %4353 = vmatprep.subr.mxu0 0.0
        %4354 = vmatpush1.xpose.msra.mxu0 %v4268
        %4355 = vmatprep.subr.mxu0 0.0
        %4356 = vmatpush1.xpose.msra.mxu0 %v4271
        %4357 = vmatprep.subr.mxu0 0.0
        %4358 = vmatpush1.xpose.msra.mxu0 %v4274
        %4359 = vmatprep.subr.mxu0 0.0
        %4360 = vmatpush1.xpose.msra.mxu0 %v4277
        %4361 = vmatprep.subr.mxu0 0.0
        %4362 = vmatpush1.xpose.msra.mxu0 %v4280
        %4363 = vmatprep.subr.mxu0 0.0
        %4364 = vmatpush1.xpose.msra.mxu0 %v4283
        %4365 = vmatprep.subr.mxu0 0.0
        %4366 = vmatpush1.xpose.msra.mxu0 %v4286
        %4367 = vmatprep.subr.mxu0 0.0
        %4368 = vmatpush1.xpose.msra.mxu0 %v4289
        %4369 = vmatprep.subr.mxu0 0.0
        %4370 = vmatpush1.xpose.msra.mxu0 %v4292
        %4371 = vmatprep.subr.mxu0 0.0
        %4372 = vmatpush1.xpose.msra.mxu0 %v4295
        %4373 = vmatprep.subr.mxu0 0.0
        %4374 = vmatpush1.xpose.msra.mxu0 %v4298
        %4375 = vmatprep.subr.mxu0 0.0
        %4376 = vmatpush1.xpose.msra.mxu0 %v4301
        %4377 = vmatprep.subr.mxu0 0.0
        %4378 = vmatpush1.xpose.msra.mxu0 %v4304
        %4379 = vmatprep.subr.mxu0 0.0
        %4380 = vmatpush1.xpose.msra.mxu0 %v4307
        %4381 = vmatprep.subr.mxu0 0.0
        %4382 = vmatpush1.xpose.msra.mxu0 %v4310
        %4383 = vmatprep.subr.mxu0 0.0
        %4384 = vmatpush1.xpose.msra.mxu0 %v4313
        %4385 = vmatprep.subr.mxu0 0.0
        %4386 = vmatpush1.xpose.msra.mxu0 %v4316
        %4387 = vmatprep.subr.mxu0 0.0
        %4388 = vmatpush1.xpose.msra.mxu0 %v4319
        %4389 = vmatprep.subr.mxu0 0.0
        %4390 = vmatpush1.xpose.msra.mxu0 %v4322
        %4391 = vmatprep.subr.mxu0 0.0
        %4392 = vmatpush1.xpose.msra.mxu0 %v4325
        %4393 = vmatprep.subr.mxu0 0.0
        %4394 = vmatpush1.xpose.msra.mxu0 %v4328
        %4395 = vmatprep.subr.mxu0 0.0
        %4396 = vmatpush1.xpose.msra.mxu0 %v4331
        %4397 = vmatprep.mubr.f32.mxu0 0.0
        %4398 = vmatmul.mubr.f32.gmra.mrb[0].mxu0 %v4232
        %v4399 = vpop.f32.mrb[0].mxu0
        %v4400 = vadd.f32 %v4224, %v4399
        %v4401 = vpop.f32.mrb[0].mxu0
        %v4402 = vadd.f32 %v4224, %v4401
        %4403 = vmatprep.mubr.f32.mxu0 0.0
        %4404 = vmatmul.mubr.f32.gmra.mrb[0].mxu0 %v4235
        %v4405 = vpop.f32.mrb[0].mxu0
        %v4406 = vadd.f32 %v4229, %v4405
        %v4407 = vpop.f32.mrb[0].mxu0
        %v4408 = vadd.f32 %v4229, %v4407
        %4409 = vdwg.mxu0
        %v4410 = vld [vmem:[%s5] ss:$8 sm:$0x3]
        %v4413 = vrot.slane %v4400, 5
        %v4414 = vrot.slane %v4402, 5
        %4415 = vrot.lane.b32.xlu0 %v4413, 17
        %v4416 = vpop.permute.xlu0 %4415
        %4417 = vrot.lane.b32.xlu0 %v4414, 17
        %v4418 = vpop.permute.xlu0 %4417
        %vm4419 = vcmask 138240
        %v4420 = vsel %vm4419, %v4416, %v4418
        %v4422 = vsel %vm4419, 0.0, %v4416
        %v4424 = vcombine.low %v4422, %v4420
        %v4426 = vunpack.c.l.s4 1966171168
        %v4427 = vunpack.c.0.s8 %v4426
        %v4428 = vlaneseq
        %v4429 = vshrl.u32 %v4428, 7
        %v4430 = vsub.s32 %v4427, %v4429
        %v4431 = vrot.slane %v4424, %v4430
        %v4433 = vunpack.c.l.s4 1966171168
        %v4434 = vunpack.c.0.s8 %v4433
        %v4435 = vlaneseq
        %v4436 = vshrl.u32 %v4435, 7
        %v4437 = vsub.s32 %v4434, %v4436
        %v4438 = vrot.slane %v4431, %v4437
        %v4440 = vmul.f32 %v4410, %v4438
        %v4442 = vlaneseq
        %v4443 = vshrl.u32 %v4442, 7
        %v4444 = vsub.s32 0, %v4443
        %v4445 = vrot.slane %v4440, %v4444
        %v4446 = vlaneseq
        %v4447 = vshrl.u32 %v4446, 7
        %v4448 = vsub.s32 1, %v4447
        %v4449 = vrot.slane %v4440, %v4448
        %v4452 = vadd.f32 %v4406, %v4445
        %v4453 = vadd.f32 %v4408, %v4449
        %s4454 = scalar_lea.vmem %s5, 1
        %v4455 = vld [vmem:[%s4454] ss:$8 sm:$0x3]
        %v4456 = vrot.slane %v4400, 6
        %v4457 = vrot.slane %v4402, 6
        %4458 = vrot.lane.b32.xlu0 %v4456, 16
        %v4459 = vpop.permute.xlu0 %4458
        %4460 = vrot.lane.b32.xlu0 %v4457, 16
        %v4461 = vpop.permute.xlu0 %4460
        %vm4462 = vcmask 130048
        %v4463 = vsel %vm4462, %v4459, %v4461
        %v4465 = vsel %vm4462, 0.0, %v4459
        %v4467 = vcombine.low %v4465, %v4463
        %v4469 = vunpack.c.l.s4 1966171168
        %v4470 = vunpack.c.0.s8 %v4469
        %v4471 = vlaneseq
        %v4472 = vshrl.u32 %v4471, 7
        %v4473 = vsub.s32 %v4470, %v4472
        %v4474 = vrot.slane %v4467, %v4473
        %v4476 = vunpack.c.l.s4 1966171168
        %v4477 = vunpack.c.0.s8 %v4476
        %v4478 = vlaneseq
        %v4479 = vshrl.u32 %v4478, 7
        %v4480 = vsub.s32 %v4477, %v4479
        %v4481 = vrot.slane %v4474, %v4480
        %v4483 = vmul.f32 %v4455, %v4481
        %v4485 = vlaneseq
        %v4486 = vshrl.u32 %v4485, 7
        %v4487 = vsub.s32 0, %v4486
        %v4488 = vrot.slane %v4483, %v4487
        %v4489 = vlaneseq
        %v4490 = vshrl.u32 %v4489, 7
        %v4491 = vsub.s32 1, %v4490
        %v4492 = vrot.slane %v4483, %v4491
        %v4495 = vadd.f32 %v4452, %v4488
        %v4496 = vadd.f32 %v4453, %v4492
        %s4497 = scalar_lea.vmem %s5, 2
        %v4498 = vld [vmem:[%s4497] ss:$8 sm:$0x3]
        %v4499 = vrot.slane %v4400, 7
        %v4500 = vrot.slane %v4402, 7
        %4501 = vrot.lane.b32.xlu0 %v4499, 15
        %v4502 = vpop.permute.xlu0 %4501
        %4503 = vrot.lane.b32.xlu0 %v4500, 15
        %v4504 = vpop.permute.xlu0 %4503
        %vm4505 = vcmask 121856
        %v4506 = vsel %vm4505, %v4502, %v4504
        %v4508 = vsel %vm4505, 0.0, %v4502
        %v4510 = vcombine.low %v4508, %v4506
        %v4512 = vunpack.c.l.s4 1966171168
        %v4513 = vunpack.c.0.s8 %v4512
        %v4514 = vlaneseq
        %v4515 = vshrl.u32 %v4514, 7
        %v4516 = vsub.s32 %v4513, %v4515
        %v4517 = vrot.slane %v4510, %v4516
        %v4519 = vunpack.c.l.s4 1966171168
        %v4520 = vunpack.c.0.s8 %v4519
        %v4521 = vlaneseq
        %v4522 = vshrl.u32 %v4521, 7
        %v4523 = vsub.s32 %v4520, %v4522
        %v4524 = vrot.slane %v4517, %v4523
        %v4526 = vmul.f32 %v4498, %v4524
        %v4528 = vlaneseq
        %v4529 = vshrl.u32 %v4528, 7
        %v4530 = vsub.s32 0, %v4529
        %v4531 = vrot.slane %v4526, %v4530
        %v4532 = vlaneseq
        %v4533 = vshrl.u32 %v4532, 7
        %v4534 = vsub.s32 1, %v4533
        %v4535 = vrot.slane %v4526, %v4534
        %v4538 = vadd.f32 %v4495, %v4531
        %v4539 = vadd.f32 %v4496, %v4535
        %s4540 = scalar_lea.vmem %s5, 3
        %v4541 = vld [vmem:[%s4540] ss:$8 sm:$0x3]
        %4544 = vrot.lane.b32.xlu0 %v4406, 1
        %v4545 = vpop.permute.xlu0 %4544
        %4546 = vrot.lane.b32.xlu0 %v4408, 1
        %v4547 = vpop.permute.xlu0 %4546
        %vm4548 = vcmask 7168
        %v4549 = vsel %vm4548, %v4545, %v4547
        %v4551 = vsel %vm4548, 0.0, %v4545
        %v4553 = vcombine.low %v4551, %v4549
        %v4555 = vunpack.c.l.s4 1966171168
        %v4556 = vunpack.c.0.s8 %v4555
        %v4557 = vlaneseq
        %v4558 = vshrl.u32 %v4557, 7
        %v4559 = vsub.s32 %v4556, %v4558
        %v4560 = vrot.slane %v4553, %v4559
        %v4562 = vunpack.c.l.s4 1966171168
        %v4563 = vunpack.c.0.s8 %v4562
        %v4564 = vlaneseq
        %v4565 = vshrl.u32 %v4564, 7
        %v4566 = vsub.s32 %v4563, %v4565
        %v4567 = vrot.slane %v4560, %v4566
        %v4569 = vmul.f32 %v4541, %v4567
        %v4571 = vlaneseq
        %v4572 = vshrl.u32 %v4571, 7
        %v4573 = vsub.s32 0, %v4572
        %v4574 = vrot.slane %v4569, %v4573
        %v4575 = vlaneseq
        %v4576 = vshrl.u32 %v4575, 7
        %v4577 = vsub.s32 1, %v4576
        %v4578 = vrot.slane %v4569, %v4577
        %v4581 = vadd.f32 %v4538, %v4574
        %v4582 = vadd.f32 %v4539, %v4578
        %s4583 = scalar_lea.vmem %s5, 4
        %v4584 = vld [vmem:[%s4583] ss:$8 sm:$0x3]
        %v4585 = vcombine.low %v4406, %v4408
        %v4587 = vunpack.c.l.s4 1966171168
        %v4588 = vunpack.c.0.s8 %v4587
        %v4589 = vlaneseq
        %v4590 = vshrl.u32 %v4589, 7
        %v4591 = vsub.s32 %v4588, %v4590
        %v4592 = vrot.slane %v4585, %v4591
        %v4593 = vcombine.high %v4592, %v4592
        %v4595 = vunpack.c.l.s4 1966171168
        %v4596 = vunpack.c.0.s8 %v4595
        %v4597 = vlaneseq
        %v4598 = vshrl.u32 %v4597, 7
        %v4599 = vsub.s32 %v4596, %v4598
        %v4600 = vrot.slane %v4593, %v4599
        %v4602 = vmul.f32 %v4584, %v4600
        %v4604 = vlaneseq
        %v4605 = vshrl.u32 %v4604, 7
        %v4606 = vsub.s32 0, %v4605
        %v4607 = vrot.slane %v4602, %v4606
        %v4608 = vlaneseq
        %v4609 = vshrl.u32 %v4608, 7
        %v4610 = vsub.s32 1, %v4609
        %v4611 = vrot.slane %v4602, %v4610
        %v4614 = vadd.f32 %v4581, %v4607
        %v4615 = vadd.f32 %v4582, %v4611
        %s4616 = scalar_lea.vmem %s5, 5
        %v4617 = vld [vmem:[%s4616] ss:$8 sm:$0x3]
        %4618 = vrot.lane.b32.xlu0 %v4406, 127
        %v4619 = vpop.permute.xlu0 %4618
        %4620 = vrot.lane.b32.xlu0 %v4408, 127
        %v4621 = vpop.permute.xlu0 %4620
        %vm4622 = vcmask 1039360
        %v4623 = vsel %vm4622, %v4619, %v4621
        %v4625 = vsel %vm4622, %v4621, 0.0
        %v4627 = vcombine.low %v4623, %v4625
        %v4629 = vunpack.c.l.s4 1966171168
        %v4630 = vunpack.c.0.s8 %v4629
        %v4631 = vlaneseq
        %v4632 = vshrl.u32 %v4631, 7
        %v4633 = vsub.s32 %v4630, %v4632
        %v4634 = vrot.slane %v4627, %v4633
        %v4636 = vunpack.c.l.s4 1966171168
        %v4637 = vunpack.c.0.s8 %v4636
        %v4638 = vlaneseq
        %v4639 = vshrl.u32 %v4638, 7
        %v4640 = vsub.s32 %v4637, %v4639
        %v4641 = vrot.slane %v4634, %v4640
        %v4642 = vcombine.high %v4641, %v4641
        %v4644 = vmul.f32 %v4617, %v4642
        %v4646 = vlaneseq
        %v4647 = vshrl.u32 %v4646, 7
        %v4648 = vsub.s32 0, %v4647
        %v4649 = vrot.slane %v4644, %v4648
        %v4650 = vlaneseq
        %v4651 = vshrl.u32 %v4650, 7
        %v4652 = vsub.s32 1, %v4651
        %v4653 = vrot.slane %v4644, %v4652
        %v4656 = vadd.f32 %v4614, %v4649
        %v4657 = vadd.f32 %v4615, %v4653
        %s4658 = scalar_lea.vmem %s5, 6
        %v4659 = vld [vmem:[%s4658] ss:$8 sm:$0x3]
        %4660 = vrot.lane.b32.xlu0 %v4406, 113
        %v4661 = vpop.permute.xlu0 %4660
        %4662 = vrot.lane.b32.xlu0 %v4408, 113
        %v4663 = vpop.permute.xlu0 %4662
        %vm4664 = vcmask 924672
        %v4665 = vsel %vm4664, %v4661, %v4663
        %v4667 = vsel %vm4664, %v4663, 0.0
        %v4669 = vcombine.low %v4665, %v4667
        %v4671 = vunpack.c.l.s4 1966171168
        %v4672 = vunpack.c.0.s8 %v4671
        %v4673 = vlaneseq
        %v4674 = vshrl.u32 %v4673, 7
        %v4675 = vsub.s32 %v4672, %v4674
        %v4676 = vrot.slane %v4669, %v4675
        %v4677 = vcombine.high %v4676, %v4676
        %v4679 = vunpack.c.l.s4 1966171168
        %v4680 = vunpack.c.0.s8 %v4679
        %v4681 = vlaneseq
        %v4682 = vshrl.u32 %v4681, 7
        %v4683 = vsub.s32 %v4680, %v4682
        %v4684 = vrot.slane %v4677, %v4683
        %v4685 = vcombine.high %v4684, %v4684
        %v4687 = vmul.f32 %v4659, %v4685
        %v4689 = vlaneseq
        %v4690 = vshrl.u32 %v4689, 7
        %v4691 = vsub.s32 0, %v4690
        %v4692 = vrot.slane %v4687, %v4691
        %v4693 = vlaneseq
        %v4694 = vshrl.u32 %v4693, 7
        %v4695 = vsub.s32 1, %v4694
        %v4696 = vrot.slane %v4687, %v4695
        %v4699 = vadd.f32 %v4656, %v4692
        %v4700 = vadd.f32 %v4657, %v4696
        %s4701 = scalar_lea.vmem %s5, 7
        %v4702 = vld [vmem:[%s4701] ss:$8 sm:$0x3]
        %4703 = vrot.lane.b32.xlu0 %v4406, 112
        %v4704 = vpop.permute.xlu0 %4703
        %4705 = vrot.lane.b32.xlu0 %v4408, 112
        %v4706 = vpop.permute.xlu0 %4705
        %vm4707 = vcmask 916480
        %v4708 = vsel %vm4707, %v4704, %v4706
        %v4710 = vsel %vm4707, %v4706, 0.0
        %v4712 = vcombine.high %v4708, %v4710
        %v4714 = vunpack.c.l.s4 1966171168
        %v4715 = vunpack.c.0.s8 %v4714
        %v4716 = vlaneseq
        %v4717 = vshrl.u32 %v4716, 7
        %v4718 = vsub.s32 %v4715, %v4717
        %v4719 = vrot.slane %v4712, %v4718
        %v4721 = vunpack.c.l.s4 1966171168
        %v4722 = vunpack.c.0.s8 %v4721
        %v4723 = vlaneseq
        %v4724 = vshrl.u32 %v4723, 7
        %v4725 = vsub.s32 %v4722, %v4724
        %v4726 = vrot.slane %v4719, %v4725
        %v4728 = vmul.f32 %v4702, %v4726
        %v4730 = vlaneseq
        %v4731 = vshrl.u32 %v4730, 7
        %v4732 = vsub.s32 0, %v4731
        %v4733 = vrot.slane %v4728, %v4732
        %v4734 = vlaneseq
        %v4735 = vshrl.u32 %v4734, 7
        %v4736 = vsub.s32 1, %v4735
        %v4737 = vrot.slane %v4728, %v4736
        %v4740 = vadd.f32 %v4699, %v4733
        %v4741 = vadd.f32 %v4700, %v4737
        %s4742 = scalar_lea.vmem %s5, 16
        %v4743 = vld [vmem:[%s4742] ss:$8 sm:$0x3]
        %4744 = vrot.lane.b32.xlu0 %v4406, 111
        %v4745 = vpop.permute.xlu0 %4744
        %4746 = vrot.lane.b32.xlu0 %v4408, 111
        %v4747 = vpop.permute.xlu0 %4746
        %vm4748 = vcmask 908288
        %v4749 = vsel %vm4748, %v4745, %v4747
        %v4751 = vsel %vm4748, %v4747, 0.0
        %v4753 = vcombine.high %v4749, %v4751
        %v4755 = vunpack.c.l.s4 1966171168
        %v4756 = vunpack.c.0.s8 %v4755
        %v4757 = vlaneseq
        %v4758 = vshrl.u32 %v4757, 7
        %v4759 = vsub.s32 %v4756, %v4758
        %v4760 = vrot.slane %v4753, %v4759
        %v4761 = vcombine.high %v4760, %v4760
        %v4763 = vunpack.c.l.s4 1966171168
        %v4764 = vunpack.c.0.s8 %v4763
        %v4765 = vlaneseq
        %v4766 = vshrl.u32 %v4765, 7
        %v4767 = vsub.s32 %v4764, %v4766
        %v4768 = vrot.slane %v4761, %v4767
        %v4770 = vmul.f32 %v4743, %v4768
        %v4772 = vlaneseq
        %v4773 = vshrl.u32 %v4772, 7
        %v4774 = vsub.s32 0, %v4773
        %v4775 = vrot.slane %v4770, %v4774
        %v4776 = vlaneseq
        %v4777 = vshrl.u32 %v4776, 7
        %v4778 = vsub.s32 1, %v4777
        %v4779 = vrot.slane %v4770, %v4778
        %v4782 = vadd.f32 %v4740, %v4775
        %v4783 = vadd.f32 %v4741, %v4779
        %v4786 = vrot.slane %v4782, 1
        %v4787 = vrot.slane %v4783, 1
        %vm4790 = vcmask 1044480
        %v4791 = vsel %vm4790, %v4400, %v4786
        %v4792 = vsel %vm4790, %v4402, %v4787
        %vm4793 = vcmask 1045504
        %v4794 = vsel %vm4793, %v4791, 0.0
        %v4795 = vsel %vm4793, %v4792, 0.0
        %4796 = vst [vmem:[%s244] sm:$0xff] %v4794
        %4797 = vst [vmem:[%s244 + $0x8] sm:$0xff] %v4795
        %s4798 = sand.u32 %s159, 1
        %s4799 = scalar_lea.sflag [#allocation3], %s4798
        %s4800 = sand.u32 %s159, 1
        %s4801 = smul.addr %s4800, 16
        %s4802 = scalar_lea.vmem [#allocation2], %s4801
        // Predicated region
        $region45: #{tpu_custom_call.1} parent=43 // pred_check
          %p4803 = pneg %p169
        $region46: #{tpu_custom_call.1} parent=43 // pred_check_branch
          %4805 = sbr.rel (%p4803) target = $region48
        $region47: #{tpu_custom_call.1} parent=43 // pred_region
          %s4807 = ssub.s32 256, 256
          %4808 = vsyncadd %s4799, %s4807
          %s4809 = smul.addr %s20, 2
          %s4810 = smul.addr %s4809, 128
          %s4811 = scalar_lea.hbm %s6, %s4810
          %s4813 = sshll.u32 %s4802, 4
          %s4814 = int_to_ptr.vmem [resolvable:$true] %s4813
          %4816 = dma.vmem_to_hbm [thread:$0]  %s4814, 256, %s4811, %s4799
        $region48: #{tpu_custom_call.1} parent=43 // pred_fallthru
          _
      $region44: #{tpu_custom_call.1} parent=5 // pred_fallthru
        _
      %p4817 = scmp.le.s32.totalorder 2, %s15
      // Predicated region
      $region49: #{tpu_custom_call.1} parent=5 // pred_check
        %p4818 = pneg %p4817
      $region50: #{tpu_custom_call.1} parent=5 // pred_check_branch
        %4820 = sbr.rel (%p4818) target = $region52
      $region51: #{tpu_custom_call.1} parent=5 // pred_region
        %s4821 = ssub.s32 %s15, 2
        // Predicated region
        $region53: #{tpu_custom_call.1} parent=51 // pred_check
          %p4822 = pneg %p175
        $region54: #{tpu_custom_call.1} parent=51 // pred_check_branch
          %4824 = sbr.rel (%p4822) target = $region56
        $region55: #{tpu_custom_call.1} parent=51 // pred_region
          %s4825 = sand.u32 %s160, 1
          %s4826 = scalar_lea.sflag [#allocation3], %s4825
          %s4827 = sand.u32 %s160, 1
          %s4828 = smul.addr %s4827, 16
          %s4829 = scalar_lea.vmem [#allocation2], %s4828
          %4830 = dma.done %s4826, 256
        $region56: #{tpu_custom_call.1} parent=51 // pred_fallthru
          _
      $region52: #{tpu_custom_call.1} parent=5 // pred_fallthru
        _
    $region6: #{tpu_custom_call.1} parent=1 // loop_footer
      %s19 = sadd.s32 1, %s15
    $region7: #{tpu_custom_call.1} parent=1 // loop_footer_branch
      %14 = sbr.rel target = $region3
    $region8: #{tpu_custom_call.1} parent=1 // loop_exit
      _
    %4831 = vsyncpa [#allocation3], 1
    %s4832 = scalar_lea.sflag [#allocation3], 1
    %4833 = vsyncpa %s4832, 1

</llo_original>
